<compile_context>
chip_gen: v6e
topology: v6e:2x2x1
jax: 0.10.0
libtpu: 0.0.40
codegen_flags: <defaults>
</compile_context>

<pallas_src>
import functools

import jax
import jax.numpy as jnp
from jax.experimental import pallas as pl
from jax.experimental.pallas import tpu as pltpu


MXU_DTYPE = jnp.bfloat16          # matmul operand + gi storage dtype; math is f32
ATOL = 7e-2 if MXU_DTYPE == jnp.bfloat16 else 1e-4
VMEM_LIMIT = 48 * 1024 * 1024     # conservative: fits v7x 64 MiB physical VMEM


def _round_up(x, m):
    return ((x + m - 1) // m) * m


# ----------------------- Pallas kernel 1: input projection -------------------
def input_proj_kernel(x_ref, w6_ref, b6_ref, gf_ref, gb_ref):
    """gi = X @ [W_ih_fwd | W_ih_bwd]^T + b, one matmul for both directions.

    x_ref : (TM, Hp)   tile of flattened (Tp*Bp, Hp) embedded inputs (bf16)
    w6_ref: (Hp, 6Hp)  fused (gates x directions) input->hidden weights (bf16)
    b6_ref: (1, 6Hp)   fused input biases (f32)
    gf_ref: (TM, 3Hp)  forward-direction gate pre-activations (bf16)
    gb_ref: (TM, 3Hp)  backward-direction gate pre-activations (bf16)
    """
    G3 = gf_ref.shape[-1]
    g = jnp.dot(x_ref[...], w6_ref[...],
                preferred_element_type=jnp.float32) + b6_ref[...]
    gf_ref[...] = g[:, :G3].astype(gf_ref.dtype)
    gb_ref[...] = g[:, G3:].astype(gb_ref.dtype)


def _input_projection(x_flat, w6, b6, rows_per_tile):
    M, Hp = x_flat.shape
    G6 = w6.shape[-1]
    G3 = G6 // 2
    n_tiles = M // rows_per_tile
    return pl.pallas_call(
        input_proj_kernel,
        out_shape=(jax.ShapeDtypeStruct((M, G3), MXU_DTYPE),
                   jax.ShapeDtypeStruct((M, G3), MXU_DTYPE)),
        grid_spec=pltpu.PrefetchScalarGridSpec(
            num_scalar_prefetch=0,
            grid=(n_tiles,),                                  # tiled M axis
            in_specs=[
                pl.BlockSpec((rows_per_tile, Hp), lambda m: (m, 0)),
                pl.BlockSpec((Hp, G6), lambda m: (0, 0)),     # resident
                pl.BlockSpec((1, G6), lambda m: (0, 0)),      # resident
            ],
            out_specs=[
                pl.BlockSpec((rows_per_tile, G3), lambda m: (m, 0)),
                pl.BlockSpec((rows_per_tile, G3), lambda m: (m, 0)),
            ],
        ),
        compiler_params=pltpu.CompilerParams(
            dimension_semantics=("parallel",),
            vmem_limit_bytes=VMEM_LIMIT),
    )(x_flat, w6, b6)


def _proj_rows_per_tile(Tp, Bp, target_rows=1024):
    """Largest t | Tp with t*Bp close to target_rows (keeps clean tile edges)."""
    t = max(1, min(Tp, target_rows // max(Bp, 1)))
    while Tp % t:
        t -= 1
    return t * Bp


# ----------------------- Pallas kernel 2: GRU recurrence ----------------------
def gru_seq_kernel(gi_f_ref, gi_b_ref, whhT_ref, bhh_ref, len_ref,
                   out_f_ref, out_b_ref, hN_ref, h_scr):
    """Chunk of Tc timesteps per grid step, both directions carried together.

    gi_f_ref: (Tc, Bp, 3Hp) fwd input-side gate pre-activations (bf16, chunk c)
    gi_b_ref: (Tc, Bp, 3Hp) bwd pre-activations (bf16, chunk n_chunks-1-c)
    whhT_ref: (2, Hp, 3Hp)  fused hidden->hidden weights (bf16, resident)
    bhh_ref : (2, 1, 3Hp)   fused hidden biases (f32, resident)
    len_ref : (Bp, 1)       per-batch valid length (int32, resident)
    out_f_ref:(Tc, Bp, Hp)  forward outputs at natural time index
    out_b_ref:(Tc, Bp, Hp)  backward outputs at natural time index
    hN_ref  : (2, Bp, Hp)   final hidden (written at last grid step only)
    h_scr   : (2, Bp, Hp)   VMEM scratch carrying both recurrent states
    """
    c = pl.program_id(0)
    nc = pl.num_programs(0)
    Tc, _, Hp = out_f_ref.shape

    @pl.when(c == 0)
    def _():
        h_scr[...] = jnp.zeros_like(h_scr)

    whh_f = whhT_ref[0]            # resident (Hp, 3Hp) bf16
    whh_b = whhT_ref[1]
    bhh_f = bhh_ref[0]             # (1, 3Hp) f32
    bhh_b = bhh_ref[1]
    lens = len_ref[...]            # (Bp, 1) int32

    def gru_cell(h, gi_bf16, whh, bhh):
        # one fused-gate matmul per direction (bf16 MXU, f32 accumulation)
        gh = jnp.dot(h.astype(whh.dtype), whh,
                     preferred_element_type=jnp.float32) + bhh
        gi = gi_bf16.astype(jnp.float32)
        r = jax.nn.sigmoid(gi[:, :Hp] + gh[:, :Hp])
        z = jax.nn.sigmoid(gi[:, Hp:2 * Hp] + gh[:, Hp:2 * Hp])
        n = jnp.tanh(gi[:, 2 * Hp:] + r * gh[:, 2 * Hp:])
        return (1.0 - z) * n + z * h

    def step(j, carry):
        # ---- forward direction: absolute time t = c*Tc + j ----
        t_f = c * Tc + j
        h_f = h_scr[0]
        hc_f = gru_cell(h_f, gi_f_ref[j], whh_f, bhh_f)
        m_f = t_f < lens                                    # (Bp, 1) bool
        h_scr[0] = jnp.where(m_f, hc_f, h_f)
        out_f_ref[j] = jnp.where(m_f, hc_f, 0.0)

        # ---- backward direction: processes time t = Tp-1 - (c*Tc + j) ----
        jr = Tc - 1 - j
        t_b = (nc - 1 - c) * Tc + jr
        h_b = h_scr[1]
        hc_b = gru_cell(h_b, gi_b_ref[jr], whh_b, bhh_b)
        m_b = t_b < lens
        h_scr[1] = jnp.where(m_b, hc_b, h_b)
        out_b_ref[jr] = jnp.where(m_b, hc_b, 0.0)           # natural time index
        return carry

    jax.lax.fori_loop(0, Tc, step, 0, unroll=True)

    @pl.when(c == nc - 1)
    def _():
        hN_ref[...] = h_scr[...]


def _gru_recurrence(gi_f, gi_b, whhT_p, bhh_p, lens_p, time_chunk):
    Tp, Bp, G3 = gi_f.shape
    Hp = G3 // 3
    n_chunks = Tp // time_chunk
    return pl.pallas_call(
        gru_seq_kernel,
        out_shape=(jax.ShapeDtypeStruct((Tp, Bp, Hp), jnp.float32),
                   jax.ShapeDtypeStruct((Tp, Bp, Hp), jnp.float32),
                   jax.ShapeDtypeStruct((2, Bp, Hp), jnp.float32)),
        grid_spec=pltpu.PrefetchScalarGridSpec(
            num_scalar_prefetch=0,
            grid=(n_chunks,),
            in_specs=[
                pl.BlockSpec((time_chunk, Bp, G3), lambda c: (c, 0, 0)),
                pl.BlockSpec((time_chunk, Bp, G3),
                             lambda c: (n_chunks - 1 - c, 0, 0)),
                pl.BlockSpec((2, Hp, G3), lambda c: (0, 0, 0)),   # resident
                pl.BlockSpec((2, 1, G3), lambda c: (0, 0, 0)),    # resident
                pl.BlockSpec((Bp, 1), lambda c: (0, 0)),          # resident
            ],
            out_specs=[
                pl.BlockSpec((time_chunk, Bp, Hp), lambda c: (c, 0, 0)),
                pl.BlockSpec((time_chunk, Bp, Hp),
                             lambda c: (n_chunks - 1 - c, 0, 0)),
                pl.BlockSpec((2, Bp, Hp), lambda c: (0, 0, 0)),
            ],
            scratch_shapes=[pltpu.VMEM((2, Bp, Hp), jnp.float32)],
        ),
        compiler_params=pltpu.CompilerParams(
            dimension_semantics=("arbitrary",),                    # true recurrence
            vmem_limit_bytes=VMEM_LIMIT),
    )(gi_f, gi_b, whhT_p, bhh_p, lens_p)


# ------------------------------ parameters -----------------------------------
def init_encoder_params(key, num_words, hidden_size):
    """nn.Embedding + bidirectional nn.GRU params in fused (H, 3H) layout."""
    H = hidden_size
    k = 1.0 / jnp.sqrt(jnp.float32(H))
    keys = jax.random.split(key, 9)
    emb = jax.random.normal(keys[0], (num_words, H), jnp.float32)

    def w(kk):
        # PyTorch stores (3H, H) with gate order [r; z; n]; fuse + transpose to
        # (H_in, 3H_out) so x @ W yields all three gates in one matmul.
        m = jax.random.uniform(kk, (3 * H, H), jnp.float32, -k, k)
        return m.reshape(3, H, H).transpose(2, 0, 1).reshape(H, 3 * H)

    def b(kk):
        return jax.random.uniform(kk, (3 * H,), jnp.float32, -k, k)

    return {
        "emb": emb,
        "wihT": jnp.stack([w(keys[1]), w(keys[5])]),   # (2, H, 3H) fwd/bwd
        "whhT": jnp.stack([w(keys[2]), w(keys[6])]),
        "bih": jnp.stack([b(keys[3]), b(keys[7])]),    # (2, 3H)
        "bhh": jnp.stack([b(keys[4]), b(keys[8])]),
    }


def _pad_gate_mat(w, H, Hp):
    """(2, H, 3H) fused weights -> (2, Hp, 3Hp) with each gate padded to Hp."""
    w3 = w.reshape(2, H, 3, H)
    out = jnp.zeros((2, Hp, 3, Hp), w.dtype).at[:, :H, :, :H].set(w3)
    return out.reshape(2, Hp, 3 * Hp)


def _pad_gate_vec(b, H, Hp):
    """(2, 3H) fused biases -> (2, 1, 3Hp)."""
    b3 = b.reshape(2, 3, H)
    out = jnp.zeros((2, 3, Hp), b.dtype).at[:, :, :H].set(b3)
    return out.reshape(2, 1, 3 * Hp)


# ------------------------------ EncoderRNN ------------------------------------
@functools.partial(jax.jit, static_argnames=("time_chunk",))
def encoder_rnn_forward(params, input_seq, input_lengths, time_chunk=16):
    """EncoderRNN.forward: returns (outputs, hidden).

    input_seq:     (T, B) int32 token ids
    input_lengths: (B,)   int32 valid lengths (descending, as pack_padded needs)
    outputs:       (T, B, H)  forward + backward output sum
    hidden:        (2, B, H)  final hidden of each direction
    """
    T, B = input_seq.shape
    H = params["emb"].shape[1]
    Hp = _round_up(H, 128)                       # lane-dense hidden dim
    Bp = _round_up(B, 16 if MXU_DTYPE == jnp.bfloat16 else 8)
    Tp = _round_up(T, time_chunk)

    # -- glue: embedding gather + padding to aligned shapes (plain JAX) --
    embedded = params["emb"][input_seq]                                # (T, B, H)
    x_p = jnp.zeros((Tp, Bp, Hp), MXU_DTYPE).at[:T, :B, :H].set(
        embedded.astype(MXU_DTYPE))
    x_flat = x_p.reshape(Tp * Bp, Hp)                                  # free reshape

    wihT_p = _pad_gate_mat(params["wihT"], H, Hp).astype(MXU_DTYPE)    # (2, Hp, 3Hp)
    whhT_p = _pad_gate_mat(params["whhT"], H, Hp).astype(MXU_DTYPE)
    bih_p = _pad_gate_vec(params["bih"], H, Hp)                        # (2, 1, 3Hp)
    bhh_p = _pad_gate_vec(params["bhh"], H, Hp)
    w6 = jnp.concatenate([wihT_p[0], wihT_p[1]], axis=-1)              # (Hp, 6Hp)
    b6 = jnp.concatenate([bih_p[0], bih_p[1]], axis=-1)                # (1, 6Hp)

    # -- hoisted input projection: tiled-M matmul, both directions fused --
    rows = _proj_rows_per_tile(Tp, Bp)
    gi_f, gi_b = _input_projection(x_flat, w6, b6, rows)               # bf16
    gi_f = gi_f.reshape(Tp, Bp, 3 * Hp)                                # free reshape
    gi_b = gi_b.reshape(Tp, Bp, 3 * Hp)

    # -- per-batch valid length (mask is built in-kernel from t < len) --
    lens_p = jnp.zeros((Bp, 1), jnp.int32).at[:B, 0].set(
        input_lengths.astype(jnp.int32))

    # -- sequential recurrence: both directions, reversed-chunk index maps --
    out_f, out_b, hN = _gru_recurrence(gi_f, gi_b, whhT_p, bhh_p, lens_p,
                                       time_chunk)

    outputs = out_f[:T, :B, :H] + out_b[:T, :B, :H]   # outputs[..:H] + outputs[..H:]
    hidden = hN[:, :B, :H]                            # (2, B, H)
    return outputs, hidden


# --------------------------- pure-JAX reference -------------------------------
def _ref_direction(x, mask, wihT, whhT, bih, bhh, reverse):
    T, B, H = x.shape
    h = jnp.zeros((B, H), jnp.float32)
    out = jnp.zeros((T, B, H), jnp.float32)
    order = range(T - 1, -1, -1) if reverse else range(T)
    for t in order:
        xt, m = x[t], mask[t]
        gi = xt @ wihT + bih
        gh = h @ whhT + bhh
        r = jax.nn.sigmoid(gi[:, :H] + gh[:, :H])
        z = jax.nn.sigmoid(gi[:, H:2 * H] + gh[:, H:2 * H])
        n = jnp.tanh(gi[:, 2 * H:] + r * gh[:, 2 * H:])
        hc = (1.0 - z) * n + z * h
        h = m * hc + (1.0 - m) * h
        out = out.at[t].set(m * hc)
    return out, h


def encoder_rnn_reference(params, input_seq, input_lengths):
    T, B = input_seq.shape
    x = params["emb"][input_seq]
    mask = (jnp.arange(T)[:, None] < input_lengths[None, :]).astype(jnp.float32)[:, :, None]
    of, hf = _ref_direction(x, mask, params["wihT"][0], params["whhT"][0],
                            params["bih"][0], params["bhh"][0], False)
    ob, hb = _ref_direction(x, mask, params["wihT"][1], params["whhT"][1],
                            params["bih"][1], params["bhh"][1], True)
    return of + ob, jnp.stack([hf, hb], axis=0)


# ---------------------------------- main --------------------------------------
if __name__ == "__main__":
    T, B, H = 8, 4, 32          # seq_len, batch, hidden_size (small demo sizes)
    NUM_WORDS = 20              # Voc.num_words stand-in

    key = jax.random.PRNGKey(0)
    pkey, skey = jax.random.split(key)
    params = init_encoder_params(pkey, NUM_WORDS, H)

    input_seq = jax.random.randint(skey, (T, B), 0, NUM_WORDS, dtype=jnp.int32)
    # pack_padded_sequence requires descending lengths; PAD_token = 0
    input_lengths = jnp.array([8, 6, 5, 3], dtype=jnp.int32)
    pad_mask = jnp.arange(T)[:, None] < input_lengths[None, :]
    input_seq = jnp.where(pad_mask, input_seq, 0)

    # time_chunk=4 here so the demo exercises multiple chunks (and the reversed
    # backward-direction chunk indexing); default of 16 targets real sizes.
    outputs, hidden = encoder_rnn_forward(params, input_seq, input_lengths,
                                          time_chunk=4)
    jax.block_until_ready((outputs, hidden))

    ref_out, ref_hid = encoder_rnn_reference(params, input_seq, input_lengths)
    assert outputs.shape == (T, B, H) and hidden.shape == (2, B, H)
    # bf16 MXU operands + bf16 gi storage (f32 accumulation/gate math) vs a
    # pure-f32 reference -> loosened atol
    assert jnp.allclose(outputs, ref_out, atol=ATOL), "outputs mismatch vs reference"
    assert jnp.allclose(hidden, ref_hid, atol=ATOL), "hidden mismatch vs reference"

    print("KERNEL_OK")
</pallas_src>

<mosaic_0001>
module attributes {stable_mosaic.version = 11 : i64} {
  func.func @input_proj_kernel(%arg0: i32, %arg1: memref<128x128xbf16, #tpu.memory_space<vmem>>, %arg2: memref<128x768xbf16, #tpu.memory_space<vmem>>, %arg3: memref<1x768xf32, #tpu.memory_space<vmem>>, %arg4: memref<128x384xbf16, #tpu.memory_space<vmem>>, %arg5: memref<128x384xbf16, #tpu.memory_space<vmem>>) attributes {dimension_semantics = [#tpu.dimension_semantics<parallel>], iteration_bounds = array<i64: 1>, scalar_prefetch = 0 : i64, scratch_operands = 0 : i64, tpu.core_type = #tpu.core_type<tc>, window_params = [{transform_indices = @transform_0, window_bounds = array<i64: 128, 128>}, {pipeline_mode = #tpu.pipeline_mode<synchronous>, transform_indices = @transform_1, window_bounds = array<i64: 128, 768>}, {pipeline_mode = #tpu.pipeline_mode<synchronous>, transform_indices = @transform_2, window_bounds = array<i64: 1, 768>}, {transform_indices = @transform_3, window_bounds = array<i64: 128, 384>}, {transform_indices = @transform_4, window_bounds = array<i64: 128, 384>}]} {
    %c0 = arith.constant 0 : index
    %c0_0 = arith.constant 0 : index
    %0 = vector.load %arg1[%c0, %c0_0] : memref<128x128xbf16, #tpu.memory_space<vmem>>, vector<128x128xbf16>
    %c0_1 = arith.constant 0 : index
    %c0_2 = arith.constant 0 : index
    %1 = vector.load %arg2[%c0_1, %c0_2] : memref<128x768xbf16, #tpu.memory_space<vmem>>, vector<128x768xbf16>
    %cst = arith.constant dense<0.000000e+00> : vector<128x768xf32>
    %2 = tpu.matmul %0, %1, %cst {dimension_numbers = #tpu.dot_dimension_numbers<[1], [0], [0], [1], [0, 0, 1, 1], [], []>} : vector<128x128xbf16>, vector<128x768xbf16>, vector<128x768xf32> -> vector<128x768xf32>
    %c0_3 = arith.constant 0 : index
    %c0_4 = arith.constant 0 : index
    %3 = vector.load %arg3[%c0_3, %c0_4] : memref<1x768xf32, #tpu.memory_space<vmem>>, vector<1x768xf32>
    %4 = vector.broadcast %3 : vector<1x768xf32> to vector<128x768xf32>
    %5 = arith.addf %2, %4 : vector<128x768xf32>
    %6 = vector.extract_strided_slice %5 {offsets = [0, 0], sizes = [128, 384], strides = [1, 1]} : vector<128x768xf32> to vector<128x384xf32>
    %7 = arith.truncf %6 : vector<128x384xf32> to vector<128x384xbf16>
    %c0_5 = arith.constant 0 : index
    %c0_6 = arith.constant 0 : index
    %8 = vector.load %arg4[%c0_5, %c0_6] : memref<128x384xbf16, #tpu.memory_space<vmem>>, vector<128x384xbf16>
    tpu.vector_store %arg4[%c0_5, %c0_6], %7 {strides = array<i32>} : memref<128x384xbf16, #tpu.memory_space<vmem>>, vector<128x384xbf16>,
    %9 = vector.extract_strided_slice %5 {offsets = [0, 384], sizes = [128, 384], strides = [1, 1]} : vector<128x768xf32> to vector<128x384xf32>
    %10 = arith.truncf %9 : vector<128x384xf32> to vector<128x384xbf16>
    %c0_7 = arith.constant 0 : index
    %c0_8 = arith.constant 0 : index
    %11 = vector.load %arg5[%c0_7, %c0_8] : memref<128x384xbf16, #tpu.memory_space<vmem>>, vector<128x384xbf16>
    tpu.vector_store %arg5[%c0_7, %c0_8], %10 {strides = array<i32>} : memref<128x384xbf16, #tpu.memory_space<vmem>>, vector<128x384xbf16>,
    return
  }
  func.func @transform_0(%arg0: i32) -> (i32, i32) {
    %c0_i32 = arith.constant 0 : i32
    %c0_i32_0 = arith.constant 0 : i32
    return %arg0, %c0_i32 : i32, i32
  }
  func.func @transform_1(%arg0: i32) -> (i32, i32) {
    %c0_i32 = arith.constant 0 : i32
    %c0_i32_0 = arith.constant 0 : i32
    %c0_i32_1 = arith.constant 0 : i32
    return %c0_i32, %c0_i32_0 : i32, i32
  }
  func.func @transform_2(%arg0: i32) -> (i32, i32) {
    %c0_i32 = arith.constant 0 : i32
    %c0_i32_0 = arith.constant 0 : i32
    %c0_i32_1 = arith.constant 0 : i32
    return %c0_i32, %c0_i32_0 : i32, i32
  }
  func.func @transform_3(%arg0: i32) -> (i32, i32) {
    %c0_i32 = arith.constant 0 : i32
    %c0_i32_0 = arith.constant 0 : i32
    return %arg0, %c0_i32 : i32, i32
  }
  func.func @transform_4(%arg0: i32) -> (i32, i32) {
    %c0_i32 = arith.constant 0 : i32
    %c0_i32_0 = arith.constant 0 : i32
    return %arg0, %c0_i32 : i32, i32
  }
}

module attributes {stable_mosaic.version = 11 : i64} {
  func.func @gru_seq_kernel(%arg0: i32, %arg1: memref<4x16x384xbf16, #tpu.memory_space<vmem>>, %arg2: memref<4x16x384xbf16, #tpu.memory_space<vmem>>, %arg3: memref<2x128x384xbf16, #tpu.memory_space<vmem>>, %arg4: memref<2x1x384xf32, #tpu.memory_space<vmem>>, %arg5: memref<16x1xi32, #tpu.memory_space<vmem>>, %arg6: memref<4x16x128xf32, #tpu.memory_space<vmem>>, %arg7: memref<4x16x128xf32, #tpu.memory_space<vmem>>, %arg8: memref<2x16x128xf32, #tpu.memory_space<vmem>>, %arg9: memref<2x16x128xf32, #tpu.memory_space<vmem>>) attributes {dimension_semantics = [#tpu.dimension_semantics<arbitrary>], iteration_bounds = array<i64: 2>, scalar_prefetch = 0 : i64, scratch_operands = 1 : i64, tpu.core_type = #tpu.core_type<tc>, window_params = [{transform_indices = @transform_0, window_bounds = array<i64: 4, 16, 384>}, {transform_indices = @transform_1, window_bounds = array<i64: 4, 16, 384>}, {pipeline_mode = #tpu.pipeline_mode<synchronous>, transform_indices = @transform_2, window_bounds = array<i64: 2, 128, 384>}, {pipeline_mode = #tpu.pipeline_mode<synchronous>, transform_indices = @transform_3, window_bounds = array<i64: 2, 1, 384>}, {pipeline_mode = #tpu.pipeline_mode<synchronous>, transform_indices = @transform_4, window_bounds = array<i64: 16, 1>}, {transform_indices = @transform_5, window_bounds = array<i64: 4, 16, 128>}, {transform_indices = @transform_6, window_bounds = array<i64: 4, 16, 128>}, {pipeline_mode = #tpu.pipeline_mode<synchronous>, transform_indices = @transform_7, window_bounds = array<i64: 2, 16, 128>}]} {
    %c0_i32 = arith.constant 0 : i32
    %0 = arith.cmpi eq, %arg0, %c0_i32 : i32
    %1 = arith.extui %0 : i1 to i32
    %c0_i32_0 = arith.constant 0 : i32
    %2 = arith.cmpi ne, %1, %c0_i32_0 : i32
    scf.if %2 {
      %cst_151 = arith.constant 0.000000e+00 : f32
      %455 = vector.broadcast %cst_151 : f32 to vector<2x16x128xf32>
      %c0_152 = arith.constant 0 : index
      %c0_153 = arith.constant 0 : index
      %c0_154 = arith.constant 0 : index
      %456 = vector.load %arg9[%c0_152, %c0_153, %c0_154] : memref<2x16x128xf32, #tpu.memory_space<vmem>>, vector<2x16x128xf32>
      tpu.vector_store %arg9[%c0_152, %c0_153, %c0_154], %455 {strides = array<i32>} : memref<2x16x128xf32, #tpu.memory_space<vmem>>, vector<2x16x128xf32>,
    } else {
    }
    %c0 = arith.constant 0 : index
    %c0_1 = arith.constant 0 : index
    %c0_2 = arith.constant 0 : index
    %3 = vector.load %arg3[%c0, %c0_1, %c0_2] : memref<2x128x384xbf16, #tpu.memory_space<vmem>>, vector<1x128x384xbf16>
    %4 = vector.shape_cast %3 : vector<1x128x384xbf16> to vector<128x384xbf16>
    %c1 = arith.constant 1 : index
    %c0_3 = arith.constant 0 : index
    %c0_4 = arith.constant 0 : index
    %5 = vector.load %arg3[%c1, %c0_3, %c0_4] : memref<2x128x384xbf16, #tpu.memory_space<vmem>>, vector<1x128x384xbf16>
    %6 = vector.shape_cast %5 : vector<1x128x384xbf16> to vector<128x384xbf16>
    %c0_5 = arith.constant 0 : index
    %c0_6 = arith.constant 0 : index
    %c0_7 = arith.constant 0 : index
    %7 = vector.load %arg4[%c0_5, %c0_6, %c0_7] : memref<2x1x384xf32, #tpu.memory_space<vmem>>, vector<1x1x384xf32>
    %8 = vector.shape_cast %7 : vector<1x1x384xf32> to vector<1x384xf32>
    %c1_8 = arith.constant 1 : index
    %c0_9 = arith.constant 0 : index
    %c0_10 = arith.constant 0 : index
    %9 = vector.load %arg4[%c1_8, %c0_9, %c0_10] : memref<2x1x384xf32, #tpu.memory_space<vmem>>, vector<1x1x384xf32>
    %10 = vector.shape_cast %9 : vector<1x1x384xf32> to vector<1x384xf32>
    %c0_11 = arith.constant 0 : index
    %c0_12 = arith.constant 0 : index
    %11 = vector.load %arg5[%c0_11, %c0_12] : memref<16x1xi32, #tpu.memory_space<vmem>>, vector<16x1xi32>
    %c0_i32_13 = arith.constant 0 : i32
    %c4_i32 = arith.constant 4 : i32
    %12 = arith.muli %arg0, %c4_i32 : i32
    %13 = arith.addi %12, %c0_i32_13 : i32
    %c0_14 = arith.constant 0 : index
    %c0_15 = arith.constant 0 : index
    %c0_16 = arith.constant 0 : index
    %14 = vector.load %arg9[%c0_14, %c0_15, %c0_16] : memref<2x16x128xf32, #tpu.memory_space<vmem>>, vector<1x16x128xf32>
    %15 = vector.shape_cast %14 : vector<1x16x128xf32> to vector<16x128xf32>
    %16 = arith.index_cast %c0_i32_13 : i32 to index
    %c0_17 = arith.constant 0 : index
    %c0_18 = arith.constant 0 : index
    %17 = vector.load %arg1[%16, %c0_17, %c0_18] : memref<4x16x384xbf16, #tpu.memory_space<vmem>>, vector<1x16x384xbf16>
    %18 = vector.shape_cast %17 : vector<1x16x384xbf16> to vector<16x384xbf16>
    %19 = arith.truncf %15 : vector<16x128xf32> to vector<16x128xbf16>
    %cst = arith.constant dense<0.000000e+00> : vector<16x384xf32>
    %20 = tpu.matmul %19, %4, %cst {dimension_numbers = #tpu.dot_dimension_numbers<[1], [0], [0], [1], [0, 0, 1, 1], [], []>} : vector<16x128xbf16>, vector<128x384xbf16>, vector<16x384xf32> -> vector<16x384xf32>
    %21 = vector.broadcast %8 : vector<1x384xf32> to vector<16x384xf32>
    %22 = arith.addf %20, %21 : vector<16x384xf32>
    %23 = arith.extf %18 : vector<16x384xbf16> to vector<16x384xf32>
    %24 = vector.extract_strided_slice %23 {offsets = [0, 0], sizes = [16, 128], strides = [1, 1]} : vector<16x384xf32> to vector<16x128xf32>
    %25 = vector.extract_strided_slice %22 {offsets = [0, 0], sizes = [16, 128], strides = [1, 1]} : vector<16x384xf32> to vector<16x128xf32>
    %26 = arith.addf %24, %25 : vector<16x128xf32>
    %27 = arith.negf %26 : vector<16x128xf32>
    %28 = math.exp %27 : vector<16x128xf32>
    %cst_19 = arith.constant 1.000000e+00 : f32
    %29 = vector.broadcast %cst_19 : f32 to vector<16x128xf32>
    %30 = arith.addf %29, %28 : vector<16x128xf32>
    %31 = arith.divf %29, %30 : vector<16x128xf32>
    %32 = vector.extract_strided_slice %23 {offsets = [0, 128], sizes = [16, 128], strides = [1, 1]} : vector<16x384xf32> to vector<16x128xf32>
    %33 = vector.extract_strided_slice %22 {offsets = [0, 128], sizes = [16, 128], strides = [1, 1]} : vector<16x384xf32> to vector<16x128xf32>
    %34 = arith.addf %32, %33 : vector<16x128xf32>
    %35 = arith.negf %34 : vector<16x128xf32>
    %36 = math.exp %35 : vector<16x128xf32>
    %cst_20 = arith.constant 1.000000e+00 : f32
    %37 = vector.broadcast %cst_20 : f32 to vector<16x128xf32>
    %38 = arith.addf %37, %36 : vector<16x128xf32>
    %39 = arith.divf %37, %38 : vector<16x128xf32>
    %40 = vector.extract_strided_slice %23 {offsets = [0, 256], sizes = [16, 128], strides = [1, 1]} : vector<16x384xf32> to vector<16x128xf32>
    %41 = vector.extract_strided_slice %22 {offsets = [0, 256], sizes = [16, 128], strides = [1, 1]} : vector<16x384xf32> to vector<16x128xf32>
    %42 = arith.mulf %31, %41 : vector<16x128xf32>
    %43 = arith.addf %40, %42 : vector<16x128xf32>
    %44 = math.tanh %43 : vector<16x128xf32>
    %cst_21 = arith.constant 1.000000e+00 : f32
    %45 = vector.broadcast %cst_21 : f32 to vector<16x128xf32>
    %46 = arith.subf %45, %39 : vector<16x128xf32>
    %47 = arith.mulf %46, %44 : vector<16x128xf32>
    %48 = arith.mulf %39, %15 : vector<16x128xf32>
    %49 = arith.addf %47, %48 : vector<16x128xf32>
    %50 = vector.broadcast %13 : i32 to vector<16x1xi32>
    %51 = arith.cmpi slt, %50, %11 : vector<16x1xi32>
    %52 = vector.shape_cast %51 : vector<16x1xi1> to vector<16x1xi1>
    %53 = vector.broadcast %52 : vector<16x1xi1> to vector<16x128xi1>
    %54 = arith.select %53, %49, %15 : vector<16x128xi1>, vector<16x128xf32>
    %c0_22 = arith.constant 0 : index
    %c0_23 = arith.constant 0 : index
    %c0_24 = arith.constant 0 : index
    %55 = vector.load %arg9[%c0_22, %c0_23, %c0_24] : memref<2x16x128xf32, #tpu.memory_space<vmem>>, vector<1x16x128xf32>
    %56 = vector.shape_cast %55 : vector<1x16x128xf32> to vector<16x128xf32>
    %57 = vector.shape_cast %54 : vector<16x128xf32> to vector<1x16x128xf32>
    tpu.vector_store %arg9[%c0_22, %c0_23, %c0_24], %57 {strides = array<i32>} : memref<2x16x128xf32, #tpu.memory_space<vmem>>, vector<1x16x128xf32>,
    %cst_25 = arith.constant 0.000000e+00 : f32
    %58 = vector.shape_cast %51 : vector<16x1xi1> to vector<16x1xi1>
    %59 = vector.broadcast %58 : vector<16x1xi1> to vector<16x128xi1>
    %60 = vector.broadcast %cst_25 : f32 to vector<16x128xf32>
    %61 = arith.select %59, %49, %60 : vector<16x128xi1>, vector<16x128xf32>
    %62 = arith.index_cast %c0_i32_13 : i32 to index
    %c0_26 = arith.constant 0 : index
    %c0_27 = arith.constant 0 : index
    %63 = vector.load %arg6[%62, %c0_26, %c0_27] : memref<4x16x128xf32, #tpu.memory_space<vmem>>, vector<1x16x128xf32>
    %64 = vector.shape_cast %63 : vector<1x16x128xf32> to vector<16x128xf32>
    %65 = vector.shape_cast %61 : vector<16x128xf32> to vector<1x16x128xf32>
    tpu.vector_store %arg6[%62, %c0_26, %c0_27], %65 {strides = array<i32>} : memref<4x16x128xf32, #tpu.memory_space<vmem>>, vector<1x16x128xf32>,
    %c3_i32 = arith.constant 3 : i32
    %66 = arith.subi %c3_i32, %c0_i32_13 : i32
    %c1_i32 = arith.constant 1 : i32
    %67 = arith.subi %c1_i32, %arg0 : i32
    %c4_i32_28 = arith.constant 4 : i32
    %68 = arith.muli %67, %c4_i32_28 : i32
    %69 = arith.addi %68, %66 : i32
    %c1_29 = arith.constant 1 : index
    %c0_30 = arith.constant 0 : index
    %c0_31 = arith.constant 0 : index
    %70 = vector.load %arg9[%c1_29, %c0_30, %c0_31] : memref<2x16x128xf32, #tpu.memory_space<vmem>>, vector<1x16x128xf32>
    %71 = vector.shape_cast %70 : vector<1x16x128xf32> to vector<16x128xf32>
    %72 = arith.index_cast %66 : i32 to index
    %c0_32 = arith.constant 0 : index
    %c0_33 = arith.constant 0 : index
    %73 = vector.load %arg2[%72, %c0_32, %c0_33] : memref<4x16x384xbf16, #tpu.memory_space<vmem>>, vector<1x16x384xbf16>
    %74 = vector.shape_cast %73 : vector<1x16x384xbf16> to vector<16x384xbf16>
    %75 = arith.truncf %71 : vector<16x128xf32> to vector<16x128xbf16>
    %cst_34 = arith.constant dense<0.000000e+00> : vector<16x384xf32>
    %76 = tpu.matmul %75, %6, %cst_34 {dimension_numbers = #tpu.dot_dimension_numbers<[1], [0], [0], [1], [0, 0, 1, 1], [], []>} : vector<16x128xbf16>, vector<128x384xbf16>, vector<16x384xf32> -> vector<16x384xf32>
    %77 = vector.broadcast %10 : vector<1x384xf32> to vector<16x384xf32>
    %78 = arith.addf %76, %77 : vector<16x384xf32>
    %79 = arith.extf %74 : vector<16x384xbf16> to vector<16x384xf32>
    %80 = vector.extract_strided_slice %79 {offsets = [0, 0], sizes = [16, 128], strides = [1, 1]} : vector<16x384xf32> to vector<16x128xf32>
    %81 = vector.extract_strided_slice %78 {offsets = [0, 0], sizes = [16, 128], strides = [1, 1]} : vector<16x384xf32> to vector<16x128xf32>
    %82 = arith.addf %80, %81 : vector<16x128xf32>
    %83 = arith.negf %82 : vector<16x128xf32>
    %84 = math.exp %83 : vector<16x128xf32>
    %cst_35 = arith.constant 1.000000e+00 : f32
    %85 = vector.broadcast %cst_35 : f32 to vector<16x128xf32>
    %86 = arith.addf %85, %84 : vector<16x128xf32>
    %87 = arith.divf %85, %86 : vector<16x128xf32>
    %88 = vector.extract_strided_slice %79 {offsets = [0, 128], sizes = [16, 128], strides = [1, 1]} : vector<16x384xf32> to vector<16x128xf32>
    %89 = vector.extract_strided_slice %78 {offsets = [0, 128], sizes = [16, 128], strides = [1, 1]} : vector<16x384xf32> to vector<16x128xf32>
    %90 = arith.addf %88, %89 : vector<16x128xf32>
    %91 = arith.negf %90 : vector<16x128xf32>
    %92 = math.exp %91 : vector<16x128xf32>
    %cst_36 = arith.constant 1.000000e+00 : f32
    %93 = vector.broadcast %cst_36 : f32 to vector<16x128xf32>
    %94 = arith.addf %93, %92 : vector<16x128xf32>
    %95 = arith.divf %93, %94 : vector<16x128xf32>
    %96 = vector.extract_strided_slice %79 {offsets = [0, 256], sizes = [16, 128], strides = [1, 1]} : vector<16x384xf32> to vector<16x128xf32>
    %97 = vector.extract_strided_slice %78 {offsets = [0, 256], sizes = [16, 128], strides = [1, 1]} : vector<16x384xf32> to vector<16x128xf32>
    %98 = arith.mulf %87, %97 : vector<16x128xf32>
    %99 = arith.addf %96, %98 : vector<16x128xf32>
    %100 = math.tanh %99 : vector<16x128xf32>
    %cst_37 = arith.constant 1.000000e+00 : f32
    %101 = vector.broadcast %cst_37 : f32 to vector<16x128xf32>
    %102 = arith.subf %101, %95 : vector<16x128xf32>
    %103 = arith.mulf %102, %100 : vector<16x128xf32>
    %104 = arith.mulf %95, %71 : vector<16x128xf32>
    %105 = arith.addf %103, %104 : vector<16x128xf32>
    %106 = vector.broadcast %69 : i32 to vector<16x1xi32>
    %107 = arith.cmpi slt, %106, %11 : vector<16x1xi32>
    %108 = vector.shape_cast %107 : vector<16x1xi1> to vector<16x1xi1>
    %109 = vector.broadcast %108 : vector<16x1xi1> to vector<16x128xi1>
    %110 = arith.select %109, %105, %71 : vector<16x128xi1>, vector<16x128xf32>
    %c1_38 = arith.constant 1 : index
    %c0_39 = arith.constant 0 : index
    %c0_40 = arith.constant 0 : index
    %111 = vector.load %arg9[%c1_38, %c0_39, %c0_40] : memref<2x16x128xf32, #tpu.memory_space<vmem>>, vector<1x16x128xf32>
    %112 = vector.shape_cast %111 : vector<1x16x128xf32> to vector<16x128xf32>
    %113 = vector.shape_cast %110 : vector<16x128xf32> to vector<1x16x128xf32>
    tpu.vector_store %arg9[%c1_38, %c0_39, %c0_40], %113 {strides = array<i32>} : memref<2x16x128xf32, #tpu.memory_space<vmem>>, vector<1x16x128xf32>,
    %cst_41 = arith.constant 0.000000e+00 : f32
    %114 = vector.shape_cast %107 : vector<16x1xi1> to vector<16x1xi1>
    %115 = vector.broadcast %114 : vector<16x1xi1> to vector<16x128xi1>
    %116 = vector.broadcast %cst_41 : f32 to vector<16x128xf32>
    %117 = arith.select %115, %105, %116 : vector<16x128xi1>, vector<16x128xf32>
    %118 = arith.index_cast %66 : i32 to index
    %c0_42 = arith.constant 0 : index
    %c0_43 = arith.constant 0 : index
    %119 = vector.load %arg7[%118, %c0_42, %c0_43] : memref<4x16x128xf32, #tpu.memory_space<vmem>>, vector<1x16x128xf32>
    %120 = vector.shape_cast %119 : vector<1x16x128xf32> to vector<16x128xf32>
    %121 = vector.shape_cast %117 : vector<16x128xf32> to vector<1x16x128xf32>
    tpu.vector_store %arg7[%118, %c0_42, %c0_43], %121 {strides = array<i32>} : memref<4x16x128xf32, #tpu.memory_space<vmem>>, vector<1x16x128xf32>,
    %c1_i32_44 = arith.constant 1 : i32
    %c4_i32_45 = arith.constant 4 : i32
    %122 = arith.muli %arg0, %c4_i32_45 : i32
    %123 = arith.addi %122, %c1_i32_44 : i32
    %c0_46 = arith.constant 0 : index
    %c0_47 = arith.constant 0 : index
    %c0_48 = arith.constant 0 : index
    %124 = vector.load %arg9[%c0_46, %c0_47, %c0_48] : memref<2x16x128xf32, #tpu.memory_space<vmem>>, vector<1x16x128xf32>
    %125 = vector.shape_cast %124 : vector<1x16x128xf32> to vector<16x128xf32>
    %126 = arith.index_cast %c1_i32_44 : i32 to index
    %c0_49 = arith.constant 0 : index
    %c0_50 = arith.constant 0 : index
    %127 = vector.load %arg1[%126, %c0_49, %c0_50] : memref<4x16x384xbf16, #tpu.memory_space<vmem>>, vector<1x16x384xbf16>
    %128 = vector.shape_cast %127 : vector<1x16x384xbf16> to vector<16x384xbf16>
    %129 = arith.truncf %125 : vector<16x128xf32> to vector<16x128xbf16>
    %cst_51 = arith.constant dense<0.000000e+00> : vector<16x384xf32>
    %130 = tpu.matmul %129, %4, %cst_51 {dimension_numbers = #tpu.dot_dimension_numbers<[1], [0], [0], [1], [0, 0, 1, 1], [], []>} : vector<16x128xbf16>, vector<128x384xbf16>, vector<16x384xf32> -> vector<16x384xf32>
    %131 = vector.broadcast %8 : vector<1x384xf32> to vector<16x384xf32>
    %132 = arith.addf %130, %131 : vector<16x384xf32>
    %133 = arith.extf %128 : vector<16x384xbf16> to vector<16x384xf32>
    %134 = vector.extract_strided_slice %133 {offsets = [0, 0], sizes = [16, 128], strides = [1, 1]} : vector<16x384xf32> to vector<16x128xf32>
    %135 = vector.extract_strided_slice %132 {offsets = [0, 0], sizes = [16, 128], strides = [1, 1]} : vector<16x384xf32> to vector<16x128xf32>
    %136 = arith.addf %134, %135 : vector<16x128xf32>
    %137 = arith.negf %136 : vector<16x128xf32>
    %138 = math.exp %137 : vector<16x128xf32>
    %cst_52 = arith.constant 1.000000e+00 : f32
    %139 = vector.broadcast %cst_52 : f32 to vector<16x128xf32>
    %140 = arith.addf %139, %138 : vector<16x128xf32>
    %141 = arith.divf %139, %140 : vector<16x128xf32>
    %142 = vector.extract_strided_slice %133 {offsets = [0, 128], sizes = [16, 128], strides = [1, 1]} : vector<16x384xf32> to vector<16x128xf32>
    %143 = vector.extract_strided_slice %132 {offsets = [0, 128], sizes = [16, 128], strides = [1, 1]} : vector<16x384xf32> to vector<16x128xf32>
    %144 = arith.addf %142, %143 : vector<16x128xf32>
    %145 = arith.negf %144 : vector<16x128xf32>
    %146 = math.exp %145 : vector<16x128xf32>
    %cst_53 = arith.constant 1.000000e+00 : f32
    %147 = vector.broadcast %cst_53 : f32 to vector<16x128xf32>
    %148 = arith.addf %147, %146 : vector<16x128xf32>
    %149 = arith.divf %147, %148 : vector<16x128xf32>
    %150 = vector.extract_strided_slice %133 {offsets = [0, 256], sizes = [16, 128], strides = [1, 1]} : vector<16x384xf32> to vector<16x128xf32>
    %151 = vector.extract_strided_slice %132 {offsets = [0, 256], sizes = [16, 128], strides = [1, 1]} : vector<16x384xf32> to vector<16x128xf32>
    %152 = arith.mulf %141, %151 : vector<16x128xf32>
    %153 = arith.addf %150, %152 : vector<16x128xf32>
    %154 = math.tanh %153 : vector<16x128xf32>
    %cst_54 = arith.constant 1.000000e+00 : f32
    %155 = vector.broadcast %cst_54 : f32 to vector<16x128xf32>
    %156 = arith.subf %155, %149 : vector<16x128xf32>
    %157 = arith.mulf %156, %154 : vector<16x128xf32>
    %158 = arith.mulf %149, %125 : vector<16x128xf32>
    %159 = arith.addf %157, %158 : vector<16x128xf32>
    %160 = vector.broadcast %123 : i32 to vector<16x1xi32>
    %161 = arith.cmpi slt, %160, %11 : vector<16x1xi32>
    %162 = vector.shape_cast %161 : vector<16x1xi1> to vector<16x1xi1>
    %163 = vector.broadcast %162 : vector<16x1xi1> to vector<16x128xi1>
    %164 = arith.select %163, %159, %125 : vector<16x128xi1>, vector<16x128xf32>
    %c0_55 = arith.constant 0 : index
    %c0_56 = arith.constant 0 : index
    %c0_57 = arith.constant 0 : index
    %165 = vector.load %arg9[%c0_55, %c0_56, %c0_57] : memref<2x16x128xf32, #tpu.memory_space<vmem>>, vector<1x16x128xf32>
    %166 = vector.shape_cast %165 : vector<1x16x128xf32> to vector<16x128xf32>
    %167 = vector.shape_cast %164 : vector<16x128xf32> to vector<1x16x128xf32>
    tpu.vector_store %arg9[%c0_55, %c0_56, %c0_57], %167 {strides = array<i32>} : memref<2x16x128xf32, #tpu.memory_space<vmem>>, vector<1x16x128xf32>,
    %cst_58 = arith.constant 0.000000e+00 : f32
    %168 = vector.shape_cast %161 : vector<16x1xi1> to vector<16x1xi1>
    %169 = vector.broadcast %168 : vector<16x1xi1> to vector<16x128xi1>
    %170 = vector.broadcast %cst_58 : f32 to vector<16x128xf32>
    %171 = arith.select %169, %159, %170 : vector<16x128xi1>, vector<16x128xf32>
    %172 = arith.index_cast %c1_i32_44 : i32 to index
    %c0_59 = arith.constant 0 : index
    %c0_60 = arith.constant 0 : index
    %173 = vector.load %arg6[%172, %c0_59, %c0_60] : memref<4x16x128xf32, #tpu.memory_space<vmem>>, vector<1x16x128xf32>
    %174 = vector.shape_cast %173 : vector<1x16x128xf32> to vector<16x128xf32>
    %175 = vector.shape_cast %171 : vector<16x128xf32> to vector<1x16x128xf32>
    tpu.vector_store %arg6[%172, %c0_59, %c0_60], %175 {strides = array<i32>} : memref<4x16x128xf32, #tpu.memory_space<vmem>>, vector<1x16x128xf32>,
    %c3_i32_61 = arith.constant 3 : i32
    %176 = arith.subi %c3_i32_61, %c1_i32_44 : i32
    %c1_i32_62 = arith.constant 1 : i32
    %177 = arith.subi %c1_i32_62, %arg0 : i32
    %c4_i32_63 = arith.constant 4 : i32
    %178 = arith.muli %177, %c4_i32_63 : i32
    %179 = arith.addi %178, %176 : i32
    %c1_64 = arith.constant 1 : index
    %c0_65 = arith.constant 0 : index
    %c0_66 = arith.constant 0 : index
    %180 = vector.load %arg9[%c1_64, %c0_65, %c0_66] : memref<2x16x128xf32, #tpu.memory_space<vmem>>, vector<1x16x128xf32>
    %181 = vector.shape_cast %180 : vector<1x16x128xf32> to vector<16x128xf32>
    %182 = arith.index_cast %176 : i32 to index
    %c0_67 = arith.constant 0 : index
    %c0_68 = arith.constant 0 : index
    %183 = vector.load %arg2[%182, %c0_67, %c0_68] : memref<4x16x384xbf16, #tpu.memory_space<vmem>>, vector<1x16x384xbf16>
    %184 = vector.shape_cast %183 : vector<1x16x384xbf16> to vector<16x384xbf16>
    %185 = arith.truncf %181 : vector<16x128xf32> to vector<16x128xbf16>
    %cst_69 = arith.constant dense<0.000000e+00> : vector<16x384xf32>
    %186 = tpu.matmul %185, %6, %cst_69 {dimension_numbers = #tpu.dot_dimension_numbers<[1], [0], [0], [1], [0, 0, 1, 1], [], []>} : vector<16x128xbf16>, vector<128x384xbf16>, vector<16x384xf32> -> vector<16x384xf32>
    %187 = vector.broadcast %10 : vector<1x384xf32> to vector<16x384xf32>
    %188 = arith.addf %186, %187 : vector<16x384xf32>
    %189 = arith.extf %184 : vector<16x384xbf16> to vector<16x384xf32>
    %190 = vector.extract_strided_slice %189 {offsets = [0, 0], sizes = [16, 128], strides = [1, 1]} : vector<16x384xf32> to vector<16x128xf32>
    %191 = vector.extract_strided_slice %188 {offsets = [0, 0], sizes = [16, 128], strides = [1, 1]} : vector<16x384xf32> to vector<16x128xf32>
    %192 = arith.addf %190, %191 : vector<16x128xf32>
    %193 = arith.negf %192 : vector<16x128xf32>
    %194 = math.exp %193 : vector<16x128xf32>
    %cst_70 = arith.constant 1.000000e+00 : f32
    %195 = vector.broadcast %cst_70 : f32 to vector<16x128xf32>
    %196 = arith.addf %195, %194 : vector<16x128xf32>
    %197 = arith.divf %195, %196 : vector<16x128xf32>
    %198 = vector.extract_strided_slice %189 {offsets = [0, 128], sizes = [16, 128], strides = [1, 1]} : vector<16x384xf32> to vector<16x128xf32>
    %199 = vector.extract_strided_slice %188 {offsets = [0, 128], sizes = [16, 128], strides = [1, 1]} : vector<16x384xf32> to vector<16x128xf32>
    %200 = arith.addf %198, %199 : vector<16x128xf32>
    %201 = arith.negf %200 : vector<16x128xf32>
    %202 = math.exp %201 : vector<16x128xf32>
    %cst_71 = arith.constant 1.000000e+00 : f32
    %203 = vector.broadcast %cst_71 : f32 to vector<16x128xf32>
    %204 = arith.addf %203, %202 : vector<16x128xf32>
    %205 = arith.divf %203, %204 : vector<16x128xf32>
    %206 = vector.extract_strided_slice %189 {offsets = [0, 256], sizes = [16, 128], strides = [1, 1]} : vector<16x384xf32> to vector<16x128xf32>
    %207 = vector.extract_strided_slice %188 {offsets = [0, 256], sizes = [16, 128], strides = [1, 1]} : vector<16x384xf32> to vector<16x128xf32>
    %208 = arith.mulf %197, %207 : vector<16x128xf32>
    %209 = arith.addf %206, %208 : vector<16x128xf32>
    %210 = math.tanh %209 : vector<16x128xf32>
    %cst_72 = arith.constant 1.000000e+00 : f32
    %211 = vector.broadcast %cst_72 : f32 to vector<16x128xf32>
    %212 = arith.subf %211, %205 : vector<16x128xf32>
    %213 = arith.mulf %212, %210 : vector<16x128xf32>
    %214 = arith.mulf %205, %181 : vector<16x128xf32>
    %215 = arith.addf %213, %214 : vector<16x128xf32>
    %216 = vector.broadcast %179 : i32 to vector<16x1xi32>
    %217 = arith.cmpi slt, %216, %11 : vector<16x1xi32>
    %218 = vector.shape_cast %217 : vector<16x1xi1> to vector<16x1xi1>
    %219 = vector.broadcast %218 : vector<16x1xi1> to vector<16x128xi1>
    %220 = arith.select %219, %215, %181 : vector<16x128xi1>, vector<16x128xf32>
    %c1_73 = arith.constant 1 : index
    %c0_74 = arith.constant 0 : index
    %c0_75 = arith.constant 0 : index
    %221 = vector.load %arg9[%c1_73, %c0_74, %c0_75] : memref<2x16x128xf32, #tpu.memory_space<vmem>>, vector<1x16x128xf32>
    %222 = vector.shape_cast %221 : vector<1x16x128xf32> to vector<16x128xf32>
    %223 = vector.shape_cast %220 : vector<16x128xf32> to vector<1x16x128xf32>
    tpu.vector_store %arg9[%c1_73, %c0_74, %c0_75], %223 {strides = array<i32>} : memref<2x16x128xf32, #tpu.memory_space<vmem>>, vector<1x16x128xf32>,
    %cst_76 = arith.constant 0.000000e+00 : f32
    %224 = vector.shape_cast %217 : vector<16x1xi1> to vector<16x1xi1>
    %225 = vector.broadcast %224 : vector<16x1xi1> to vector<16x128xi1>
    %226 = vector.broadcast %cst_76 : f32 to vector<16x128xf32>
    %227 = arith.select %225, %215, %226 : vector<16x128xi1>, vector<16x128xf32>
    %228 = arith.index_cast %176 : i32 to index
    %c0_77 = arith.constant 0 : index
    %c0_78 = arith.constant 0 : index
    %229 = vector.load %arg7[%228, %c0_77, %c0_78] : memref<4x16x128xf32, #tpu.memory_space<vmem>>, vector<1x16x128xf32>
    %230 = vector.shape_cast %229 : vector<1x16x128xf32> to vector<16x128xf32>
    %231 = vector.shape_cast %227 : vector<16x128xf32> to vector<1x16x128xf32>
    tpu.vector_store %arg7[%228, %c0_77, %c0_78], %231 {strides = array<i32>} : memref<4x16x128xf32, #tpu.memory_space<vmem>>, vector<1x16x128xf32>,
    %c2_i32 = arith.constant 2 : i32
    %c4_i32_79 = arith.constant 4 : i32
    %232 = arith.muli %arg0, %c4_i32_79 : i32
    %233 = arith.addi %232, %c2_i32 : i32
    %c0_80 = arith.constant 0 : index
    %c0_81 = arith.constant 0 : index
    %c0_82 = arith.constant 0 : index
    %234 = vector.load %arg9[%c0_80, %c0_81, %c0_82] : memref<2x16x128xf32, #tpu.memory_space<vmem>>, vector<1x16x128xf32>
    %235 = vector.shape_cast %234 : vector<1x16x128xf32> to vector<16x128xf32>
    %236 = arith.index_cast %c2_i32 : i32 to index
    %c0_83 = arith.constant 0 : index
    %c0_84 = arith.constant 0 : index
    %237 = vector.load %arg1[%236, %c0_83, %c0_84] : memref<4x16x384xbf16, #tpu.memory_space<vmem>>, vector<1x16x384xbf16>
    %238 = vector.shape_cast %237 : vector<1x16x384xbf16> to vector<16x384xbf16>
    %239 = arith.truncf %235 : vector<16x128xf32> to vector<16x128xbf16>
    %cst_85 = arith.constant dense<0.000000e+00> : vector<16x384xf32>
    %240 = tpu.matmul %239, %4, %cst_85 {dimension_numbers = #tpu.dot_dimension_numbers<[1], [0], [0], [1], [0, 0, 1, 1], [], []>} : vector<16x128xbf16>, vector<128x384xbf16>, vector<16x384xf32> -> vector<16x384xf32>
    %241 = vector.broadcast %8 : vector<1x384xf32> to vector<16x384xf32>
    %242 = arith.addf %240, %241 : vector<16x384xf32>
    %243 = arith.extf %238 : vector<16x384xbf16> to vector<16x384xf32>
    %244 = vector.extract_strided_slice %243 {offsets = [0, 0], sizes = [16, 128], strides = [1, 1]} : vector<16x384xf32> to vector<16x128xf32>
    %245 = vector.extract_strided_slice %242 {offsets = [0, 0], sizes = [16, 128], strides = [1, 1]} : vector<16x384xf32> to vector<16x128xf32>
    %246 = arith.addf %244, %245 : vector<16x128xf32>
    %247 = arith.negf %246 : vector<16x128xf32>
    %248 = math.exp %247 : vector<16x128xf32>
    %cst_86 = arith.constant 1.000000e+00 : f32
    %249 = vector.broadcast %cst_86 : f32 to vector<16x128xf32>
    %250 = arith.addf %249, %248 : vector<16x128xf32>
    %251 = arith.divf %249, %250 : vector<16x128xf32>
    %252 = vector.extract_strided_slice %243 {offsets = [0, 128], sizes = [16, 128], strides = [1, 1]} : vector<16x384xf32> to vector<16x128xf32>
    %253 = vector.extract_strided_slice %242 {offsets = [0, 128], sizes = [16, 128], strides = [1, 1]} : vector<16x384xf32> to vector<16x128xf32>
    %254 = arith.addf %252, %253 : vector<16x128xf32>
    %255 = arith.negf %254 : vector<16x128xf32>
    %256 = math.exp %255 : vector<16x128xf32>
    %cst_87 = arith.constant 1.000000e+00 : f32
    %257 = vector.broadcast %cst_87 : f32 to vector<16x128xf32>
    %258 = arith.addf %257, %256 : vector<16x128xf32>
    %259 = arith.divf %257, %258 : vector<16x128xf32>
    %260 = vector.extract_strided_slice %243 {offsets = [0, 256], sizes = [16, 128], strides = [1, 1]} : vector<16x384xf32> to vector<16x128xf32>
    %261 = vector.extract_strided_slice %242 {offsets = [0, 256], sizes = [16, 128], strides = [1, 1]} : vector<16x384xf32> to vector<16x128xf32>
    %262 = arith.mulf %251, %261 : vector<16x128xf32>
    %263 = arith.addf %260, %262 : vector<16x128xf32>
    %264 = math.tanh %263 : vector<16x128xf32>
    %cst_88 = arith.constant 1.000000e+00 : f32
    %265 = vector.broadcast %cst_88 : f32 to vector<16x128xf32>
    %266 = arith.subf %265, %259 : vector<16x128xf32>
    %267 = arith.mulf %266, %264 : vector<16x128xf32>
    %268 = arith.mulf %259, %235 : vector<16x128xf32>
    %269 = arith.addf %267, %268 : vector<16x128xf32>
    %270 = vector.broadcast %233 : i32 to vector<16x1xi32>
    %271 = arith.cmpi slt, %270, %11 : vector<16x1xi32>
    %272 = vector.shape_cast %271 : vector<16x1xi1> to vector<16x1xi1>
    %273 = vector.broadcast %272 : vector<16x1xi1> to vector<16x128xi1>
    %274 = arith.select %273, %269, %235 : vector<16x128xi1>, vector<16x128xf32>
    %c0_89 = arith.constant 0 : index
    %c0_90 = arith.constant 0 : index
    %c0_91 = arith.constant 0 : index
    %275 = vector.load %arg9[%c0_89, %c0_90, %c0_91] : memref<2x16x128xf32, #tpu.memory_space<vmem>>, vector<1x16x128xf32>
    %276 = vector.shape_cast %275 : vector<1x16x128xf32> to vector<16x128xf32>
    %277 = vector.shape_cast %274 : vector<16x128xf32> to vector<1x16x128xf32>
    tpu.vector_store %arg9[%c0_89, %c0_90, %c0_91], %277 {strides = array<i32>} : memref<2x16x128xf32, #tpu.memory_space<vmem>>, vector<1x16x128xf32>,
    %cst_92 = arith.constant 0.000000e+00 : f32
    %278 = vector.shape_cast %271 : vector<16x1xi1> to vector<16x1xi1>
    %279 = vector.broadcast %278 : vector<16x1xi1> to vector<16x128xi1>
    %280 = vector.broadcast %cst_92 : f32 to vector<16x128xf32>
    %281 = arith.select %279, %269, %280 : vector<16x128xi1>, vector<16x128xf32>
    %282 = arith.index_cast %c2_i32 : i32 to index
    %c0_93 = arith.constant 0 : index
    %c0_94 = arith.constant 0 : index
    %283 = vector.load %arg6[%282, %c0_93, %c0_94] : memref<4x16x128xf32, #tpu.memory_space<vmem>>, vector<1x16x128xf32>
    %284 = vector.shape_cast %283 : vector<1x16x128xf32> to vector<16x128xf32>
    %285 = vector.shape_cast %281 : vector<16x128xf32> to vector<1x16x128xf32>
    tpu.vector_store %arg6[%282, %c0_93, %c0_94], %285 {strides = array<i32>} : memref<4x16x128xf32, #tpu.memory_space<vmem>>, vector<1x16x128xf32>,
    %c3_i32_95 = arith.constant 3 : i32
    %286 = arith.subi %c3_i32_95, %c2_i32 : i32
    %c1_i32_96 = arith.constant 1 : i32
    %287 = arith.subi %c1_i32_96, %arg0 : i32
    %c4_i32_97 = arith.constant 4 : i32
    %288 = arith.muli %287, %c4_i32_97 : i32
    %289 = arith.addi %288, %286 : i32
    %c1_98 = arith.constant 1 : index
    %c0_99 = arith.constant 0 : index
    %c0_100 = arith.constant 0 : index
    %290 = vector.load %arg9[%c1_98, %c0_99, %c0_100] : memref<2x16x128xf32, #tpu.memory_space<vmem>>, vector<1x16x128xf32>
    %291 = vector.shape_cast %290 : vector<1x16x128xf32> to vector<16x128xf32>
    %292 = arith.index_cast %286 : i32 to index
    %c0_101 = arith.constant 0 : index
    %c0_102 = arith.constant 0 : index
    %293 = vector.load %arg2[%292, %c0_101, %c0_102] : memref<4x16x384xbf16, #tpu.memory_space<vmem>>, vector<1x16x384xbf16>
    %294 = vector.shape_cast %293 : vector<1x16x384xbf16> to vector<16x384xbf16>
    %295 = arith.truncf %291 : vector<16x128xf32> to vector<16x128xbf16>
    %cst_103 = arith.constant dense<0.000000e+00> : vector<16x384xf32>
    %296 = tpu.matmul %295, %6, %cst_103 {dimension_numbers = #tpu.dot_dimension_numbers<[1], [0], [0], [1], [0, 0, 1, 1], [], []>} : vector<16x128xbf16>, vector<128x384xbf16>, vector<16x384xf32> -> vector<16x384xf32>
    %297 = vector.broadcast %10 : vector<1x384xf32> to vector<16x384xf32>
    %298 = arith.addf %296, %297 : vector<16x384xf32>
    %299 = arith.extf %294 : vector<16x384xbf16> to vector<16x384xf32>
    %300 = vector.extract_strided_slice %299 {offsets = [0, 0], sizes = [16, 128], strides = [1, 1]} : vector<16x384xf32> to vector<16x128xf32>
    %301 = vector.extract_strided_slice %298 {offsets = [0, 0], sizes = [16, 128], strides = [1, 1]} : vector<16x384xf32> to vector<16x128xf32>
    %302 = arith.addf %300, %301 : vector<16x128xf32>
    %303 = arith.negf %302 : vector<16x128xf32>
    %304 = math.exp %303 : vector<16x128xf32>
    %cst_104 = arith.constant 1.000000e+00 : f32
    %305 = vector.broadcast %cst_104 : f32 to vector<16x128xf32>
    %306 = arith.addf %305, %304 : vector<16x128xf32>
    %307 = arith.divf %305, %306 : vector<16x128xf32>
    %308 = vector.extract_strided_slice %299 {offsets = [0, 128], sizes = [16, 128], strides = [1, 1]} : vector<16x384xf32> to vector<16x128xf32>
    %309 = vector.extract_strided_slice %298 {offsets = [0, 128], sizes = [16, 128], strides = [1, 1]} : vector<16x384xf32> to vector<16x128xf32>
    %310 = arith.addf %308, %309 : vector<16x128xf32>
    %311 = arith.negf %310 : vector<16x128xf32>
    %312 = math.exp %311 : vector<16x128xf32>
    %cst_105 = arith.constant 1.000000e+00 : f32
    %313 = vector.broadcast %cst_105 : f32 to vector<16x128xf32>
    %314 = arith.addf %313, %312 : vector<16x128xf32>
    %315 = arith.divf %313, %314 : vector<16x128xf32>
    %316 = vector.extract_strided_slice %299 {offsets = [0, 256], sizes = [16, 128], strides = [1, 1]} : vector<16x384xf32> to vector<16x128xf32>
    %317 = vector.extract_strided_slice %298 {offsets = [0, 256], sizes = [16, 128], strides = [1, 1]} : vector<16x384xf32> to vector<16x128xf32>
    %318 = arith.mulf %307, %317 : vector<16x128xf32>
    %319 = arith.addf %316, %318 : vector<16x128xf32>
    %320 = math.tanh %319 : vector<16x128xf32>
    %cst_106 = arith.constant 1.000000e+00 : f32
    %321 = vector.broadcast %cst_106 : f32 to vector<16x128xf32>
    %322 = arith.subf %321, %315 : vector<16x128xf32>
    %323 = arith.mulf %322, %320 : vector<16x128xf32>
    %324 = arith.mulf %315, %291 : vector<16x128xf32>
    %325 = arith.addf %323, %324 : vector<16x128xf32>
    %326 = vector.broadcast %289 : i32 to vector<16x1xi32>
    %327 = arith.cmpi slt, %326, %11 : vector<16x1xi32>
    %328 = vector.shape_cast %327 : vector<16x1xi1> to vector<16x1xi1>
    %329 = vector.broadcast %328 : vector<16x1xi1> to vector<16x128xi1>
    %330 = arith.select %329, %325, %291 : vector<16x128xi1>, vector<16x128xf32>
    %c1_107 = arith.constant 1 : index
    %c0_108 = arith.constant 0 : index
    %c0_109 = arith.constant 0 : index
    %331 = vector.load %arg9[%c1_107, %c0_108, %c0_109] : memref<2x16x128xf32, #tpu.memory_space<vmem>>, vector<1x16x128xf32>
    %332 = vector.shape_cast %331 : vector<1x16x128xf32> to vector<16x128xf32>
    %333 = vector.shape_cast %330 : vector<16x128xf32> to vector<1x16x128xf32>
    tpu.vector_store %arg9[%c1_107, %c0_108, %c0_109], %333 {strides = array<i32>} : memref<2x16x128xf32, #tpu.memory_space<vmem>>, vector<1x16x128xf32>,
    %cst_110 = arith.constant 0.000000e+00 : f32
    %334 = vector.shape_cast %327 : vector<16x1xi1> to vector<16x1xi1>
    %335 = vector.broadcast %334 : vector<16x1xi1> to vector<16x128xi1>
    %336 = vector.broadcast %cst_110 : f32 to vector<16x128xf32>
    %337 = arith.select %335, %325, %336 : vector<16x128xi1>, vector<16x128xf32>
    %338 = arith.index_cast %286 : i32 to index
    %c0_111 = arith.constant 0 : index
    %c0_112 = arith.constant 0 : index
    %339 = vector.load %arg7[%338, %c0_111, %c0_112] : memref<4x16x128xf32, #tpu.memory_space<vmem>>, vector<1x16x128xf32>
    %340 = vector.shape_cast %339 : vector<1x16x128xf32> to vector<16x128xf32>
    %341 = vector.shape_cast %337 : vector<16x128xf32> to vector<1x16x128xf32>
    tpu.vector_store %arg7[%338, %c0_111, %c0_112], %341 {strides = array<i32>} : memref<4x16x128xf32, #tpu.memory_space<vmem>>, vector<1x16x128xf32>,
    %c3_i32_113 = arith.constant 3 : i32
    %c4_i32_114 = arith.constant 4 : i32
    %342 = arith.muli %arg0, %c4_i32_114 : i32
    %343 = arith.addi %342, %c3_i32_113 : i32
    %c0_115 = arith.constant 0 : index
    %c0_116 = arith.constant 0 : index
    %c0_117 = arith.constant 0 : index
    %344 = vector.load %arg9[%c0_115, %c0_116, %c0_117] : memref<2x16x128xf32, #tpu.memory_space<vmem>>, vector<1x16x128xf32>
    %345 = vector.shape_cast %344 : vector<1x16x128xf32> to vector<16x128xf32>
    %346 = arith.index_cast %c3_i32_113 : i32 to index
    %c0_118 = arith.constant 0 : index
    %c0_119 = arith.constant 0 : index
    %347 = vector.load %arg1[%346, %c0_118, %c0_119] : memref<4x16x384xbf16, #tpu.memory_space<vmem>>, vector<1x16x384xbf16>
    %348 = vector.shape_cast %347 : vector<1x16x384xbf16> to vector<16x384xbf16>
    %349 = arith.truncf %345 : vector<16x128xf32> to vector<16x128xbf16>
    %cst_120 = arith.constant dense<0.000000e+00> : vector<16x384xf32>
    %350 = tpu.matmul %349, %4, %cst_120 {dimension_numbers = #tpu.dot_dimension_numbers<[1], [0], [0], [1], [0, 0, 1, 1], [], []>} : vector<16x128xbf16>, vector<128x384xbf16>, vector<16x384xf32> -> vector<16x384xf32>
    %351 = vector.broadcast %8 : vector<1x384xf32> to vector<16x384xf32>
    %352 = arith.addf %350, %351 : vector<16x384xf32>
    %353 = arith.extf %348 : vector<16x384xbf16> to vector<16x384xf32>
    %354 = vector.extract_strided_slice %353 {offsets = [0, 0], sizes = [16, 128], strides = [1, 1]} : vector<16x384xf32> to vector<16x128xf32>
    %355 = vector.extract_strided_slice %352 {offsets = [0, 0], sizes = [16, 128], strides = [1, 1]} : vector<16x384xf32> to vector<16x128xf32>
    %356 = arith.addf %354, %355 : vector<16x128xf32>
    %357 = arith.negf %356 : vector<16x128xf32>
    %358 = math.exp %357 : vector<16x128xf32>
    %cst_121 = arith.constant 1.000000e+00 : f32
    %359 = vector.broadcast %cst_121 : f32 to vector<16x128xf32>
    %360 = arith.addf %359, %358 : vector<16x128xf32>
    %361 = arith.divf %359, %360 : vector<16x128xf32>
    %362 = vector.extract_strided_slice %353 {offsets = [0, 128], sizes = [16, 128], strides = [1, 1]} : vector<16x384xf32> to vector<16x128xf32>
    %363 = vector.extract_strided_slice %352 {offsets = [0, 128], sizes = [16, 128], strides = [1, 1]} : vector<16x384xf32> to vector<16x128xf32>
    %364 = arith.addf %362, %363 : vector<16x128xf32>
    %365 = arith.negf %364 : vector<16x128xf32>
    %366 = math.exp %365 : vector<16x128xf32>
    %cst_122 = arith.constant 1.000000e+00 : f32
    %367 = vector.broadcast %cst_122 : f32 to vector<16x128xf32>
    %368 = arith.addf %367, %366 : vector<16x128xf32>
    %369 = arith.divf %367, %368 : vector<16x128xf32>
    %370 = vector.extract_strided_slice %353 {offsets = [0, 256], sizes = [16, 128], strides = [1, 1]} : vector<16x384xf32> to vector<16x128xf32>
    %371 = vector.extract_strided_slice %352 {offsets = [0, 256], sizes = [16, 128], strides = [1, 1]} : vector<16x384xf32> to vector<16x128xf32>
    %372 = arith.mulf %361, %371 : vector<16x128xf32>
    %373 = arith.addf %370, %372 : vector<16x128xf32>
    %374 = math.tanh %373 : vector<16x128xf32>
    %cst_123 = arith.constant 1.000000e+00 : f32
    %375 = vector.broadcast %cst_123 : f32 to vector<16x128xf32>
    %376 = arith.subf %375, %369 : vector<16x128xf32>
    %377 = arith.mulf %376, %374 : vector<16x128xf32>
    %378 = arith.mulf %369, %345 : vector<16x128xf32>
    %379 = arith.addf %377, %378 : vector<16x128xf32>
    %380 = vector.broadcast %343 : i32 to vector<16x1xi32>
    %381 = arith.cmpi slt, %380, %11 : vector<16x1xi32>
    %382 = vector.shape_cast %381 : vector<16x1xi1> to vector<16x1xi1>
    %383 = vector.broadcast %382 : vector<16x1xi1> to vector<16x128xi1>
    %384 = arith.select %383, %379, %345 : vector<16x128xi1>, vector<16x128xf32>
    %c0_124 = arith.constant 0 : index
    %c0_125 = arith.constant 0 : index
    %c0_126 = arith.constant 0 : index
    %385 = vector.load %arg9[%c0_124, %c0_125, %c0_126] : memref<2x16x128xf32, #tpu.memory_space<vmem>>, vector<1x16x128xf32>
    %386 = vector.shape_cast %385 : vector<1x16x128xf32> to vector<16x128xf32>
    %387 = vector.shape_cast %384 : vector<16x128xf32> to vector<1x16x128xf32>
    tpu.vector_store %arg9[%c0_124, %c0_125, %c0_126], %387 {strides = array<i32>} : memref<2x16x128xf32, #tpu.memory_space<vmem>>, vector<1x16x128xf32>,
    %cst_127 = arith.constant 0.000000e+00 : f32
    %388 = vector.shape_cast %381 : vector<16x1xi1> to vector<16x1xi1>
    %389 = vector.broadcast %388 : vector<16x1xi1> to vector<16x128xi1>
    %390 = vector.broadcast %cst_127 : f32 to vector<16x128xf32>
    %391 = arith.select %389, %379, %390 : vector<16x128xi1>, vector<16x128xf32>
    %392 = arith.index_cast %c3_i32_113 : i32 to index
    %c0_128 = arith.constant 0 : index
    %c0_129 = arith.constant 0 : index
    %393 = vector.load %arg6[%392, %c0_128, %c0_129] : memref<4x16x128xf32, #tpu.memory_space<vmem>>, vector<1x16x128xf32>
    %394 = vector.shape_cast %393 : vector<1x16x128xf32> to vector<16x128xf32>
    %395 = vector.shape_cast %391 : vector<16x128xf32> to vector<1x16x128xf32>
    tpu.vector_store %arg6[%392, %c0_128, %c0_129], %395 {strides = array<i32>} : memref<4x16x128xf32, #tpu.memory_space<vmem>>, vector<1x16x128xf32>,
    %c3_i32_130 = arith.constant 3 : i32
    %396 = arith.subi %c3_i32_130, %c3_i32_113 : i32
    %c1_i32_131 = arith.constant 1 : i32
    %397 = arith.subi %c1_i32_131, %arg0 : i32
    %c4_i32_132 = arith.constant 4 : i32
    %398 = arith.muli %397, %c4_i32_132 : i32
    %399 = arith.addi %398, %396 : i32
    %c1_133 = arith.constant 1 : index
    %c0_134 = arith.constant 0 : index
    %c0_135 = arith.constant 0 : index
    %400 = vector.load %arg9[%c1_133, %c0_134, %c0_135] : memref<2x16x128xf32, #tpu.memory_space<vmem>>, vector<1x16x128xf32>
    %401 = vector.shape_cast %400 : vector<1x16x128xf32> to vector<16x128xf32>
    %402 = arith.index_cast %396 : i32 to index
    %c0_136 = arith.constant 0 : index
    %c0_137 = arith.constant 0 : index
    %403 = vector.load %arg2[%402, %c0_136, %c0_137] : memref<4x16x384xbf16, #tpu.memory_space<vmem>>, vector<1x16x384xbf16>
    %404 = vector.shape_cast %403 : vector<1x16x384xbf16> to vector<16x384xbf16>
    %405 = arith.truncf %401 : vector<16x128xf32> to vector<16x128xbf16>
    %cst_138 = arith.constant dense<0.000000e+00> : vector<16x384xf32>
    %406 = tpu.matmul %405, %6, %cst_138 {dimension_numbers = #tpu.dot_dimension_numbers<[1], [0], [0], [1], [0, 0, 1, 1], [], []>} : vector<16x128xbf16>, vector<128x384xbf16>, vector<16x384xf32> -> vector<16x384xf32>
    %407 = vector.broadcast %10 : vector<1x384xf32> to vector<16x384xf32>
    %408 = arith.addf %406, %407 : vector<16x384xf32>
    %409 = arith.extf %404 : vector<16x384xbf16> to vector<16x384xf32>
    %410 = vector.extract_strided_slice %409 {offsets = [0, 0], sizes = [16, 128], strides = [1, 1]} : vector<16x384xf32> to vector<16x128xf32>
    %411 = vector.extract_strided_slice %408 {offsets = [0, 0], sizes = [16, 128], strides = [1, 1]} : vector<16x384xf32> to vector<16x128xf32>
    %412 = arith.addf %410, %411 : vector<16x128xf32>
    %413 = arith.negf %412 : vector<16x128xf32>
    %414 = math.exp %413 : vector<16x128xf32>
    %cst_139 = arith.constant 1.000000e+00 : f32
    %415 = vector.broadcast %cst_139 : f32 to vector<16x128xf32>
    %416 = arith.addf %415, %414 : vector<16x128xf32>
    %417 = arith.divf %415, %416 : vector<16x128xf32>
    %418 = vector.extract_strided_slice %409 {offsets = [0, 128], sizes = [16, 128], strides = [1, 1]} : vector<16x384xf32> to vector<16x128xf32>
    %419 = vector.extract_strided_slice %408 {offsets = [0, 128], sizes = [16, 128], strides = [1, 1]} : vector<16x384xf32> to vector<16x128xf32>
    %420 = arith.addf %418, %419 : vector<16x128xf32>
    %421 = arith.negf %420 : vector<16x128xf32>
    %422 = math.exp %421 : vector<16x128xf32>
    %cst_140 = arith.constant 1.000000e+00 : f32
    %423 = vector.broadcast %cst_140 : f32 to vector<16x128xf32>
    %424 = arith.addf %423, %422 : vector<16x128xf32>
    %425 = arith.divf %423, %424 : vector<16x128xf32>
    %426 = vector.extract_strided_slice %409 {offsets = [0, 256], sizes = [16, 128], strides = [1, 1]} : vector<16x384xf32> to vector<16x128xf32>
    %427 = vector.extract_strided_slice %408 {offsets = [0, 256], sizes = [16, 128], strides = [1, 1]} : vector<16x384xf32> to vector<16x128xf32>
    %428 = arith.mulf %417, %427 : vector<16x128xf32>
    %429 = arith.addf %426, %428 : vector<16x128xf32>
    %430 = math.tanh %429 : vector<16x128xf32>
    %cst_141 = arith.constant 1.000000e+00 : f32
    %431 = vector.broadcast %cst_141 : f32 to vector<16x128xf32>
    %432 = arith.subf %431, %425 : vector<16x128xf32>
    %433 = arith.mulf %432, %430 : vector<16x128xf32>
    %434 = arith.mulf %425, %401 : vector<16x128xf32>
    %435 = arith.addf %433, %434 : vector<16x128xf32>
    %436 = vector.broadcast %399 : i32 to vector<16x1xi32>
    %437 = arith.cmpi slt, %436, %11 : vector<16x1xi32>
    %438 = vector.shape_cast %437 : vector<16x1xi1> to vector<16x1xi1>
    %439 = vector.broadcast %438 : vector<16x1xi1> to vector<16x128xi1>
    %440 = arith.select %439, %435, %401 : vector<16x128xi1>, vector<16x128xf32>
    %c1_142 = arith.constant 1 : index
    %c0_143 = arith.constant 0 : index
    %c0_144 = arith.constant 0 : index
    %441 = vector.load %arg9[%c1_142, %c0_143, %c0_144] : memref<2x16x128xf32, #tpu.memory_space<vmem>>, vector<1x16x128xf32>
    %442 = vector.shape_cast %441 : vector<1x16x128xf32> to vector<16x128xf32>
    %443 = vector.shape_cast %440 : vector<16x128xf32> to vector<1x16x128xf32>
    tpu.vector_store %arg9[%c1_142, %c0_143, %c0_144], %443 {strides = array<i32>} : memref<2x16x128xf32, #tpu.memory_space<vmem>>, vector<1x16x128xf32>,
    %cst_145 = arith.constant 0.000000e+00 : f32
    %444 = vector.shape_cast %437 : vector<16x1xi1> to vector<16x1xi1>
    %445 = vector.broadcast %444 : vector<16x1xi1> to vector<16x128xi1>
    %446 = vector.broadcast %cst_145 : f32 to vector<16x128xf32>
    %447 = arith.select %445, %435, %446 : vector<16x128xi1>, vector<16x128xf32>
    %448 = arith.index_cast %396 : i32 to index
    %c0_146 = arith.constant 0 : index
    %c0_147 = arith.constant 0 : index
    %449 = vector.load %arg7[%448, %c0_146, %c0_147] : memref<4x16x128xf32, #tpu.memory_space<vmem>>, vector<1x16x128xf32>
    %450 = vector.shape_cast %449 : vector<1x16x128xf32> to vector<16x128xf32>
    %451 = vector.shape_cast %447 : vector<16x128xf32> to vector<1x16x128xf32>
    tpu.vector_store %arg7[%448, %c0_146, %c0_147], %451 {strides = array<i32>} : memref<4x16x128xf32, #tpu.memory_space<vmem>>, vector<1x16x128xf32>,
    %c4_i32_148 = arith.constant 4 : i32
    %c1_i32_149 = arith.constant 1 : i32
    %452 = arith.cmpi eq, %arg0, %c1_i32_149 : i32
    %453 = arith.extui %452 : i1 to i32
    %c0_i32_150 = arith.constant 0 : i32
    %454 = arith.cmpi ne, %453, %c0_i32_150 : i32
    scf.if %454 {
      %c0_151 = arith.constant 0 : index
      %c0_152 = arith.constant 0 : index
      %c0_153 = arith.constant 0 : index
      %455 = vector.load %arg9[%c0_151, %c0_152, %c0_153] : memref<2x16x128xf32, #tpu.memory_space<vmem>>, vector<2x16x128xf32>
      %c0_154 = arith.constant 0 : index
      %c0_155 = arith.constant 0 : index
      %c0_156 = arith.constant 0 : index
      %456 = vector.load %arg8[%c0_154, %c0_155, %c0_156] : memref<2x16x128xf32, #tpu.memory_space<vmem>>, vector<2x16x128xf32>
      tpu.vector_store %arg8[%c0_154, %c0_155, %c0_156], %455 {strides = array<i32>} : memref<2x16x128xf32, #tpu.memory_space<vmem>>, vector<2x16x128xf32>,
    } else {
    }
    return
  }
  func.func @transform_0(%arg0: i32) -> (i32, i32, i32) {
    %c0_i32 = arith.constant 0 : i32
    %c0_i32_0 = arith.constant 0 : i32
    %c0_i32_1 = arith.constant 0 : i32
    return %arg0, %c0_i32, %c0_i32_0 : i32, i32, i32
  }
  func.func @transform_1(%arg0: i32) -> (i32, i32, i32) {
    %c1_i32 = arith.constant 1 : i32
    %0 = arith.subi %c1_i32, %arg0 : i32
    %c0_i32 = arith.constant 0 : i32
    %c0_i32_0 = arith.constant 0 : i32
    %c0_i32_1 = arith.constant 0 : i32
    return %0, %c0_i32, %c0_i32_0 : i32, i32, i32
  }
  func.func @transform_2(%arg0: i32) -> (i32, i32, i32) {
    %c0_i32 = arith.constant 0 : i32
    %c0_i32_0 = arith.constant 0 : i32
    %c0_i32_1 = arith.constant 0 : i32
    %c0_i32_2 = arith.constant 0 : i32
    return %c0_i32, %c0_i32_0, %c0_i32_1 : i32, i32, i32
  }
  func.func @transform_3(%arg0: i32) -> (i32, i32, i32) {
    %c0_i32 = arith.constant 0 : i32
    %c0_i32_0 = arith.constant 0 : i32
    %c0_i32_1 = arith.constant 0 : i32
    %c0_i32_2 = arith.constant 0 : i32
    return %c0_i32, %c0_i32_0, %c0_i32_1 : i32, i32, i32
  }
  func.func @transform_4(%arg0: i32) -> (i32, i32) {
    %c0_i32 = arith.constant 0 : i32
    %c0_i32_0 = arith.constant 0 : i32
    %c0_i32_1 = arith.constant 0 : i32
    return %c0_i32, %c0_i32_0 : i32, i32
  }
  func.func @transform_5(%arg0: i32) -> (i32, i32, i32) {
    %c0_i32 = arith.constant 0 : i32
    %c0_i32_0 = arith.constant 0 : i32
    %c0_i32_1 = arith.constant 0 : i32
    return %arg0, %c0_i32, %c0_i32_0 : i32, i32, i32
  }
  func.func @transform_6(%arg0: i32) -> (i32, i32, i32) {
    %c1_i32 = arith.constant 1 : i32
    %0 = arith.subi %c1_i32, %arg0 : i32
    %c0_i32 = arith.constant 0 : i32
    %c0_i32_0 = arith.constant 0 : i32
    %c0_i32_1 = arith.constant 0 : i32
    return %0, %c0_i32, %c0_i32_0 : i32, i32, i32
  }
  func.func @transform_7(%arg0: i32) -> (i32, i32, i32) {
    %c0_i32 = arith.constant 0 : i32
    %c0_i32_0 = arith.constant 0 : i32
    %c0_i32_1 = arith.constant 0 : i32
    %c0_i32_2 = arith.constant 0 : i32
    return %c0_i32, %c0_i32_0, %c0_i32_1 : i32, i32, i32
  }
}

</mosaic_0001>

<llo_original>
// kernel: encoder_rnn_forward.2
$region0: #{encoder_rnn_forward.2}
  #allocation0 [shape = 'u32[]', space=smem, size = 0x4, offset = 0x4, fixed_abs, tag = 'smem constant byte address 0x4 - core index']
  #allocation1 [shape = 'u32[144,128]{1,0:T(1,128)}', space=vmem, size = 0x12000, scoped, tag = 'internal scratch']
  %s0 = inlined_call_operand.vmem [shape: bf16[128,128], index: 0, kind: input, shape index: {}]
  %s1 = inlined_call_operand.vmem [shape: bf16[128,768], index: 1, kind: input, shape index: {}]
  %s2 = inlined_call_operand.vmem [shape: f32[1,768], index: 2, kind: input, shape index: {}]
  %s3 = inlined_call_operand.vmem [shape: bf16[128,384], index: 3, kind: output, shape index: {0}]
  %s4 = inlined_call_operand.vmem [shape: bf16[128,384], index: 4, kind: output, shape index: {1}]
  %5 = xla_tuple %s3, %s4
  %s6 = sld [smem:[#allocation0]]
  $region30: #{encoder_rnn_forward.2} parent=0
    _
  %s8 = ssub.s32 1, %s6
  %s9 = scalar_select 0, %s8, %s6
  // Predicated region
  $region2: #{encoder_rnn_forward.2} parent=0 // pred_check
    _
  $region3: #{encoder_rnn_forward.2} parent=0 // pred_check_branch
    %11 = sbr.rel (0) target = $region5
  $region4: #{encoder_rnn_forward.2} parent=0 // pred_region
    _
  $region5: #{encoder_rnn_forward.2} parent=0 // pred_fallthru
    _
  // Predicated region
  $region6: #{encoder_rnn_forward.2} parent=0 // pred_check
    _
  $region7: #{encoder_rnn_forward.2} parent=0 // pred_check_branch
    %13 = sbr.rel (0) target = $region9
  $region8: #{encoder_rnn_forward.2} parent=0 // pred_region
    _
  $region9: #{encoder_rnn_forward.2} parent=0 // pred_fallthru
    _
  // Predicated region
  $region10: #{encoder_rnn_forward.2} parent=0 // pred_check
    _
  $region11: #{encoder_rnn_forward.2} parent=0 // pred_check_branch
    %15 = sbr.rel (0) target = $region13
  $region12: #{encoder_rnn_forward.2} parent=0 // pred_region
    _
  $region13: #{encoder_rnn_forward.2} parent=0 // pred_fallthru
    _
  %v17 = vld [vmem:[%s0] sm:$0xf]
  %v18 = vld [vmem:[%s0 + $0x4] sm:$0xf]
  %v19 = vld [vmem:[%s0 + $0x8] sm:$0xf]
  %v20 = vld [vmem:[%s0 + $0xc] sm:$0xf]
  %v21 = vld [vmem:[%s0 + $0x10] sm:$0xf]
  %v22 = vld [vmem:[%s0 + $0x14] sm:$0xf]
  %v23 = vld [vmem:[%s0 + $0x18] sm:$0xf]
  %v24 = vld [vmem:[%s0 + $0x1c] sm:$0xf]
  %v25 = vld [vmem:[%s0 + $0x20] sm:$0xf]
  %v26 = vld [vmem:[%s0 + $0x24] sm:$0xf]
  %v27 = vld [vmem:[%s0 + $0x28] sm:$0xf]
  %v28 = vld [vmem:[%s0 + $0x2c] sm:$0xf]
  %v29 = vld [vmem:[%s0 + $0x30] sm:$0xf]
  %v30 = vld [vmem:[%s0 + $0x34] sm:$0xf]
  %v31 = vld [vmem:[%s0 + $0x38] sm:$0xf]
  %v32 = vld [vmem:[%s0 + $0x3c] sm:$0xf]
  %v33 = vld [vmem:[%s1] sm:$0xff]
  %v34 = vld [vmem:[%s1 + $0x8] sm:$0xff]
  %v35 = vld [vmem:[%s1 + $0x10] sm:$0xff]
  %v36 = vld [vmem:[%s1 + $0x18] sm:$0xff]
  %v37 = vld [vmem:[%s1 + $0x20] sm:$0xff]
  %v38 = vld [vmem:[%s1 + $0x28] sm:$0xff]
  %v39 = vld [vmem:[%s1 + $0x30] sm:$0xff]
  %v40 = vld [vmem:[%s1 + $0x38] sm:$0xff]
  %v41 = vld [vmem:[%s1 + $0x40] sm:$0xff]
  %v42 = vld [vmem:[%s1 + $0x48] sm:$0xff]
  %v43 = vld [vmem:[%s1 + $0x50] sm:$0xff]
  %v44 = vld [vmem:[%s1 + $0x58] sm:$0xff]
  %v45 = vld [vmem:[%s1 + $0x60] sm:$0xff]
  %v46 = vld [vmem:[%s1 + $0x68] sm:$0xff]
  %v47 = vld [vmem:[%s1 + $0x70] sm:$0xff]
  %v48 = vld [vmem:[%s1 + $0x78] sm:$0xff]
  %v49 = vld [vmem:[%s1 + $0x80] sm:$0xff]
  %v50 = vld [vmem:[%s1 + $0x88] sm:$0xff]
  %v51 = vld [vmem:[%s1 + $0x90] sm:$0xff]
  %v52 = vld [vmem:[%s1 + $0x98] sm:$0xff]
  %v53 = vld [vmem:[%s1 + $0xa0] sm:$0xff]
  %v54 = vld [vmem:[%s1 + $0xa8] sm:$0xff]
  %v55 = vld [vmem:[%s1 + $0xb0] sm:$0xff]
  %v56 = vld [vmem:[%s1 + $0xb8] sm:$0xff]
  %v57 = vld [vmem:[%s1 + $0xc0] sm:$0xff]
  %v58 = vld [vmem:[%s1 + $0xc8] sm:$0xff]
  %v59 = vld [vmem:[%s1 + $0xd0] sm:$0xff]
  %v60 = vld [vmem:[%s1 + $0xd8] sm:$0xff]
  %v61 = vld [vmem:[%s1 + $0xe0] sm:$0xff]
  %v62 = vld [vmem:[%s1 + $0xe8] sm:$0xff]
  %v63 = vld [vmem:[%s1 + $0xf0] sm:$0xff]
  %v64 = vld [vmem:[%s1 + $0xf8] sm:$0xff]
  %v65 = vld [vmem:[%s1 + $0x100] sm:$0xff]
  %v66 = vld [vmem:[%s1 + $0x108] sm:$0xff]
  %v67 = vld [vmem:[%s1 + $0x110] sm:$0xff]
  %v68 = vld [vmem:[%s1 + $0x118] sm:$0xff]
  %v69 = vld [vmem:[%s1 + $0x120] sm:$0xff]
  %v70 = vld [vmem:[%s1 + $0x128] sm:$0xff]
  %v71 = vld [vmem:[%s1 + $0x130] sm:$0xff]
  %v72 = vld [vmem:[%s1 + $0x138] sm:$0xff]
  %v73 = vld [vmem:[%s1 + $0x140] sm:$0xff]
  %v74 = vld [vmem:[%s1 + $0x148] sm:$0xff]
  %v75 = vld [vmem:[%s1 + $0x150] sm:$0xff]
  %v76 = vld [vmem:[%s1 + $0x158] sm:$0xff]
  %v77 = vld [vmem:[%s1 + $0x160] sm:$0xff]
  %v78 = vld [vmem:[%s1 + $0x168] sm:$0xff]
  %v79 = vld [vmem:[%s1 + $0x170] sm:$0xff]
  %v80 = vld [vmem:[%s1 + $0x178] sm:$0xff]
  %v81 = vld [vmem:[%s2] sm:$0x3f]
  %v83 = vlaneseq
  %v84 = vshrl.u32 %v83, 7
  %v85 = vsub.s32 0, %v84
  %v86 = vrot.slane %v81, %v85
  %v87 = vlaneseq
  %v88 = vshrl.u32 %v87, 7
  %v89 = vsub.s32 1, %v88
  %v90 = vrot.slane %v81, %v89
  %v91 = vlaneseq
  %v92 = vshrl.u32 %v91, 7
  %v93 = vsub.s32 2, %v92
  %v94 = vrot.slane %v81, %v93
  %v95 = vlaneseq
  %v96 = vshrl.u32 %v95, 7
  %v97 = vsub.s32 3, %v96
  %v98 = vrot.slane %v81, %v97
  %v99 = vlaneseq
  %v100 = vshrl.u32 %v99, 7
  %v101 = vsub.s32 4, %v100
  %v102 = vrot.slane %v81, %v101
  %v103 = vlaneseq
  %v104 = vshrl.u32 %v103, 7
  %v105 = vsub.s32 5, %v104
  %v106 = vrot.slane %v81, %v105
  %v129 = vunpack.c.l.b16 %v17
  %v130 = vunpack.c.l.b16 %v18
  %v131 = vunpack.c.l.b16 %v19
  %v132 = vunpack.c.l.b16 %v20
  %v133 = vunpack.c.l.b16 %v21
  %v134 = vunpack.c.l.b16 %v22
  %v135 = vunpack.c.l.b16 %v23
  %v136 = vunpack.c.l.b16 %v24
  %v137 = vunpack.c.l.b16 %v25
  %v138 = vunpack.c.l.b16 %v26
  %v139 = vunpack.c.l.b16 %v27
  %v140 = vunpack.c.l.b16 %v28
  %v141 = vunpack.c.l.b16 %v29
  %v142 = vunpack.c.l.b16 %v30
  %v143 = vunpack.c.l.b16 %v31
  %v144 = vunpack.c.l.b16 %v32
  %v145 = vpack.c.b16 %v130, %v129
  %v146 = vpack.c.b16 %v132, %v131
  %v147 = vpack.c.b16 %v134, %v133
  %v148 = vpack.c.b16 %v136, %v135
  %v149 = vpack.c.b16 %v138, %v137
  %v150 = vpack.c.b16 %v140, %v139
  %v151 = vpack.c.b16 %v142, %v141
  %v152 = vpack.c.b16 %v144, %v143
  %v209 = vunpack.c.l.b16 %v33
  %v210 = vunpack.c.h.b16 %v33
  %v211 = vunpack.c.l.b16 %v34
  %v212 = vunpack.c.h.b16 %v34
  %v213 = vunpack.c.l.b16 %v35
  %v214 = vunpack.c.h.b16 %v35
  %v215 = vunpack.c.l.b16 %v36
  %v216 = vunpack.c.h.b16 %v36
  %v217 = vunpack.c.l.b16 %v37
  %v218 = vunpack.c.h.b16 %v37
  %v219 = vunpack.c.l.b16 %v38
  %v220 = vunpack.c.h.b16 %v38
  %v221 = vunpack.c.l.b16 %v39
  %v222 = vunpack.c.h.b16 %v39
  %v223 = vunpack.c.l.b16 %v40
  %v224 = vunpack.c.h.b16 %v40
  %v225 = vunpack.c.l.b16 %v41
  %v226 = vunpack.c.h.b16 %v41
  %v227 = vunpack.c.l.b16 %v42
  %v228 = vunpack.c.h.b16 %v42
  %v229 = vunpack.c.l.b16 %v43
  %v230 = vunpack.c.h.b16 %v43
  %v231 = vunpack.c.l.b16 %v44
  %v232 = vunpack.c.h.b16 %v44
  %v233 = vunpack.c.l.b16 %v45
  %v234 = vunpack.c.h.b16 %v45
  %v235 = vunpack.c.l.b16 %v46
  %v236 = vunpack.c.h.b16 %v46
  %v237 = vunpack.c.l.b16 %v47
  %v238 = vunpack.c.h.b16 %v47
  %v239 = vunpack.c.l.b16 %v48
  %v240 = vunpack.c.h.b16 %v48
  %v241 = vunpack.c.l.b16 %v49
  %v242 = vunpack.c.h.b16 %v49
  %v243 = vunpack.c.l.b16 %v50
  %v244 = vunpack.c.h.b16 %v50
  %v245 = vunpack.c.l.b16 %v51
  %v246 = vunpack.c.h.b16 %v51
  %v247 = vunpack.c.l.b16 %v52
  %v248 = vunpack.c.h.b16 %v52
  %v249 = vunpack.c.l.b16 %v53
  %v250 = vunpack.c.h.b16 %v53
  %v251 = vunpack.c.l.b16 %v54
  %v252 = vunpack.c.h.b16 %v54
  %v253 = vunpack.c.l.b16 %v55
  %v254 = vunpack.c.h.b16 %v55
  %v255 = vunpack.c.l.b16 %v56
  %v256 = vunpack.c.h.b16 %v56
  %v257 = vunpack.c.l.b16 %v57
  %v258 = vunpack.c.h.b16 %v57
  %v259 = vunpack.c.l.b16 %v58
  %v260 = vunpack.c.h.b16 %v58
  %v261 = vunpack.c.l.b16 %v59
  %v262 = vunpack.c.h.b16 %v59
  %v263 = vunpack.c.l.b16 %v60
  %v264 = vunpack.c.h.b16 %v60
  %v265 = vunpack.c.l.b16 %v61
  %v266 = vunpack.c.h.b16 %v61
  %v267 = vunpack.c.l.b16 %v62
  %v268 = vunpack.c.h.b16 %v62
  %v269 = vunpack.c.l.b16 %v63
  %v270 = vunpack.c.h.b16 %v63
  %v271 = vunpack.c.l.b16 %v64
  %v272 = vunpack.c.h.b16 %v64
  %v273 = vunpack.c.l.b16 %v65
  %v274 = vunpack.c.h.b16 %v65
  %v275 = vunpack.c.l.b16 %v66
  %v276 = vunpack.c.h.b16 %v66
  %v277 = vunpack.c.l.b16 %v67
  %v278 = vunpack.c.h.b16 %v67
  %v279 = vunpack.c.l.b16 %v68
  %v280 = vunpack.c.h.b16 %v68
  %v281 = vunpack.c.l.b16 %v69
  %v282 = vunpack.c.h.b16 %v69
  %v283 = vunpack.c.l.b16 %v70
  %v284 = vunpack.c.h.b16 %v70
  %v285 = vunpack.c.l.b16 %v71
  %v286 = vunpack.c.h.b16 %v71
  %v287 = vunpack.c.l.b16 %v72
  %v288 = vunpack.c.h.b16 %v72
  %v289 = vunpack.c.l.b16 %v73
  %v290 = vunpack.c.h.b16 %v73
  %v291 = vunpack.c.l.b16 %v74
  %v292 = vunpack.c.h.b16 %v74
  %v293 = vunpack.c.l.b16 %v75
  %v294 = vunpack.c.h.b16 %v75
  %v295 = vunpack.c.l.b16 %v76
  %v296 = vunpack.c.h.b16 %v76
  %v297 = vunpack.c.l.b16 %v77
  %v298 = vunpack.c.h.b16 %v77
  %v299 = vunpack.c.l.b16 %v78
  %v300 = vunpack.c.h.b16 %v78
  %v301 = vunpack.c.l.b16 %v79
  %v302 = vunpack.c.h.b16 %v79
  %v303 = vunpack.c.l.b16 %v80
  %v304 = vunpack.c.h.b16 %v80
  %v305 = vpack.c.b16 %v215, %v209
  %v306 = vpack.c.b16 %v216, %v210
  %v307 = vpack.c.b16 %v217, %v211
  %v308 = vpack.c.b16 %v218, %v212
  %v309 = vpack.c.b16 %v219, %v213
  %v310 = vpack.c.b16 %v220, %v214
  %v311 = vpack.c.b16 %v227, %v221
  %v312 = vpack.c.b16 %v228, %v222
  %v313 = vpack.c.b16 %v229, %v223
  %v314 = vpack.c.b16 %v230, %v224
  %v315 = vpack.c.b16 %v231, %v225
  %v316 = vpack.c.b16 %v232, %v226
  %v317 = vpack.c.b16 %v239, %v233
  %v318 = vpack.c.b16 %v240, %v234
  %v319 = vpack.c.b16 %v241, %v235
  %v320 = vpack.c.b16 %v242, %v236
  %v321 = vpack.c.b16 %v243, %v237
  %v322 = vpack.c.b16 %v244, %v238
  %v323 = vpack.c.b16 %v251, %v245
  %v324 = vpack.c.b16 %v252, %v246
  %v325 = vpack.c.b16 %v253, %v247
  %v326 = vpack.c.b16 %v254, %v248
  %v327 = vpack.c.b16 %v255, %v249
  %v328 = vpack.c.b16 %v256, %v250
  %v329 = vpack.c.b16 %v263, %v257
  %v330 = vpack.c.b16 %v264, %v258
  %v331 = vpack.c.b16 %v265, %v259
  %v332 = vpack.c.b16 %v266, %v260
  %v333 = vpack.c.b16 %v267, %v261
  %v334 = vpack.c.b16 %v268, %v262
  %v335 = vpack.c.b16 %v275, %v269
  %v336 = vpack.c.b16 %v276, %v270
  %v337 = vpack.c.b16 %v277, %v271
  %v338 = vpack.c.b16 %v278, %v272
  %v339 = vpack.c.b16 %v279, %v273
  %v340 = vpack.c.b16 %v280, %v274
  %v341 = vpack.c.b16 %v287, %v281
  %v342 = vpack.c.b16 %v288, %v282
  %v343 = vpack.c.b16 %v289, %v283
  %v344 = vpack.c.b16 %v290, %v284
  %v345 = vpack.c.b16 %v291, %v285
  %v346 = vpack.c.b16 %v292, %v286
  %v347 = vpack.c.b16 %v299, %v293
  %v348 = vpack.c.b16 %v300, %v294
  %v349 = vpack.c.b16 %v301, %v295
  %v350 = vpack.c.b16 %v302, %v296
  %v351 = vpack.c.b16 %v303, %v297
  %v352 = vpack.c.b16 %v304, %v298
  %401 = vmatprep.subr.bf16.mxu0 %v348
  %402 = vmatpush1.bf16.msra.mxu0 %v347
  %403 = vmatprep.subr.bf16.mxu0 %v342
  %404 = vmatpush1.bf16.msra.mxu0 %v341
  %405 = vmatprep.subr.bf16.mxu0 %v336
  %406 = vmatpush1.bf16.msra.mxu0 %v335
  %407 = vmatprep.subr.bf16.mxu0 %v330
  %408 = vmatpush1.bf16.msra.mxu0 %v329
  %409 = vmatprep.subr.bf16.mxu0 %v324
  %410 = vmatpush1.bf16.msra.mxu0 %v323
  %411 = vmatprep.subr.bf16.mxu0 %v318
  %412 = vmatpush1.bf16.msra.mxu0 %v317
  %413 = vmatprep.subr.bf16.mxu0 %v312
  %414 = vmatpush1.bf16.msra.mxu0 %v311
  %415 = vmatprep.subr.bf16.mxu0 %v306
  %416 = vmatpush1.bf16.msra.mxu0 %v305
  %417 = vmatprep.subr.bf16.mxu0 0
  %418 = vmatpush2.bf16.msra.mxu0 0
  %419 = vmatprep.subr.bf16.mxu0 0
  %420 = vmatpush2.bf16.msra.mxu0 0
  %421 = vmatprep.subr.bf16.mxu0 0
  %422 = vmatpush2.bf16.msra.mxu0 0
  %423 = vmatprep.subr.bf16.mxu0 0
  %424 = vmatpush2.bf16.msra.mxu0 0
  %425 = vmatprep.subr.bf16.mxu0 0
  %426 = vmatpush2.bf16.msra.mxu0 0
  %427 = vmatprep.subr.bf16.mxu0 0
  %428 = vmatpush2.bf16.msra.mxu0 0
  %429 = vmatprep.subr.bf16.mxu0 0
  %430 = vmatpush2.bf16.msra.mxu0 0
  %431 = vmatprep.subr.bf16.mxu0 0
  %432 = vmatpush2.bf16.msra.mxu0 0
  %433 = vmatprep.mubr.bf16.mxu0 0
  %434 = vmatmul.mubr.bf16.gmra.mxu0 %v145
  %v435 = vpop.f32.mrf.mxu0
  %v436 = vadd.f32 %v86, %v435
  %v437 = vpop.f32.mrf.mxu0
  %v438 = vadd.f32 %v90, %v437
  %v439 = vpop.f32.mrf.mxu0
  %v440 = vadd.f32 %v86, %v439
  %v441 = vpop.f32.mrf.mxu0
  %v442 = vadd.f32 %v90, %v441
  %443 = vmatprep.mubr.bf16.mxu0 0
  %444 = vmatmul.mubr.bf16.gmra.mxu0 %v146
  %v445 = vpop.f32.mrf.mxu0
  %v446 = vadd.f32 %v86, %v445
  %v447 = vpop.f32.mrf.mxu0
  %v448 = vadd.f32 %v90, %v447
  %v449 = vpop.f32.mrf.mxu0
  %v450 = vadd.f32 %v86, %v449
  %v451 = vpop.f32.mrf.mxu0
  %v452 = vadd.f32 %v90, %v451
  %453 = vmatprep.mubr.bf16.mxu0 0
  %454 = vmatmul.mubr.bf16.gmra.mxu0 %v147
  %v455 = vpop.f32.mrf.mxu0
  %v456 = vadd.f32 %v86, %v455
  %v457 = vpop.f32.mrf.mxu0
  %v458 = vadd.f32 %v90, %v457
  %v459 = vpop.f32.mrf.mxu0
  %v460 = vadd.f32 %v86, %v459
  %v461 = vpop.f32.mrf.mxu0
  %v462 = vadd.f32 %v90, %v461
  %463 = vmatprep.mubr.bf16.mxu0 0
  %464 = vmatmul.mubr.bf16.gmra.mxu0 %v148
  %v465 = vpop.f32.mrf.mxu0
  %v466 = vadd.f32 %v86, %v465
  %v467 = vpop.f32.mrf.mxu0
  %v468 = vadd.f32 %v90, %v467
  %v469 = vpop.f32.mrf.mxu0
  %v470 = vadd.f32 %v86, %v469
  %v471 = vpop.f32.mrf.mxu0
  %v472 = vadd.f32 %v90, %v471
  %473 = vmatprep.mubr.bf16.mxu0 0
  %474 = vmatmul.mubr.bf16.gmra.mxu0 %v149
  %v475 = vpop.f32.mrf.mxu0
  %v476 = vadd.f32 %v86, %v475
  %v477 = vpop.f32.mrf.mxu0
  %v478 = vadd.f32 %v90, %v477
  %v479 = vpop.f32.mrf.mxu0
  %v480 = vadd.f32 %v86, %v479
  %v481 = vpop.f32.mrf.mxu0
  %v482 = vadd.f32 %v90, %v481
  %483 = vmatprep.mubr.bf16.mxu0 0
  %484 = vmatmul.mubr.bf16.gmra.mxu0 %v150
  %v485 = vpop.f32.mrf.mxu0
  %v486 = vadd.f32 %v86, %v485
  %v487 = vpop.f32.mrf.mxu0
  %v488 = vadd.f32 %v90, %v487
  %v489 = vpop.f32.mrf.mxu0
  %v490 = vadd.f32 %v86, %v489
  %v491 = vpop.f32.mrf.mxu0
  %v492 = vadd.f32 %v90, %v491
  %493 = vmatprep.mubr.bf16.mxu0 0
  %494 = vmatmul.mubr.bf16.gmra.mxu0 %v151
  %v495 = vpop.f32.mrf.mxu0
  %v496 = vadd.f32 %v86, %v495
  %v497 = vpop.f32.mrf.mxu0
  %v498 = vadd.f32 %v90, %v497
  %v499 = vpop.f32.mrf.mxu0
  %v500 = vadd.f32 %v86, %v499
  %v501 = vpop.f32.mrf.mxu0
  %v502 = vadd.f32 %v90, %v501
  %503 = vmatprep.mubr.bf16.mxu0 0
  %504 = vmatmul.mubr.bf16.gmra.mxu0 %v152
  %v505 = vpop.f32.mrf.mxu0
  %v506 = vadd.f32 %v86, %v505
  %v507 = vpop.f32.mrf.mxu0
  %v508 = vadd.f32 %v90, %v507
  %v509 = vpop.f32.mrf.mxu0
  %v510 = vadd.f32 %v86, %v509
  %v511 = vpop.f32.mrf.mxu0
  %v512 = vadd.f32 %v90, %v511
  %513 = vdwg.mxu0
  %514 = vmatprep.subr.bf16.mxu0 %v350
  %515 = vmatpush1.bf16.msra.mxu0 %v349
  %516 = vmatprep.subr.bf16.mxu0 %v344
  %517 = vmatpush1.bf16.msra.mxu0 %v343
  %518 = vmatprep.subr.bf16.mxu0 %v338
  %519 = vmatpush1.bf16.msra.mxu0 %v337
  %520 = vmatprep.subr.bf16.mxu0 %v332
  %521 = vmatpush1.bf16.msra.mxu0 %v331
  %522 = vmatprep.subr.bf16.mxu0 %v326
  %523 = vmatpush1.bf16.msra.mxu0 %v325
  %524 = vmatprep.subr.bf16.mxu0 %v320
  %525 = vmatpush1.bf16.msra.mxu0 %v319
  %526 = vmatprep.subr.bf16.mxu0 %v314
  %527 = vmatpush1.bf16.msra.mxu0 %v313
  %528 = vmatprep.subr.bf16.mxu0 %v308
  %529 = vmatpush1.bf16.msra.mxu0 %v307
  %530 = vmatprep.subr.bf16.mxu0 0
  %531 = vmatpush2.bf16.msra.mxu0 0
  %532 = vmatprep.subr.bf16.mxu0 0
  %533 = vmatpush2.bf16.msra.mxu0 0
  %534 = vmatprep.subr.bf16.mxu0 0
  %535 = vmatpush2.bf16.msra.mxu0 0
  %536 = vmatprep.subr.bf16.mxu0 0
  %537 = vmatpush2.bf16.msra.mxu0 0
  %538 = vmatprep.subr.bf16.mxu0 0
  %539 = vmatpush2.bf16.msra.mxu0 0
  %540 = vmatprep.subr.bf16.mxu0 0
  %541 = vmatpush2.bf16.msra.mxu0 0
  %542 = vmatprep.subr.bf16.mxu0 0
  %543 = vmatpush2.bf16.msra.mxu0 0
  %544 = vmatprep.subr.bf16.mxu0 0
  %545 = vmatpush2.bf16.msra.mxu0 0
  %546 = vmatprep.mubr.bf16.mxu0 0
  %547 = vmatmul.mubr.bf16.gmra.mxu0 %v145
  %v548 = vpop.f32.mrf.mxu0
  %v549 = vadd.f32 %v94, %v548
  %v550 = vpop.f32.mrf.mxu0
  %v551 = vadd.f32 %v98, %v550
  %v552 = vpop.f32.mrf.mxu0
  %v553 = vadd.f32 %v94, %v552
  %v554 = vpop.f32.mrf.mxu0
  %v555 = vadd.f32 %v98, %v554
  %556 = vmatprep.mubr.bf16.mxu0 0
  %557 = vmatmul.mubr.bf16.gmra.mxu0 %v146
  %v558 = vpop.f32.mrf.mxu0
  %v559 = vadd.f32 %v94, %v558
  %v560 = vpop.f32.mrf.mxu0
  %v561 = vadd.f32 %v98, %v560
  %v562 = vpop.f32.mrf.mxu0
  %v563 = vadd.f32 %v94, %v562
  %v564 = vpop.f32.mrf.mxu0
  %v565 = vadd.f32 %v98, %v564
  %566 = vmatprep.mubr.bf16.mxu0 0
  %567 = vmatmul.mubr.bf16.gmra.mxu0 %v147
  %v568 = vpop.f32.mrf.mxu0
  %v569 = vadd.f32 %v94, %v568
  %v570 = vpop.f32.mrf.mxu0
  %v571 = vadd.f32 %v98, %v570
  %v572 = vpop.f32.mrf.mxu0
  %v573 = vadd.f32 %v94, %v572
  %v574 = vpop.f32.mrf.mxu0
  %v575 = vadd.f32 %v98, %v574
  %576 = vmatprep.mubr.bf16.mxu0 0
  %577 = vmatmul.mubr.bf16.gmra.mxu0 %v148
  %v578 = vpop.f32.mrf.mxu0
  %v579 = vadd.f32 %v94, %v578
  %v580 = vpop.f32.mrf.mxu0
  %v581 = vadd.f32 %v98, %v580
  %v582 = vpop.f32.mrf.mxu0
  %v583 = vadd.f32 %v94, %v582
  %v584 = vpop.f32.mrf.mxu0
  %v585 = vadd.f32 %v98, %v584
  %586 = vmatprep.mubr.bf16.mxu0 0
  %587 = vmatmul.mubr.bf16.gmra.mxu0 %v149
  %v588 = vpop.f32.mrf.mxu0
  %v589 = vadd.f32 %v94, %v588
  %v590 = vpop.f32.mrf.mxu0
  %v591 = vadd.f32 %v98, %v590
  %v592 = vpop.f32.mrf.mxu0
  %v593 = vadd.f32 %v94, %v592
  %v594 = vpop.f32.mrf.mxu0
  %v595 = vadd.f32 %v98, %v594
  %596 = vmatprep.mubr.bf16.mxu0 0
  %597 = vmatmul.mubr.bf16.gmra.mxu0 %v150
  %v598 = vpop.f32.mrf.mxu0
  %v599 = vadd.f32 %v94, %v598
  %v600 = vpop.f32.mrf.mxu0
  %v601 = vadd.f32 %v98, %v600
  %v602 = vpop.f32.mrf.mxu0
  %v603 = vadd.f32 %v94, %v602
  %v604 = vpop.f32.mrf.mxu0
  %v605 = vadd.f32 %v98, %v604
  %606 = vmatprep.mubr.bf16.mxu0 0
  %607 = vmatmul.mubr.bf16.gmra.mxu0 %v151
  %v608 = vpop.f32.mrf.mxu0
  %v609 = vadd.f32 %v94, %v608
  %v610 = vpop.f32.mrf.mxu0
  %v611 = vadd.f32 %v98, %v610
  %v612 = vpop.f32.mrf.mxu0
  %v613 = vadd.f32 %v94, %v612
  %v614 = vpop.f32.mrf.mxu0
  %v615 = vadd.f32 %v98, %v614
  %616 = vmatprep.mubr.bf16.mxu0 0
  %617 = vmatmul.mubr.bf16.gmra.mxu0 %v152
  %v618 = vpop.f32.mrf.mxu0
  %v619 = vadd.f32 %v94, %v618
  %v620 = vpop.f32.mrf.mxu0
  %v621 = vadd.f32 %v98, %v620
  %v622 = vpop.f32.mrf.mxu0
  %v623 = vadd.f32 %v94, %v622
  %v624 = vpop.f32.mrf.mxu0
  %v625 = vadd.f32 %v98, %v624
  %626 = vdwg.mxu0
  %627 = vmatprep.subr.bf16.mxu0 %v352
  %628 = vmatpush1.bf16.msra.mxu0 %v351
  %629 = vmatprep.subr.bf16.mxu0 %v346
  %630 = vmatpush1.bf16.msra.mxu0 %v345
  %631 = vmatprep.subr.bf16.mxu0 %v340
  %632 = vmatpush1.bf16.msra.mxu0 %v339
  %633 = vmatprep.subr.bf16.mxu0 %v334
  %634 = vmatpush1.bf16.msra.mxu0 %v333
  %635 = vmatprep.subr.bf16.mxu0 %v328
  %636 = vmatpush1.bf16.msra.mxu0 %v327
  %637 = vmatprep.subr.bf16.mxu0 %v322
  %638 = vmatpush1.bf16.msra.mxu0 %v321
  %639 = vmatprep.subr.bf16.mxu0 %v316
  %640 = vmatpush1.bf16.msra.mxu0 %v315
  %641 = vmatprep.subr.bf16.mxu0 %v310
  %642 = vmatpush1.bf16.msra.mxu0 %v309
  %643 = vmatprep.subr.bf16.mxu0 0
  %644 = vmatpush2.bf16.msra.mxu0 0
  %645 = vmatprep.subr.bf16.mxu0 0
  %646 = vmatpush2.bf16.msra.mxu0 0
  %647 = vmatprep.subr.bf16.mxu0 0
  %648 = vmatpush2.bf16.msra.mxu0 0
  %649 = vmatprep.subr.bf16.mxu0 0
  %650 = vmatpush2.bf16.msra.mxu0 0
  %651 = vmatprep.subr.bf16.mxu0 0
  %652 = vmatpush2.bf16.msra.mxu0 0
  %653 = vmatprep.subr.bf16.mxu0 0
  %654 = vmatpush2.bf16.msra.mxu0 0
  %655 = vmatprep.subr.bf16.mxu0 0
  %656 = vmatpush2.bf16.msra.mxu0 0
  %657 = vmatprep.subr.bf16.mxu0 0
  %658 = vmatpush2.bf16.msra.mxu0 0
  %659 = vmatprep.mubr.bf16.mxu0 0
  %660 = vmatmul.mubr.bf16.gmra.mxu0 %v145
  %v661 = vpop.f32.mrf.mxu0
  %v662 = vadd.f32 %v102, %v661
  %v663 = vpop.f32.mrf.mxu0
  %v664 = vadd.f32 %v106, %v663
  %v665 = vpop.f32.mrf.mxu0
  %v666 = vadd.f32 %v102, %v665
  %v667 = vpop.f32.mrf.mxu0
  %v668 = vadd.f32 %v106, %v667
  %669 = vmatprep.mubr.bf16.mxu0 0
  %670 = vmatmul.mubr.bf16.gmra.mxu0 %v146
  %v671 = vpop.f32.mrf.mxu0
  %v672 = vadd.f32 %v102, %v671
  %v673 = vpop.f32.mrf.mxu0
  %v674 = vadd.f32 %v106, %v673
  %v675 = vpop.f32.mrf.mxu0
  %v676 = vadd.f32 %v102, %v675
  %v677 = vpop.f32.mrf.mxu0
  %v678 = vadd.f32 %v106, %v677
  %679 = vmatprep.mubr.bf16.mxu0 0
  %680 = vmatmul.mubr.bf16.gmra.mxu0 %v147
  %v681 = vpop.f32.mrf.mxu0
  %v682 = vadd.f32 %v102, %v681
  %v683 = vpop.f32.mrf.mxu0
  %v684 = vadd.f32 %v106, %v683
  %v685 = vpop.f32.mrf.mxu0
  %v686 = vadd.f32 %v102, %v685
  %v687 = vpop.f32.mrf.mxu0
  %v688 = vadd.f32 %v106, %v687
  %689 = vmatprep.mubr.bf16.mxu0 0
  %690 = vmatmul.mubr.bf16.gmra.mxu0 %v148
  %v691 = vpop.f32.mrf.mxu0
  %v692 = vadd.f32 %v102, %v691
  %v693 = vpop.f32.mrf.mxu0
  %v694 = vadd.f32 %v106, %v693
  %v695 = vpop.f32.mrf.mxu0
  %v696 = vadd.f32 %v102, %v695
  %v697 = vpop.f32.mrf.mxu0
  %v698 = vadd.f32 %v106, %v697
  %699 = vmatprep.mubr.bf16.mxu0 0
  %700 = vmatmul.mubr.bf16.gmra.mxu0 %v149
  %v701 = vpop.f32.mrf.mxu0
  %v702 = vadd.f32 %v102, %v701
  %v703 = vpop.f32.mrf.mxu0
  %v704 = vadd.f32 %v106, %v703
  %v705 = vpop.f32.mrf.mxu0
  %v706 = vadd.f32 %v102, %v705
  %v707 = vpop.f32.mrf.mxu0
  %v708 = vadd.f32 %v106, %v707
  %709 = vmatprep.mubr.bf16.mxu0 0
  %710 = vmatmul.mubr.bf16.gmra.mxu0 %v150
  %v711 = vpop.f32.mrf.mxu0
  %v712 = vadd.f32 %v102, %v711
  %v713 = vpop.f32.mrf.mxu0
  %v714 = vadd.f32 %v106, %v713
  %v715 = vpop.f32.mrf.mxu0
  %v716 = vadd.f32 %v102, %v715
  %v717 = vpop.f32.mrf.mxu0
  %v718 = vadd.f32 %v106, %v717
  %719 = vmatprep.mubr.bf16.mxu0 0
  %720 = vmatmul.mubr.bf16.gmra.mxu0 %v151
  %v721 = vpop.f32.mrf.mxu0
  %v722 = vadd.f32 %v102, %v721
  %v723 = vpop.f32.mrf.mxu0
  %v724 = vadd.f32 %v106, %v723
  %v725 = vpop.f32.mrf.mxu0
  %v726 = vadd.f32 %v102, %v725
  %v727 = vpop.f32.mrf.mxu0
  %v728 = vadd.f32 %v106, %v727
  %729 = vmatprep.mubr.bf16.mxu0 0
  %730 = vmatmul.mubr.bf16.gmra.mxu0 %v152
  %v731 = vpop.f32.mrf.mxu0
  %v732 = vadd.f32 %v102, %v731
  %v733 = vpop.f32.mrf.mxu0
  %v734 = vadd.f32 %v106, %v733
  %v735 = vpop.f32.mrf.mxu0
  %v736 = vadd.f32 %v102, %v735
  %v737 = vpop.f32.mrf.mxu0
  %v738 = vadd.f32 %v106, %v737
  %739 = vdwg.mxu0
  %v740 = vpack.c.bf16 %v440, %v436
  %v741 = vpack.c.bf16 %v442, %v438
  %v742 = vpack.c.bf16 %v553, %v549
  %v743 = vpack.c.bf16 %v450, %v446
  %v744 = vpack.c.bf16 %v452, %v448
  %v745 = vpack.c.bf16 %v563, %v559
  %v746 = vpack.c.bf16 %v460, %v456
  %v747 = vpack.c.bf16 %v462, %v458
  %v748 = vpack.c.bf16 %v573, %v569
  %v749 = vpack.c.bf16 %v470, %v466
  %v750 = vpack.c.bf16 %v472, %v468
  %v751 = vpack.c.bf16 %v583, %v579
  %v752 = vpack.c.bf16 %v480, %v476
  %v753 = vpack.c.bf16 %v482, %v478
  %v754 = vpack.c.bf16 %v593, %v589
  %v755 = vpack.c.bf16 %v490, %v486
  %v756 = vpack.c.bf16 %v492, %v488
  %v757 = vpack.c.bf16 %v603, %v599
  %v758 = vpack.c.bf16 %v500, %v496
  %v759 = vpack.c.bf16 %v502, %v498
  %v760 = vpack.c.bf16 %v613, %v609
  %v761 = vpack.c.bf16 %v510, %v506
  %v762 = vpack.c.bf16 %v512, %v508
  %v763 = vpack.c.bf16 %v623, %v619
  %v788 = vunpack.c.l.b16 %v740
  %v789 = vunpack.c.l.b16 %v741
  %v790 = vunpack.c.l.b16 %v742
  %v791 = vunpack.c.h.b16 %v740
  %v792 = vunpack.c.h.b16 %v741
  %v793 = vunpack.c.h.b16 %v742
  %v794 = vunpack.c.l.b16 %v743
  %v795 = vunpack.c.l.b16 %v744
  %v796 = vunpack.c.l.b16 %v745
  %v797 = vunpack.c.h.b16 %v743
  %v798 = vunpack.c.h.b16 %v744
  %v799 = vunpack.c.h.b16 %v745
  %v800 = vunpack.c.l.b16 %v746
  %v801 = vunpack.c.l.b16 %v747
  %v802 = vunpack.c.l.b16 %v748
  %v803 = vunpack.c.h.b16 %v746
  %v804 = vunpack.c.h.b16 %v747
  %v805 = vunpack.c.h.b16 %v748
  %v806 = vunpack.c.l.b16 %v749
  %v807 = vunpack.c.l.b16 %v750
  %v808 = vunpack.c.l.b16 %v751
  %v809 = vunpack.c.h.b16 %v749
  %v810 = vunpack.c.h.b16 %v750
  %v811 = vunpack.c.h.b16 %v751
  %v812 = vunpack.c.l.b16 %v752
  %v813 = vunpack.c.l.b16 %v753
  %v814 = vunpack.c.l.b16 %v754
  %v815 = vunpack.c.h.b16 %v752
  %v816 = vunpack.c.h.b16 %v753
  %v817 = vunpack.c.h.b16 %v754
  %v818 = vunpack.c.l.b16 %v755
  %v819 = vunpack.c.l.b16 %v756
  %v820 = vunpack.c.l.b16 %v757
  %v821 = vunpack.c.h.b16 %v755
  %v822 = vunpack.c.h.b16 %v756
  %v823 = vunpack.c.h.b16 %v757
  %v824 = vunpack.c.l.b16 %v758
  %v825 = vunpack.c.l.b16 %v759
  %v826 = vunpack.c.l.b16 %v760
  %v827 = vunpack.c.h.b16 %v758
  %v828 = vunpack.c.h.b16 %v759
  %v829 = vunpack.c.h.b16 %v760
  %v830 = vunpack.c.l.b16 %v761
  %v831 = vunpack.c.l.b16 %v762
  %v832 = vunpack.c.l.b16 %v763
  %v833 = vunpack.c.h.b16 %v761
  %v834 = vunpack.c.h.b16 %v762
  %v835 = vunpack.c.h.b16 %v763
  %v836 = vpack.c.b16 %v789, %v788
  %v837 = vpack.c.b16 %v790, %v790
  %v838 = vpack.c.b16 %v792, %v791
  %v839 = vpack.c.b16 %v793, %v793
  %v840 = vpack.c.b16 %v795, %v794
  %v841 = vpack.c.b16 %v796, %v796
  %v842 = vpack.c.b16 %v798, %v797
  %v843 = vpack.c.b16 %v799, %v799
  %v844 = vpack.c.b16 %v801, %v800
  %v845 = vpack.c.b16 %v802, %v802
  %v846 = vpack.c.b16 %v804, %v803
  %v847 = vpack.c.b16 %v805, %v805
  %v848 = vpack.c.b16 %v807, %v806
  %v849 = vpack.c.b16 %v808, %v808
  %v850 = vpack.c.b16 %v810, %v809
  %v851 = vpack.c.b16 %v811, %v811
  %v852 = vpack.c.b16 %v813, %v812
  %v853 = vpack.c.b16 %v814, %v814
  %v854 = vpack.c.b16 %v816, %v815
  %v855 = vpack.c.b16 %v817, %v817
  %v856 = vpack.c.b16 %v819, %v818
  %v857 = vpack.c.b16 %v820, %v820
  %v858 = vpack.c.b16 %v822, %v821
  %v859 = vpack.c.b16 %v823, %v823
  %v860 = vpack.c.b16 %v825, %v824
  %v861 = vpack.c.b16 %v826, %v826
  %v862 = vpack.c.b16 %v828, %v827
  %v863 = vpack.c.b16 %v829, %v829
  %v864 = vpack.c.b16 %v831, %v830
  %v865 = vpack.c.b16 %v832, %v832
  %v866 = vpack.c.b16 %v834, %v833
  %v867 = vpack.c.b16 %v835, %v835
  %900 = vst [vmem:[%s3] sm:$0xff] %v836
  %901 = vst [vmem:[%s3 + $0x8] sm:$0xf] %v837
  %902 = vst [vmem:[%s3 + $0xc] sm:$0xff] %v838
  %903 = vst [vmem:[%s3 + $0x14] sm:$0xf] %v839
  %904 = vst [vmem:[%s3 + $0x18] sm:$0xff] %v840
  %905 = vst [vmem:[%s3 + $0x20] sm:$0xf] %v841
  %906 = vst [vmem:[%s3 + $0x24] sm:$0xff] %v842
  %907 = vst [vmem:[%s3 + $0x2c] sm:$0xf] %v843
  %908 = vst [vmem:[%s3 + $0x30] sm:$0xff] %v844
  %909 = vst [vmem:[%s3 + $0x38] sm:$0xf] %v845
  %910 = vst [vmem:[%s3 + $0x3c] sm:$0xff] %v846
  %911 = vst [vmem:[%s3 + $0x44] sm:$0xf] %v847
  %912 = vst [vmem:[%s3 + $0x48] sm:$0xff] %v848
  %913 = vst [vmem:[%s3 + $0x50] sm:$0xf] %v849
  %914 = vst [vmem:[%s3 + $0x54] sm:$0xff] %v850
  %915 = vst [vmem:[%s3 + $0x5c] sm:$0xf] %v851
  %916 = vst [vmem:[%s3 + $0x60] sm:$0xff] %v852
  %917 = vst [vmem:[%s3 + $0x68] sm:$0xf] %v853
  %918 = vst [vmem:[%s3 + $0x6c] sm:$0xff] %v854
  %919 = vst [vmem:[%s3 + $0x74] sm:$0xf] %v855
  %920 = vst [vmem:[%s3 + $0x78] sm:$0xff] %v856
  %921 = vst [vmem:[%s3 + $0x80] sm:$0xf] %v857
  %922 = vst [vmem:[%s3 + $0x84] sm:$0xff] %v858
  %923 = vst [vmem:[%s3 + $0x8c] sm:$0xf] %v859
  %924 = vst [vmem:[%s3 + $0x90] sm:$0xff] %v860
  %925 = vst [vmem:[%s3 + $0x98] sm:$0xf] %v861
  %926 = vst [vmem:[%s3 + $0x9c] sm:$0xff] %v862
  %927 = vst [vmem:[%s3 + $0xa4] sm:$0xf] %v863
  %928 = vst [vmem:[%s3 + $0xa8] sm:$0xff] %v864
  %929 = vst [vmem:[%s3 + $0xb0] sm:$0xf] %v865
  %930 = vst [vmem:[%s3 + $0xb4] sm:$0xff] %v866
  %931 = vst [vmem:[%s3 + $0xbc] sm:$0xf] %v867
  %v932 = vpack.c.bf16 %v555, %v551
  %v933 = vpack.c.bf16 %v666, %v662
  %v934 = vpack.c.bf16 %v668, %v664
  %v935 = vpack.c.bf16 %v565, %v561
  %v936 = vpack.c.bf16 %v676, %v672
  %v937 = vpack.c.bf16 %v678, %v674
  %v938 = vpack.c.bf16 %v575, %v571
  %v939 = vpack.c.bf16 %v686, %v682
  %v940 = vpack.c.bf16 %v688, %v684
  %v941 = vpack.c.bf16 %v585, %v581
  %v942 = vpack.c.bf16 %v696, %v692
  %v943 = vpack.c.bf16 %v698, %v694
  %v944 = vpack.c.bf16 %v595, %v591
  %v945 = vpack.c.bf16 %v706, %v702
  %v946 = vpack.c.bf16 %v708, %v704
  %v947 = vpack.c.bf16 %v605, %v601
  %v948 = vpack.c.bf16 %v716, %v712
  %v949 = vpack.c.bf16 %v718, %v714
  %v950 = vpack.c.bf16 %v615, %v611
  %v951 = vpack.c.bf16 %v726, %v722
  %v952 = vpack.c.bf16 %v728, %v724
  %v953 = vpack.c.bf16 %v625, %v621
  %v954 = vpack.c.bf16 %v736, %v732
  %v955 = vpack.c.bf16 %v738, %v734
  %v980 = vunpack.c.l.b16 %v932
  %v981 = vunpack.c.l.b16 %v933
  %v982 = vunpack.c.l.b16 %v934
  %v983 = vunpack.c.h.b16 %v932
  %v984 = vunpack.c.h.b16 %v933
  %v985 = vunpack.c.h.b16 %v934
  %v986 = vunpack.c.l.b16 %v935
  %v987 = vunpack.c.l.b16 %v936
  %v988 = vunpack.c.l.b16 %v937
  %v989 = vunpack.c.h.b16 %v935
  %v990 = vunpack.c.h.b16 %v936
  %v991 = vunpack.c.h.b16 %v937
  %v992 = vunpack.c.l.b16 %v938
  %v993 = vunpack.c.l.b16 %v939
  %v994 = vunpack.c.l.b16 %v940
  %v995 = vunpack.c.h.b16 %v938
  %v996 = vunpack.c.h.b16 %v939
  %v997 = vunpack.c.h.b16 %v940
  %v998 = vunpack.c.l.b16 %v941
  %v999 = vunpack.c.l.b16 %v942
  %v1000 = vunpack.c.l.b16 %v943
  %v1001 = vunpack.c.h.b16 %v941
  %v1002 = vunpack.c.h.b16 %v942
  %v1003 = vunpack.c.h.b16 %v943
  %v1004 = vunpack.c.l.b16 %v944
  %v1005 = vunpack.c.l.b16 %v945
  %v1006 = vunpack.c.l.b16 %v946
  %v1007 = vunpack.c.h.b16 %v944
  %v1008 = vunpack.c.h.b16 %v945
  %v1009 = vunpack.c.h.b16 %v946
  %v1010 = vunpack.c.l.b16 %v947
  %v1011 = vunpack.c.l.b16 %v948
  %v1012 = vunpack.c.l.b16 %v949
  %v1013 = vunpack.c.h.b16 %v947
  %v1014 = vunpack.c.h.b16 %v948
  %v1015 = vunpack.c.h.b16 %v949
  %v1016 = vunpack.c.l.b16 %v950
  %v1017 = vunpack.c.l.b16 %v951
  %v1018 = vunpack.c.l.b16 %v952
  %v1019 = vunpack.c.h.b16 %v950
  %v1020 = vunpack.c.h.b16 %v951
  %v1021 = vunpack.c.h.b16 %v952
  %v1022 = vunpack.c.l.b16 %v953
  %v1023 = vunpack.c.l.b16 %v954
  %v1024 = vunpack.c.l.b16 %v955
  %v1025 = vunpack.c.h.b16 %v953
  %v1026 = vunpack.c.h.b16 %v954
  %v1027 = vunpack.c.h.b16 %v955
  %v1028 = vpack.c.b16 %v981, %v980
  %v1029 = vpack.c.b16 %v982, %v982
  %v1030 = vpack.c.b16 %v984, %v983
  %v1031 = vpack.c.b16 %v985, %v985
  %v1032 = vpack.c.b16 %v987, %v986
  %v1033 = vpack.c.b16 %v988, %v988
  %v1034 = vpack.c.b16 %v990, %v989
  %v1035 = vpack.c.b16 %v991, %v991
  %v1036 = vpack.c.b16 %v993, %v992
  %v1037 = vpack.c.b16 %v994, %v994
  %v1038 = vpack.c.b16 %v996, %v995
  %v1039 = vpack.c.b16 %v997, %v997
  %v1040 = vpack.c.b16 %v999, %v998
  %v1041 = vpack.c.b16 %v1000, %v1000
  %v1042 = vpack.c.b16 %v1002, %v1001
  %v1043 = vpack.c.b16 %v1003, %v1003
  %v1044 = vpack.c.b16 %v1005, %v1004
  %v1045 = vpack.c.b16 %v1006, %v1006
  %v1046 = vpack.c.b16 %v1008, %v1007
  %v1047 = vpack.c.b16 %v1009, %v1009
  %v1048 = vpack.c.b16 %v1011, %v1010
  %v1049 = vpack.c.b16 %v1012, %v1012
  %v1050 = vpack.c.b16 %v1014, %v1013
  %v1051 = vpack.c.b16 %v1015, %v1015
  %v1052 = vpack.c.b16 %v1017, %v1016
  %v1053 = vpack.c.b16 %v1018, %v1018
  %v1054 = vpack.c.b16 %v1020, %v1019
  %v1055 = vpack.c.b16 %v1021, %v1021
  %v1056 = vpack.c.b16 %v1023, %v1022
  %v1057 = vpack.c.b16 %v1024, %v1024
  %v1058 = vpack.c.b16 %v1026, %v1025
  %v1059 = vpack.c.b16 %v1027, %v1027
  %1092 = vst [vmem:[%s4] sm:$0xff] %v1028
  %1093 = vst [vmem:[%s4 + $0x8] sm:$0xf] %v1029
  %1094 = vst [vmem:[%s4 + $0xc] sm:$0xff] %v1030
  %1095 = vst [vmem:[%s4 + $0x14] sm:$0xf] %v1031
  %1096 = vst [vmem:[%s4 + $0x18] sm:$0xff] %v1032
  %1097 = vst [vmem:[%s4 + $0x20] sm:$0xf] %v1033
  %1098 = vst [vmem:[%s4 + $0x24] sm:$0xff] %v1034
  %1099 = vst [vmem:[%s4 + $0x2c] sm:$0xf] %v1035
  %1100 = vst [vmem:[%s4 + $0x30] sm:$0xff] %v1036
  %1101 = vst [vmem:[%s4 + $0x38] sm:$0xf] %v1037
  %1102 = vst [vmem:[%s4 + $0x3c] sm:$0xff] %v1038
  %1103 = vst [vmem:[%s4 + $0x44] sm:$0xf] %v1039
  %1104 = vst [vmem:[%s4 + $0x48] sm:$0xff] %v1040
  %1105 = vst [vmem:[%s4 + $0x50] sm:$0xf] %v1041
  %1106 = vst [vmem:[%s4 + $0x54] sm:$0xff] %v1042
  %1107 = vst [vmem:[%s4 + $0x5c] sm:$0xf] %v1043
  %1108 = vst [vmem:[%s4 + $0x60] sm:$0xff] %v1044
  %1109 = vst [vmem:[%s4 + $0x68] sm:$0xf] %v1045
  %1110 = vst [vmem:[%s4 + $0x6c] sm:$0xff] %v1046
  %1111 = vst [vmem:[%s4 + $0x74] sm:$0xf] %v1047
  %1112 = vst [vmem:[%s4 + $0x78] sm:$0xff] %v1048
  %1113 = vst [vmem:[%s4 + $0x80] sm:$0xf] %v1049
  %1114 = vst [vmem:[%s4 + $0x84] sm:$0xff] %v1050
  %1115 = vst [vmem:[%s4 + $0x8c] sm:$0xf] %v1051
  %1116 = vst [vmem:[%s4 + $0x90] sm:$0xff] %v1052
  %1117 = vst [vmem:[%s4 + $0x98] sm:$0xf] %v1053
  %1118 = vst [vmem:[%s4 + $0x9c] sm:$0xff] %v1054
  %1119 = vst [vmem:[%s4 + $0xa4] sm:$0xf] %v1055
  %1120 = vst [vmem:[%s4 + $0xa8] sm:$0xff] %v1056
  %1121 = vst [vmem:[%s4 + $0xb0] sm:$0xf] %v1057
  %1122 = vst [vmem:[%s4 + $0xb4] sm:$0xff] %v1058
  %1123 = vst [vmem:[%s4 + $0xbc] sm:$0xf] %v1059
  // Predicated region
  $region14: #{encoder_rnn_forward.2} parent=0 // pred_check
    _
  $region15: #{encoder_rnn_forward.2} parent=0 // pred_check_branch
    %1125 = sbr.rel (0) target = $region17
  $region16: #{encoder_rnn_forward.2} parent=0 // pred_region
    _
  $region17: #{encoder_rnn_forward.2} parent=0 // pred_fallthru
    _
  // Predicated region
  $region18: #{encoder_rnn_forward.2} parent=0 // pred_check
    _
  $region19: #{encoder_rnn_forward.2} parent=0 // pred_check_branch
    %1127 = sbr.rel (0) target = $region21
  $region20: #{encoder_rnn_forward.2} parent=0 // pred_region
    _
  $region21: #{encoder_rnn_forward.2} parent=0 // pred_fallthru
    _
  // Predicated region
  $region22: #{encoder_rnn_forward.2} parent=0 // pred_check
    _
  $region23: #{encoder_rnn_forward.2} parent=0 // pred_check_branch
    %1129 = sbr.rel (0) target = $region25
  $region24: #{encoder_rnn_forward.2} parent=0 // pred_region
    _
  $region25: #{encoder_rnn_forward.2} parent=0 // pred_fallthru
    _
  // Predicated region
  $region26: #{encoder_rnn_forward.2} parent=0 // pred_check
    _
  $region27: #{encoder_rnn_forward.2} parent=0 // pred_check_branch
    %1131 = sbr.rel (0) target = $region29
  $region28: #{encoder_rnn_forward.2} parent=0 // pred_region
    _
  $region29: #{encoder_rnn_forward.2} parent=0 // pred_fallthru
    _

// kernel: encoder_rnn_forward.3
$region0: #{encoder_rnn_forward.3}
  #allocation0 [shape = 'u32[]', space=smem, size = 0x4, offset = 0x4, fixed_abs, tag = 'smem constant byte address 0x4 - core index']
  #allocation1 [shape = 'u32[144,128]{1,0:T(1,128)}', space=vmem, size = 0x12000, scoped, tag = 'internal scratch']
  #allocation2 [shape = 'f32[2,16,128]{2,1,0:T(8,128)}', space=vmem, size = 0x4000, scoped, tag = 'scratch operand']
  %s0 = inlined_call_operand.vmem [shape: bf16[8,16,384], index: 0, kind: input, shape index: {}]
  %s1 = inlined_call_operand.vmem [shape: bf16[8,16,384], index: 1, kind: input, shape index: {}]
  %s2 = inlined_call_operand.vmem [shape: bf16[2,128,384], index: 2, kind: input, shape index: {}]
  %s3 = inlined_call_operand.vmem [shape: f32[2,1,384], index: 3, kind: input, shape index: {}]
  %s4 = inlined_call_operand.vmem [shape: s32[16,1], index: 4, kind: input, shape index: {}]
  %s5 = inlined_call_operand.vmem [shape: f32[8,16,128], index: 5, kind: output, shape index: {0}]
  %s6 = inlined_call_operand.vmem [shape: f32[8,16,128], index: 6, kind: output, shape index: {1}]
  %s7 = inlined_call_operand.vmem [shape: f32[2,16,128], index: 7, kind: output, shape index: {2}]
  %8 = xla_tuple %s5, %s6, %s7
  %s9 = sld [smem:[#allocation0]]
  $region77: #{encoder_rnn_forward.3} parent=0
    _
  %s11 = ssub.s32 1, %s9
  %s12 = scalar_select 0, %s11, %s9
  loop: start=0, step=1, limit=4
  $region2: #{encoder_rnn_forward.3} parent=0 // loop_pre_header
    _
  $region3: #{encoder_rnn_forward.3} parent=0 // loop_header
    %s14 = sphi 0, %s18
    %p15 = scmp.ge.s32.totalorder %s14, 4
    %s24 = sphi 0, %s26
    %s27 = sphi 0, %s24
    %s28 = sphi 0, %s27
    %s44 = sphi 0, %s28
    %s52 = sphi 0, %s54
    %s55 = sphi 0, %s52
    %s56 = sphi 0, %s55
    %s72 = sphi 0, %s56
    %s76 = sphi 0, %s76
    %s78 = sphi 0, %s76
    %s79 = sphi 0, %s78
    %s93 = sphi 0, %s79
    %s97 = sphi 0, %s97
    %s99 = sphi 0, %s97
    %s100 = sphi 0, %s99
    %s114 = sphi 0, %s100
    %s118 = sphi 0, %s118
    %s120 = sphi 0, %s118
    %s121 = sphi 0, %s120
    %s135 = sphi 0, %s121
    %s141 = sphi 0, %s143
    %s144 = sphi 0, %s141
    %s145 = sphi 0, %s144
    %s161 = sphi 0, %s145
    %s169 = sphi 0, %s171
    %s172 = sphi 0, %s169
    %s173 = sphi 0, %s172
    %s189 = sphi 0, %s173
    %s193 = sphi 0, %s193
    %s195 = sphi 0, %s193
    %s196 = sphi 0, %s195
    %s210 = sphi 0, %s196
  $region4: #{encoder_rnn_forward.3} parent=0 // loop_header_branch
    %17 = sbr.rel (%p15) target = $region8
  $region5: #{encoder_rnn_forward.3} parent=0 // loop_body
    %s19 = ssub.s32 %s14, 1
    %s20 = ssub.s32 %s14, 2
    %s21 = sadd.s32 %s14, 1
    %s22 = ssub.s32 %s14, %s21
    %p23 = scmp.eq.s32.totalorder %s22, 0
    %s25 = sadd.s32 %s24, 1
    %s26 = scalar_select %p23, %s24, %s25
    %p29 = pneg %p23
    %p30 = scmp.eq.s32.totalorder %s14, 1
    %p31 = por %p29, %p30
    %p32 = scmp.ne.s32.totalorder %s24, %s27
    %p33 = scmp.eq.s32.totalorder %s14, 0
    %p34 = por %p32, %p33
    %p35 = scmp.ne.s32.totalorder %s24, %s27
    %p36 = scmp.eq.s32.totalorder %s19, 1
    %p37 = por %p35, %p36
    %p38 = scmp.ne.s32.totalorder %s27, %s28
    %p39 = scmp.eq.s32.totalorder %s19, 0
    %p40 = por %p38, %p39
    %p41 = scmp.ne.s32.totalorder %s27, %s28
    %p42 = scmp.eq.s32.totalorder %s20, 1
    %p43 = por %p41, %p42
    %p45 = scmp.ne.s32.totalorder %s28, %s44
    %p46 = scmp.eq.s32.totalorder %s20, 0
    %p47 = por %p45, %p46
    %s48 = ssub.s32 1, %s14
    %s49 = ssub.s32 1, %s21
    %s50 = ssub.s32 %s48, %s49
    %p51 = scmp.eq.s32.totalorder %s50, 0
    %s53 = sadd.s32 %s52, 1
    %s54 = scalar_select %p51, %s52, %s53
    %p57 = pneg %p51
    %p58 = scmp.eq.s32.totalorder %s14, 1
    %p59 = por %p57, %p58
    %p60 = scmp.ne.s32.totalorder %s52, %s55
    %p61 = scmp.eq.s32.totalorder %s14, 0
    %p62 = por %p60, %p61
    %p63 = scmp.ne.s32.totalorder %s52, %s55
    %p64 = scmp.eq.s32.totalorder %s19, 1
    %p65 = por %p63, %p64
    %p66 = scmp.ne.s32.totalorder %s55, %s56
    %p67 = scmp.eq.s32.totalorder %s19, 0
    %p68 = por %p66, %p67
    %p69 = scmp.ne.s32.totalorder %s55, %s56
    %p70 = scmp.eq.s32.totalorder %s20, 1
    %p71 = por %p69, %p70
    %p73 = scmp.ne.s32.totalorder %s56, %s72
    %p74 = scmp.eq.s32.totalorder %s20, 0
    %p75 = por %p73, %p74
    %s77 = sadd.s32 %s76, 1
    %p80 = scmp.eq.s32.totalorder %s14, 1
    %p81 = scmp.ne.s32.totalorder %s76, %s78
    %p82 = scmp.eq.s32.totalorder %s14, 0
    %p83 = por %p81, %p82
    %p84 = scmp.ne.s32.totalorder %s76, %s78
    %p85 = scmp.eq.s32.totalorder %s19, 1
    %p86 = por %p84, %p85
    %p87 = scmp.ne.s32.totalorder %s78, %s79
    %p88 = scmp.eq.s32.totalorder %s19, 0
    %p89 = por %p87, %p88
    %p90 = scmp.ne.s32.totalorder %s78, %s79
    %p91 = scmp.eq.s32.totalorder %s20, 1
    %p92 = por %p90, %p91
    %p94 = scmp.ne.s32.totalorder %s79, %s93
    %p95 = scmp.eq.s32.totalorder %s20, 0
    %p96 = por %p94, %p95
    %s98 = sadd.s32 %s97, 1
    %p101 = scmp.eq.s32.totalorder %s14, 1
    %p102 = scmp.ne.s32.totalorder %s97, %s99
    %p103 = scmp.eq.s32.totalorder %s14, 0
    %p104 = por %p102, %p103
    %p105 = scmp.ne.s32.totalorder %s97, %s99
    %p106 = scmp.eq.s32.totalorder %s19, 1
    %p107 = por %p105, %p106
    %p108 = scmp.ne.s32.totalorder %s99, %s100
    %p109 = scmp.eq.s32.totalorder %s19, 0
    %p110 = por %p108, %p109
    %p111 = scmp.ne.s32.totalorder %s99, %s100
    %p112 = scmp.eq.s32.totalorder %s20, 1
    %p113 = por %p111, %p112
    %p115 = scmp.ne.s32.totalorder %s100, %s114
    %p116 = scmp.eq.s32.totalorder %s20, 0
    %p117 = por %p115, %p116
    %s119 = sadd.s32 %s118, 1
    %p122 = scmp.eq.s32.totalorder %s14, 1
    %p123 = scmp.ne.s32.totalorder %s118, %s120
    %p124 = scmp.eq.s32.totalorder %s14, 0
    %p125 = por %p123, %p124
    %p126 = scmp.ne.s32.totalorder %s118, %s120
    %p127 = scmp.eq.s32.totalorder %s19, 1
    %p128 = por %p126, %p127
    %p129 = scmp.ne.s32.totalorder %s120, %s121
    %p130 = scmp.eq.s32.totalorder %s19, 0
    %p131 = por %p129, %p130
    %p132 = scmp.ne.s32.totalorder %s120, %s121
    %p133 = scmp.eq.s32.totalorder %s20, 1
    %p134 = por %p132, %p133
    %p136 = scmp.ne.s32.totalorder %s121, %s135
    %p137 = scmp.eq.s32.totalorder %s20, 0
    %p138 = por %p136, %p137
    %s139 = ssub.s32 %s14, %s21
    %p140 = scmp.eq.s32.totalorder %s139, 0
    %s142 = sadd.s32 %s141, 1
    %s143 = scalar_select %p140, %s141, %s142
    %p146 = pneg %p140
    %p147 = scmp.eq.s32.totalorder %s14, 1
    %p148 = por %p146, %p147
    %p149 = scmp.ne.s32.totalorder %s141, %s144
    %p150 = scmp.eq.s32.totalorder %s14, 0
    %p151 = por %p149, %p150
    %p152 = scmp.ne.s32.totalorder %s141, %s144
    %p153 = scmp.eq.s32.totalorder %s19, 1
    %p154 = por %p152, %p153
    %p155 = scmp.ne.s32.totalorder %s144, %s145
    %p156 = scmp.eq.s32.totalorder %s19, 0
    %p157 = por %p155, %p156
    %p158 = scmp.ne.s32.totalorder %s144, %s145
    %p159 = scmp.eq.s32.totalorder %s20, 1
    %p160 = por %p158, %p159
    %p162 = scmp.ne.s32.totalorder %s145, %s161
    %p163 = scmp.eq.s32.totalorder %s20, 0
    %p164 = por %p162, %p163
    %s165 = ssub.s32 1, %s14
    %s166 = ssub.s32 1, %s21
    %s167 = ssub.s32 %s165, %s166
    %p168 = scmp.eq.s32.totalorder %s167, 0
    %s170 = sadd.s32 %s169, 1
    %s171 = scalar_select %p168, %s169, %s170
    %p174 = pneg %p168
    %p175 = scmp.eq.s32.totalorder %s14, 1
    %p176 = por %p174, %p175
    %p177 = scmp.ne.s32.totalorder %s169, %s172
    %p178 = scmp.eq.s32.totalorder %s14, 0
    %p179 = por %p177, %p178
    %p180 = scmp.ne.s32.totalorder %s169, %s172
    %p181 = scmp.eq.s32.totalorder %s19, 1
    %p182 = por %p180, %p181
    %p183 = scmp.ne.s32.totalorder %s172, %s173
    %p184 = scmp.eq.s32.totalorder %s19, 0
    %p185 = por %p183, %p184
    %p186 = scmp.ne.s32.totalorder %s172, %s173
    %p187 = scmp.eq.s32.totalorder %s20, 1
    %p188 = por %p186, %p187
    %p190 = scmp.ne.s32.totalorder %s173, %s189
    %p191 = scmp.eq.s32.totalorder %s20, 0
    %p192 = por %p190, %p191
    %s194 = sadd.s32 %s193, 1
    %p197 = scmp.eq.s32.totalorder %s14, 1
    %p198 = scmp.ne.s32.totalorder %s193, %s195
    %p199 = scmp.eq.s32.totalorder %s14, 0
    %p200 = por %p198, %p199
    %p201 = scmp.ne.s32.totalorder %s193, %s195
    %p202 = scmp.eq.s32.totalorder %s19, 1
    %p203 = por %p201, %p202
    %p204 = scmp.ne.s32.totalorder %s195, %s196
    %p205 = scmp.eq.s32.totalorder %s19, 0
    %p206 = por %p204, %p205
    %p207 = scmp.ne.s32.totalorder %s195, %s196
    %p208 = scmp.eq.s32.totalorder %s20, 1
    %p209 = por %p207, %p208
    %p211 = scmp.ne.s32.totalorder %s196, %s210
    %p212 = scmp.eq.s32.totalorder %s20, 0
    %p213 = por %p211, %p212
    %p214 = scmp.le.s32.totalorder 1, %s14
    %p215 = scmp.lt.s32.totalorder %s14, 3
    %p216 = pnand %p214, %p215
    %p217 = pneg %p216
    // Predicated region
    $region9: #{encoder_rnn_forward.3} parent=5 // pred_check
      _
    $region10: #{encoder_rnn_forward.3} parent=5 // pred_check_branch
      %219 = sbr.rel (%p216) target = $region12
    $region11: #{encoder_rnn_forward.3} parent=5 // pred_region
      %s220 = ssub.s32 %s14, 1
      // Predicated region
      $region13: #{encoder_rnn_forward.3} parent=11 // pred_check
        %p221 = pneg %p89
      $region14: #{encoder_rnn_forward.3} parent=11 // pred_check_branch
        %223 = sbr.rel (%p221) target = $region16
      $region15: #{encoder_rnn_forward.3} parent=11 // pred_region
        _
      $region16: #{encoder_rnn_forward.3} parent=11 // pred_fallthru
        _
      // Predicated region
      $region17: #{encoder_rnn_forward.3} parent=11 // pred_check
        %p224 = pneg %p110
      $region18: #{encoder_rnn_forward.3} parent=11 // pred_check_branch
        %226 = sbr.rel (%p224) target = $region20
      $region19: #{encoder_rnn_forward.3} parent=11 // pred_region
        _
      $region20: #{encoder_rnn_forward.3} parent=11 // pred_fallthru
        _
      // Predicated region
      $region21: #{encoder_rnn_forward.3} parent=11 // pred_check
        %p227 = pneg %p131
      $region22: #{encoder_rnn_forward.3} parent=11 // pred_check_branch
        %229 = sbr.rel (%p227) target = $region24
      $region23: #{encoder_rnn_forward.3} parent=11 // pred_region
        _
      $region24: #{encoder_rnn_forward.3} parent=11 // pred_fallthru
        _
    $region12: #{encoder_rnn_forward.3} parent=5 // pred_fallthru
      _
    %p230 = scmp.lt.s32.totalorder %s14, 2
    // Predicated region
    $region25: #{encoder_rnn_forward.3} parent=5 // pred_check
      %p231 = pneg %p230
    $region26: #{encoder_rnn_forward.3} parent=5 // pred_check_branch
      %233 = sbr.rel (%p231) target = $region28
    $region27: #{encoder_rnn_forward.3} parent=5 // pred_region
      // Predicated region
      $region29: #{encoder_rnn_forward.3} parent=27 // pred_check
        %p234 = pneg %p34
      $region30: #{encoder_rnn_forward.3} parent=27 // pred_check_branch
        %236 = sbr.rel (%p234) target = $region32
      $region31: #{encoder_rnn_forward.3} parent=27 // pred_region
        %s237 = smul.u32 4, %s14
        %p238 = scmp.lt.s32.totalorder %s237, 7
        %s239 = scalar_select %p238, %s237, 7
        %s240 = smul.addr %s239, 6
        %s241 = smul.addr %s240, 4
        %s242 = scalar_lea.vmem %s0, %s241
        %s243 = smul.u32 4, %s14
      $region32: #{encoder_rnn_forward.3} parent=27 // pred_fallthru
        _
      // Predicated region
      $region33: #{encoder_rnn_forward.3} parent=27 // pred_check
        %p244 = pneg %p62
      $region34: #{encoder_rnn_forward.3} parent=27 // pred_check_branch
        %246 = sbr.rel (%p244) target = $region36
      $region35: #{encoder_rnn_forward.3} parent=27 // pred_region
        %s247 = ssub.s32 1, %s14
        %s248 = smul.u32 4, %s247
        %p249 = scmp.lt.s32.totalorder %s248, 7
        %s250 = scalar_select %p249, %s248, 7
        %s251 = smul.addr %s250, 6
        %s252 = smul.addr %s251, 4
        %s253 = scalar_lea.vmem %s1, %s252
        %s254 = ssub.s32 1, %s14
        %s255 = smul.u32 4, %s254
      $region36: #{encoder_rnn_forward.3} parent=27 // pred_fallthru
        _
    $region28: #{encoder_rnn_forward.3} parent=5 // pred_fallthru
      _
    %p256 = scmp.le.s32.totalorder 1, %s14
    %p257 = scmp.lt.s32.totalorder %s14, 3
    %p258 = pnand %p256, %p257
    %p259 = pneg %p258
    // Predicated region
    $region37: #{encoder_rnn_forward.3} parent=5 // pred_check
      _
    $region38: #{encoder_rnn_forward.3} parent=5 // pred_check_branch
      %261 = sbr.rel (%p258) target = $region40
    $region39: #{encoder_rnn_forward.3} parent=5 // pred_region
      %s262 = ssub.s32 %s14, 1
      %s263 = smul.u32 4, %s19
      %p264 = scmp.lt.s32.totalorder %s263, 7
      %s265 = scalar_select %p264, %s263, 7
      %s266 = smul.addr %s265, 6
      %s267 = smul.addr %s266, 4
      %s268 = scalar_lea.vmem %s0, %s267
      %p269 = pneg %p40
      %p270 = pneg %p37
      %s271 = ssub.s32 1, %s19
      %s272 = smul.u32 4, %s271
      %p273 = scmp.lt.s32.totalorder %s272, 7
      %s274 = scalar_select %p273, %s272, 7
      %s275 = smul.addr %s274, 6
      %s276 = smul.addr %s275, 4
      %s277 = scalar_lea.vmem %s1, %s276
      %p278 = pneg %p68
      %p279 = pneg %p65
      %p280 = pneg %p89
      %p281 = pneg %p86
      %p282 = pneg %p110
      %p283 = pneg %p107
      %p284 = pneg %p131
      %p285 = pneg %p128
      %p286 = pneg %p157
      %p287 = pneg %p154
      %s288 = smul.u32 4, %s19
      %p289 = scmp.lt.s32.totalorder %s288, 7
      %s290 = scalar_select %p289, %s288, 7
      %s291 = smul.addr %s290, 2
      %s292 = smul.addr %s291, 8
      %s293 = scalar_lea.vmem %s5, %s292
      %p294 = pneg %p185
      %p295 = pneg %p182
      %s296 = ssub.s32 1, %s19
      %s297 = smul.u32 4, %s296
      %p298 = scmp.lt.s32.totalorder %s297, 7
      %s299 = scalar_select %p298, %s297, 7
      %s300 = smul.addr %s299, 2
      %s301 = smul.addr %s300, 8
      %s302 = scalar_lea.vmem %s6, %s301
      %p303 = pneg %p206
      %p304 = pneg %p203
      %s305 = smul.u32 4, %s19
      %p306 = scmp.lt.s32.totalorder %s305, 7
      %s307 = scalar_select %p306, %s305, 7
      %s308 = smul.addr %s307, 6
      %s309 = smul.addr %s308, 4
      %s310 = scalar_lea.vmem %s0, %s309
      %s311 = smul.u32 4, %s19
      %s312 = ssub.s32 1, %s19
      %s313 = smul.u32 4, %s312
      %p314 = scmp.lt.s32.totalorder %s313, 7
      %s315 = scalar_select %p314, %s313, 7
      %s316 = smul.addr %s315, 6
      %s317 = smul.addr %s316, 4
      %s318 = scalar_lea.vmem %s1, %s317
      %s319 = ssub.s32 1, %s19
      %s320 = smul.u32 4, %s319
      %s321 = smul.u32 4, %s19
      %p322 = scmp.lt.s32.totalorder %s321, 7
      %s323 = scalar_select %p322, %s321, 7
      %s324 = smul.addr %s323, 2
      %s325 = smul.addr %s324, 8
      %s326 = scalar_lea.vmem %s5, %s325
      %s327 = smul.u32 4, %s19
      %s328 = ssub.s32 1, %s19
      %s329 = smul.u32 4, %s328
      %p330 = scmp.lt.s32.totalorder %s329, 7
      %s331 = scalar_select %p330, %s329, 7
      %s332 = smul.addr %s331, 2
      %s333 = smul.addr %s332, 8
      %s334 = scalar_lea.vmem %s6, %s333
      %s335 = ssub.s32 1, %s19
      %s336 = smul.u32 4, %s335
      %p338 = scmp.eq.s32.totalorder %s19, 0
      // Predicated region
      $region41: #{encoder_rnn_forward.3} parent=39 // pred_check
        %p339 = pneg %p338
      $region42: #{encoder_rnn_forward.3} parent=39 // pred_check_branch
        %341 = sbr.rel (%p339) target = $region44
      $region43: #{encoder_rnn_forward.3} parent=39 // pred_region
        %342 = vst [vmem:[#allocation2] sm:$0xff] 0.0
        %343 = vst [vmem:[#allocation2 + $0x8] sm:$0xff] 0.0
        %344 = vst [vmem:[#allocation2 + $0x10] sm:$0xff] 0.0
        %345 = vst [vmem:[#allocation2 + $0x18] sm:$0xff] 0.0
      $region44: #{encoder_rnn_forward.3} parent=39 // pred_fallthru
        _
      %v346 = vld [vmem:[%s2] sm:$0xff]
      %v347 = vld [vmem:[%s2 + $0x8] sm:$0xf]
      %v348 = vld [vmem:[%s2 + $0xc] sm:$0xff]
      %v349 = vld [vmem:[%s2 + $0x14] sm:$0xf]
      %v350 = vld [vmem:[%s2 + $0x18] sm:$0xff]
      %v351 = vld [vmem:[%s2 + $0x20] sm:$0xf]
      %v352 = vld [vmem:[%s2 + $0x24] sm:$0xff]
      %v353 = vld [vmem:[%s2 + $0x2c] sm:$0xf]
      %v354 = vld [vmem:[%s2 + $0x30] sm:$0xff]
      %v355 = vld [vmem:[%s2 + $0x38] sm:$0xf]
      %v356 = vld [vmem:[%s2 + $0x3c] sm:$0xff]
      %v357 = vld [vmem:[%s2 + $0x44] sm:$0xf]
      %v358 = vld [vmem:[%s2 + $0x48] sm:$0xff]
      %v359 = vld [vmem:[%s2 + $0x50] sm:$0xf]
      %v360 = vld [vmem:[%s2 + $0x54] sm:$0xff]
      %v361 = vld [vmem:[%s2 + $0x5c] sm:$0xf]
      %v362 = vld [vmem:[%s2 + $0x60] sm:$0xff]
      %v363 = vld [vmem:[%s2 + $0x68] sm:$0xf]
      %v364 = vld [vmem:[%s2 + $0x6c] sm:$0xff]
      %v365 = vld [vmem:[%s2 + $0x74] sm:$0xf]
      %v366 = vld [vmem:[%s2 + $0x78] sm:$0xff]
      %v367 = vld [vmem:[%s2 + $0x80] sm:$0xf]
      %v368 = vld [vmem:[%s2 + $0x84] sm:$0xff]
      %v369 = vld [vmem:[%s2 + $0x8c] sm:$0xf]
      %v370 = vld [vmem:[%s2 + $0x90] sm:$0xff]
      %v371 = vld [vmem:[%s2 + $0x98] sm:$0xf]
      %v372 = vld [vmem:[%s2 + $0x9c] sm:$0xff]
      %v373 = vld [vmem:[%s2 + $0xa4] sm:$0xf]
      %v374 = vld [vmem:[%s2 + $0xa8] sm:$0xff]
      %v375 = vld [vmem:[%s2 + $0xb0] sm:$0xf]
      %v376 = vld [vmem:[%s2 + $0xb4] sm:$0xff]
      %v377 = vld [vmem:[%s2 + $0xbc] sm:$0xf]
      %s378 = scalar_lea.vmem %s2, 192
      %v379 = vld [vmem:[%s378] sm:$0xff]
      %v380 = vld [vmem:[%s378 + $0x8] sm:$0xf]
      %v381 = vld [vmem:[%s378 + $0xc] sm:$0xff]
      %v382 = vld [vmem:[%s378 + $0x14] sm:$0xf]
      %v383 = vld [vmem:[%s378 + $0x18] sm:$0xff]
      %v384 = vld [vmem:[%s378 + $0x20] sm:$0xf]
      %v385 = vld [vmem:[%s378 + $0x24] sm:$0xff]
      %v386 = vld [vmem:[%s378 + $0x2c] sm:$0xf]
      %v387 = vld [vmem:[%s378 + $0x30] sm:$0xff]
      %v388 = vld [vmem:[%s378 + $0x38] sm:$0xf]
      %v389 = vld [vmem:[%s378 + $0x3c] sm:$0xff]
      %v390 = vld [vmem:[%s378 + $0x44] sm:$0xf]
      %v391 = vld [vmem:[%s378 + $0x48] sm:$0xff]
      %v392 = vld [vmem:[%s378 + $0x50] sm:$0xf]
      %v393 = vld [vmem:[%s378 + $0x54] sm:$0xff]
      %v394 = vld [vmem:[%s378 + $0x5c] sm:$0xf]
      %v395 = vld [vmem:[%s378 + $0x60] sm:$0xff]
      %v396 = vld [vmem:[%s378 + $0x68] sm:$0xf]
      %v397 = vld [vmem:[%s378 + $0x6c] sm:$0xff]
      %v398 = vld [vmem:[%s378 + $0x74] sm:$0xf]
      %v399 = vld [vmem:[%s378 + $0x78] sm:$0xff]
      %v400 = vld [vmem:[%s378 + $0x80] sm:$0xf]
      %v401 = vld [vmem:[%s378 + $0x84] sm:$0xff]
      %v402 = vld [vmem:[%s378 + $0x8c] sm:$0xf]
      %v403 = vld [vmem:[%s378 + $0x90] sm:$0xff]
      %v404 = vld [vmem:[%s378 + $0x98] sm:$0xf]
      %v405 = vld [vmem:[%s378 + $0x9c] sm:$0xff]
      %v406 = vld [vmem:[%s378 + $0xa4] sm:$0xf]
      %v407 = vld [vmem:[%s378 + $0xa8] sm:$0xff]
      %v408 = vld [vmem:[%s378 + $0xb0] sm:$0xf]
      %v409 = vld [vmem:[%s378 + $0xb4] sm:$0xff]
      %v410 = vld [vmem:[%s378 + $0xbc] sm:$0xf]
      %v411 = vld [vmem:[%s3] sm:$0x7]
      %s412 = scalar_lea.vmem %s3, 3
      %v413 = vld [vmem:[%s412] sm:$0x7]
      %v414 = vld [vmem:[%s4] sm:$0xff]
      %v415 = vld [vmem:[%s4 + $0x8] sm:$0xff]
      %s416 = smul.u32 %s19, 4
      %v417 = vld [vmem:[#allocation2] sm:$0xff]
      %v418 = vld [vmem:[#allocation2 + $0x8] sm:$0xff]
      %v419 = vld [vmem:[%s310] sm:$0xff]
      %v420 = vld [vmem:[%s310 + $0x8] sm:$0xf]
      %v421 = vld [vmem:[%s310 + $0xc] sm:$0xff]
      %v422 = vld [vmem:[%s310 + $0x14] sm:$0xf]
      %v423 = vpack.c.bf16 %v418, %v417
      %v425 = vlaneseq
      %v426 = vshrl.u32 %v425, 7
      %v427 = vsub.s32 0, %v426
      %v428 = vrot.slane %v411, %v427
      %v429 = vlaneseq
      %v430 = vshrl.u32 %v429, 7
      %v431 = vsub.s32 1, %v430
      %v432 = vrot.slane %v411, %v431
      %v433 = vlaneseq
      %v434 = vshrl.u32 %v433, 7
      %v435 = vsub.s32 2, %v434
      %v436 = vrot.slane %v411, %v435
      %v472 = vunpack.c.l.b16 %v346
      %v473 = vunpack.c.h.b16 %v346
      %v474 = vunpack.c.l.b16 %v347
      %v475 = vunpack.c.l.b16 %v348
      %v476 = vunpack.c.h.b16 %v348
      %v477 = vunpack.c.l.b16 %v349
      %v478 = vunpack.c.l.b16 %v350
      %v479 = vunpack.c.h.b16 %v350
      %v480 = vunpack.c.l.b16 %v351
      %v481 = vunpack.c.l.b16 %v352
      %v482 = vunpack.c.h.b16 %v352
      %v483 = vunpack.c.l.b16 %v353
      %v484 = vunpack.c.l.b16 %v354
      %v485 = vunpack.c.h.b16 %v354
      %v486 = vunpack.c.l.b16 %v355
      %v487 = vunpack.c.l.b16 %v356
      %v488 = vunpack.c.h.b16 %v356
      %v489 = vunpack.c.l.b16 %v357
      %v490 = vunpack.c.l.b16 %v358
      %v491 = vunpack.c.h.b16 %v358
      %v492 = vunpack.c.l.b16 %v359
      %v493 = vunpack.c.l.b16 %v360
      %v494 = vunpack.c.h.b16 %v360
      %v495 = vunpack.c.l.b16 %v361
      %v496 = vunpack.c.l.b16 %v362
      %v497 = vunpack.c.h.b16 %v362
      %v498 = vunpack.c.l.b16 %v363
      %v499 = vunpack.c.l.b16 %v364
      %v500 = vunpack.c.h.b16 %v364
      %v501 = vunpack.c.l.b16 %v365
      %v502 = vunpack.c.l.b16 %v366
      %v503 = vunpack.c.h.b16 %v366
      %v504 = vunpack.c.l.b16 %v367
      %v505 = vunpack.c.l.b16 %v368
      %v506 = vunpack.c.h.b16 %v368
      %v507 = vunpack.c.l.b16 %v369
      %v508 = vunpack.c.l.b16 %v370
      %v509 = vunpack.c.h.b16 %v370
      %v510 = vunpack.c.l.b16 %v371
      %v511 = vunpack.c.l.b16 %v372
      %v512 = vunpack.c.h.b16 %v372
      %v513 = vunpack.c.l.b16 %v373
      %v514 = vunpack.c.l.b16 %v374
      %v515 = vunpack.c.h.b16 %v374
      %v516 = vunpack.c.l.b16 %v375
      %v517 = vunpack.c.l.b16 %v376
      %v518 = vunpack.c.h.b16 %v376
      %v519 = vunpack.c.l.b16 %v377
      %v520 = vpack.c.b16 %v475, %v472
      %v521 = vpack.c.b16 %v476, %v473
      %v522 = vpack.c.b16 %v477, %v474
      %v523 = vpack.c.b16 %v481, %v478
      %v524 = vpack.c.b16 %v482, %v479
      %v525 = vpack.c.b16 %v483, %v480
      %v526 = vpack.c.b16 %v487, %v484
      %v527 = vpack.c.b16 %v488, %v485
      %v528 = vpack.c.b16 %v489, %v486
      %v529 = vpack.c.b16 %v493, %v490
      %v530 = vpack.c.b16 %v494, %v491
      %v531 = vpack.c.b16 %v495, %v492
      %v532 = vpack.c.b16 %v499, %v496
      %v533 = vpack.c.b16 %v500, %v497
      %v534 = vpack.c.b16 %v501, %v498
      %v535 = vpack.c.b16 %v505, %v502
      %v536 = vpack.c.b16 %v506, %v503
      %v537 = vpack.c.b16 %v507, %v504
      %v538 = vpack.c.b16 %v511, %v508
      %v539 = vpack.c.b16 %v512, %v509
      %v540 = vpack.c.b16 %v513, %v510
      %v541 = vpack.c.b16 %v517, %v514
      %v542 = vpack.c.b16 %v518, %v515
      %v543 = vpack.c.b16 %v519, %v516
      %568 = vmatprep.subr.bf16.mxu0 %v542
      %569 = vmatpush1.bf16.msra.mxu0 %v541
      %570 = vmatprep.subr.bf16.mxu0 %v539
      %571 = vmatpush1.bf16.msra.mxu0 %v538
      %572 = vmatprep.subr.bf16.mxu0 %v536
      %573 = vmatpush1.bf16.msra.mxu0 %v535
      %574 = vmatprep.subr.bf16.mxu0 %v533
      %575 = vmatpush1.bf16.msra.mxu0 %v532
      %576 = vmatprep.subr.bf16.mxu0 %v530
      %577 = vmatpush1.bf16.msra.mxu0 %v529
      %578 = vmatprep.subr.bf16.mxu0 %v527
      %579 = vmatpush1.bf16.msra.mxu0 %v526
      %580 = vmatprep.subr.bf16.mxu0 %v524
      %581 = vmatpush1.bf16.msra.mxu0 %v523
      %582 = vmatprep.subr.bf16.mxu0 %v521
      %583 = vmatpush1.bf16.msra.mxu0 %v520
      %584 = vmatprep.subr.bf16.mxu0 0
      %585 = vmatpush2.bf16.msra.mxu0 0
      %586 = vmatprep.subr.bf16.mxu0 0
      %587 = vmatpush2.bf16.msra.mxu0 0
      %588 = vmatprep.subr.bf16.mxu0 0
      %589 = vmatpush2.bf16.msra.mxu0 0
      %590 = vmatprep.subr.bf16.mxu0 0
      %591 = vmatpush2.bf16.msra.mxu0 0
      %592 = vmatprep.subr.bf16.mxu0 0
      %593 = vmatpush2.bf16.msra.mxu0 0
      %594 = vmatprep.subr.bf16.mxu0 0
      %595 = vmatpush2.bf16.msra.mxu0 0
      %596 = vmatprep.subr.bf16.mxu0 0
      %597 = vmatpush2.bf16.msra.mxu0 0
      %598 = vmatprep.subr.bf16.mxu0 0
      %599 = vmatpush2.bf16.msra.mxu0 0
      %600 = vmatprep.mubr.bf16.mxu0 0
      %601 = vmatmul.mubr.bf16.gmra.mxu0 %v423
      %v602 = vpop.f32.mrf.mxu0
      %v603 = vadd.f32 %v428, %v602
      %v604 = vpop.f32.mrf.mxu0
      %v605 = vadd.f32 %v432, %v604
      %v606 = vpop.f32.mrf.mxu0
      %v607 = vadd.f32 %v428, %v606
      %v608 = vpop.f32.mrf.mxu0
      %v609 = vadd.f32 %v432, %v608
      %610 = vdwg.mxu0
      %611 = vmatprep.subr.bf16.mxu0 0
      %612 = vmatpush1.bf16.msra.mxu0 %v543
      %613 = vmatprep.subr.bf16.mxu0 0
      %614 = vmatpush1.bf16.msra.mxu0 %v540
      %615 = vmatprep.subr.bf16.mxu0 0
      %616 = vmatpush1.bf16.msra.mxu0 %v537
      %617 = vmatprep.subr.bf16.mxu0 0
      %618 = vmatpush1.bf16.msra.mxu0 %v534
      %619 = vmatprep.subr.bf16.mxu0 0
      %620 = vmatpush1.bf16.msra.mxu0 %v531
      %621 = vmatprep.subr.bf16.mxu0 0
      %622 = vmatpush1.bf16.msra.mxu0 %v528
      %623 = vmatprep.subr.bf16.mxu0 0
      %624 = vmatpush1.bf16.msra.mxu0 %v525
      %625 = vmatprep.subr.bf16.mxu0 0
      %626 = vmatpush1.bf16.msra.mxu0 %v522
      %627 = vmatprep.subr.bf16.mxu0 0
      %628 = vmatpush2.bf16.msra.mxu0 0
      %629 = vmatprep.subr.bf16.mxu0 0
      %630 = vmatpush2.bf16.msra.mxu0 0
      %631 = vmatprep.subr.bf16.mxu0 0
      %632 = vmatpush2.bf16.msra.mxu0 0
      %633 = vmatprep.subr.bf16.mxu0 0
      %634 = vmatpush2.bf16.msra.mxu0 0
      %635 = vmatprep.subr.bf16.mxu0 0
      %636 = vmatpush2.bf16.msra.mxu0 0
      %637 = vmatprep.subr.bf16.mxu0 0
      %638 = vmatpush2.bf16.msra.mxu0 0
      %639 = vmatprep.subr.bf16.mxu0 0
      %640 = vmatpush2.bf16.msra.mxu0 0
      %641 = vmatprep.subr.bf16.mxu0 0
      %642 = vmatpush2.bf16.msra.mxu0 0
      %643 = vmatprep.mubr.bf16.mxu0 0
      %644 = vmatmul.mubr.bf16.gmra.mxu0 %v423
      %v645 = vpop.f32.mrf.mxu0
      %v646 = vadd.f32 %v436, %v645
      %v647 = vpop.f32.mrf.mxu0
      %v648 = vpop.f32.mrf.mxu0
      %v649 = vadd.f32 %v436, %v648
      %v650 = vpop.f32.mrf.mxu0
      %651 = vdwg.mxu0
      %v652 = vunpack.c.l.bf16 %v419
      %v653 = vunpack.c.h.bf16 %v419
      %v654 = vunpack.c.l.bf16 %v420
      %v655 = vunpack.c.l.bf16 %v421
      %v656 = vunpack.c.h.bf16 %v421
      %v657 = vunpack.c.l.bf16 %v422
      %v658 = vadd.f32 %v652, %v603
      %v659 = vadd.f32 %v655, %v607
      %v660 = vxor.u32 %v658, 2147483648
      %v661 = vxor.u32 %v659, 2147483648
      %v662 = vmul.f32 %v660, 1.442695
      %v663 = vpow.pop %v662
      %v664 = vmul.f32 %v661, 1.442695
      %v665 = vpow.pop %v664
      %v666 = vadd.f32 %v663, 1.0
      %v667 = vadd.f32 %v665, 1.0
      %v668 = vrcp.pop %v666
      %v669 = vmul.f32 1.0, %v668
      %v670 = vrcp.pop %v667
      %v671 = vmul.f32 1.0, %v670
      %v672 = vadd.f32 %v653, %v605
      %v673 = vadd.f32 %v656, %v609
      %v674 = vxor.u32 %v672, 2147483648
      %v675 = vxor.u32 %v673, 2147483648
      %v676 = vmul.f32 %v674, 1.442695
      %v677 = vpow.pop %v676
      %v678 = vmul.f32 %v675, 1.442695
      %v679 = vpow.pop %v678
      %v680 = vadd.f32 %v677, 1.0
      %v681 = vadd.f32 %v679, 1.0
      %v682 = vrcp.pop %v680
      %v683 = vmul.f32 1.0, %v682
      %v684 = vrcp.pop %v681
      %v685 = vmul.f32 1.0, %v684
      %v686 = vmul.f32 %v669, %v646
      %v687 = vmul.f32 %v671, %v649
      %v688 = vadd.f32 %v654, %v686
      %v689 = vadd.f32 %v657, %v687
      %v690 = vtanh.pop %v688
      %v691 = vtanh.pop %v689
      %v692 = vsub.f32 1.0, %v683
      %v693 = vsub.f32 1.0, %v685
      %v694 = vmul.f32 %v692, %v690
      %v695 = vmul.f32 %v693, %v691
      %v696 = vmul.f32 %v683, %v417
      %v697 = vmul.f32 %v685, %v418
      %v698 = vadd.f32 %v694, %v696
      %v699 = vadd.f32 %v695, %v697
      %v700 = vstv %s416
      %vm701 = vcmp.lt.s32.totalorder %v700, %v414
      %vm702 = vcmp.lt.s32.totalorder %v700, %v415
      %v703 = vsel %vm701, 1, 0
      %v704 = vsel %vm702, 1, 0
      %705 = vset.pattern.permute.xlu0 0
      %706 = vperm.xlu0 %705, %v703
      %v707 = vpop.permute.xlu0 %706
      %708 = vset.pattern.permute.xlu0 0
      %709 = vperm.xlu0 %708, %v704
      %v710 = vpop.permute.xlu0 %709
      %vm711 = vcmp.eq.s32.totalorder %v707, 1
      %vm712 = vcmp.eq.s32.totalorder %v710, 1
      %v713 = vsel %vm711, %v698, %v417
      %v714 = vsel %vm712, %v699, %v418
      %715 = vst [vmem:[#allocation2] sm:$0xff] %v713
      %716 = vst [vmem:[#allocation2 + $0x8] sm:$0xff] %v714
      %v717 = vsel %vm711, %v698, 0.0
      %v718 = vsel %vm712, %v699, 0.0
      %719 = vst [vmem:[%s326] sm:$0xff] %v717
      %720 = vst [vmem:[%s326 + $0x8] sm:$0xff] %v718
      %s721 = ssub.s32 1, %s19
      %s722 = smul.u32 %s721, 4
      %s723 = sadd.s32 %s722, 3
      %s724 = scalar_lea.vmem [#allocation2], 16
      %v725 = vld [vmem:[%s724] sm:$0xff]
      %v726 = vld [vmem:[%s724 + $0x8] sm:$0xff]
      %s727 = scalar_lea.vmem %s318, 72
      %v728 = vld [vmem:[%s727] sm:$0xff]
      %v729 = vld [vmem:[%s727 + $0x8] sm:$0xf]
      %v730 = vld [vmem:[%s727 + $0xc] sm:$0xff]
      %v731 = vld [vmem:[%s727 + $0x14] sm:$0xf]
      %v732 = vpack.c.bf16 %v726, %v725
      %v734 = vlaneseq
      %v735 = vshrl.u32 %v734, 7
      %v736 = vsub.s32 0, %v735
      %v737 = vrot.slane %v413, %v736
      %v738 = vlaneseq
      %v739 = vshrl.u32 %v738, 7
      %v740 = vsub.s32 1, %v739
      %v741 = vrot.slane %v413, %v740
      %v742 = vlaneseq
      %v743 = vshrl.u32 %v742, 7
      %v744 = vsub.s32 2, %v743
      %v745 = vrot.slane %v413, %v744
      %v781 = vunpack.c.l.b16 %v379
      %v782 = vunpack.c.h.b16 %v379
      %v783 = vunpack.c.l.b16 %v380
      %v784 = vunpack.c.l.b16 %v381
      %v785 = vunpack.c.h.b16 %v381
      %v786 = vunpack.c.l.b16 %v382
      %v787 = vunpack.c.l.b16 %v383
      %v788 = vunpack.c.h.b16 %v383
      %v789 = vunpack.c.l.b16 %v384
      %v790 = vunpack.c.l.b16 %v385
      %v791 = vunpack.c.h.b16 %v385
      %v792 = vunpack.c.l.b16 %v386
      %v793 = vunpack.c.l.b16 %v387
      %v794 = vunpack.c.h.b16 %v387
      %v795 = vunpack.c.l.b16 %v388
      %v796 = vunpack.c.l.b16 %v389
      %v797 = vunpack.c.h.b16 %v389
      %v798 = vunpack.c.l.b16 %v390
      %v799 = vunpack.c.l.b16 %v391
      %v800 = vunpack.c.h.b16 %v391
      %v801 = vunpack.c.l.b16 %v392
      %v802 = vunpack.c.l.b16 %v393
      %v803 = vunpack.c.h.b16 %v393
      %v804 = vunpack.c.l.b16 %v394
      %v805 = vunpack.c.l.b16 %v395
      %v806 = vunpack.c.h.b16 %v395
      %v807 = vunpack.c.l.b16 %v396
      %v808 = vunpack.c.l.b16 %v397
      %v809 = vunpack.c.h.b16 %v397
      %v810 = vunpack.c.l.b16 %v398
      %v811 = vunpack.c.l.b16 %v399
      %v812 = vunpack.c.h.b16 %v399
      %v813 = vunpack.c.l.b16 %v400
      %v814 = vunpack.c.l.b16 %v401
      %v815 = vunpack.c.h.b16 %v401
      %v816 = vunpack.c.l.b16 %v402
      %v817 = vunpack.c.l.b16 %v403
      %v818 = vunpack.c.h.b16 %v403
      %v819 = vunpack.c.l.b16 %v404
      %v820 = vunpack.c.l.b16 %v405
      %v821 = vunpack.c.h.b16 %v405
      %v822 = vunpack.c.l.b16 %v406
      %v823 = vunpack.c.l.b16 %v407
      %v824 = vunpack.c.h.b16 %v407
      %v825 = vunpack.c.l.b16 %v408
      %v826 = vunpack.c.l.b16 %v409
      %v827 = vunpack.c.h.b16 %v409
      %v828 = vunpack.c.l.b16 %v410
      %v829 = vpack.c.b16 %v784, %v781
      %v830 = vpack.c.b16 %v785, %v782
      %v831 = vpack.c.b16 %v786, %v783
      %v832 = vpack.c.b16 %v790, %v787
      %v833 = vpack.c.b16 %v791, %v788
      %v834 = vpack.c.b16 %v792, %v789
      %v835 = vpack.c.b16 %v796, %v793
      %v836 = vpack.c.b16 %v797, %v794
      %v837 = vpack.c.b16 %v798, %v795
      %v838 = vpack.c.b16 %v802, %v799
      %v839 = vpack.c.b16 %v803, %v800
      %v840 = vpack.c.b16 %v804, %v801
      %v841 = vpack.c.b16 %v808, %v805
      %v842 = vpack.c.b16 %v809, %v806
      %v843 = vpack.c.b16 %v810, %v807
      %v844 = vpack.c.b16 %v814, %v811
      %v845 = vpack.c.b16 %v815, %v812
      %v846 = vpack.c.b16 %v816, %v813
      %v847 = vpack.c.b16 %v820, %v817
      %v848 = vpack.c.b16 %v821, %v818
      %v849 = vpack.c.b16 %v822, %v819
      %v850 = vpack.c.b16 %v826, %v823
      %v851 = vpack.c.b16 %v827, %v824
      %v852 = vpack.c.b16 %v828, %v825
      %877 = vmatprep.subr.bf16.mxu0 %v851
      %878 = vmatpush1.bf16.msra.mxu0 %v850
      %879 = vmatprep.subr.bf16.mxu0 %v848
      %880 = vmatpush1.bf16.msra.mxu0 %v847
      %881 = vmatprep.subr.bf16.mxu0 %v845
      %882 = vmatpush1.bf16.msra.mxu0 %v844
      %883 = vmatprep.subr.bf16.mxu0 %v842
      %884 = vmatpush1.bf16.msra.mxu0 %v841
      %885 = vmatprep.subr.bf16.mxu0 %v839
      %886 = vmatpush1.bf16.msra.mxu0 %v838
      %887 = vmatprep.subr.bf16.mxu0 %v836
      %888 = vmatpush1.bf16.msra.mxu0 %v835
      %889 = vmatprep.subr.bf16.mxu0 %v833
      %890 = vmatpush1.bf16.msra.mxu0 %v832
      %891 = vmatprep.subr.bf16.mxu0 %v830
      %892 = vmatpush1.bf16.msra.mxu0 %v829
      %893 = vmatprep.subr.bf16.mxu0 0
      %894 = vmatpush2.bf16.msra.mxu0 0
      %895 = vmatprep.subr.bf16.mxu0 0
      %896 = vmatpush2.bf16.msra.mxu0 0
      %897 = vmatprep.subr.bf16.mxu0 0
      %898 = vmatpush2.bf16.msra.mxu0 0
      %899 = vmatprep.subr.bf16.mxu0 0
      %900 = vmatpush2.bf16.msra.mxu0 0
      %901 = vmatprep.subr.bf16.mxu0 0
      %902 = vmatpush2.bf16.msra.mxu0 0
      %903 = vmatprep.subr.bf16.mxu0 0
      %904 = vmatpush2.bf16.msra.mxu0 0
      %905 = vmatprep.subr.bf16.mxu0 0
      %906 = vmatpush2.bf16.msra.mxu0 0
      %907 = vmatprep.subr.bf16.mxu0 0
      %908 = vmatpush2.bf16.msra.mxu0 0
      %909 = vmatprep.mubr.bf16.mxu0 0
      %910 = vmatmul.mubr.bf16.gmra.mxu0 %v732
      %v911 = vpop.f32.mrf.mxu0
      %v912 = vadd.f32 %v737, %v911
      %v913 = vpop.f32.mrf.mxu0
      %v914 = vadd.f32 %v741, %v913
      %v915 = vpop.f32.mrf.mxu0
      %v916 = vadd.f32 %v737, %v915
      %v917 = vpop.f32.mrf.mxu0
      %v918 = vadd.f32 %v741, %v917
      %919 = vdwg.mxu0
      %920 = vmatprep.subr.bf16.mxu0 0
      %921 = vmatpush1.bf16.msra.mxu0 %v852
      %922 = vmatprep.subr.bf16.mxu0 0
      %923 = vmatpush1.bf16.msra.mxu0 %v849
      %924 = vmatprep.subr.bf16.mxu0 0
      %925 = vmatpush1.bf16.msra.mxu0 %v846
      %926 = vmatprep.subr.bf16.mxu0 0
      %927 = vmatpush1.bf16.msra.mxu0 %v843
      %928 = vmatprep.subr.bf16.mxu0 0
      %929 = vmatpush1.bf16.msra.mxu0 %v840
      %930 = vmatprep.subr.bf16.mxu0 0
      %931 = vmatpush1.bf16.msra.mxu0 %v837
      %932 = vmatprep.subr.bf16.mxu0 0
      %933 = vmatpush1.bf16.msra.mxu0 %v834
      %934 = vmatprep.subr.bf16.mxu0 0
      %935 = vmatpush1.bf16.msra.mxu0 %v831
      %936 = vmatprep.subr.bf16.mxu0 0
      %937 = vmatpush2.bf16.msra.mxu0 0
      %938 = vmatprep.subr.bf16.mxu0 0
      %939 = vmatpush2.bf16.msra.mxu0 0
      %940 = vmatprep.subr.bf16.mxu0 0
      %941 = vmatpush2.bf16.msra.mxu0 0
      %942 = vmatprep.subr.bf16.mxu0 0
      %943 = vmatpush2.bf16.msra.mxu0 0
      %944 = vmatprep.subr.bf16.mxu0 0
      %945 = vmatpush2.bf16.msra.mxu0 0
      %946 = vmatprep.subr.bf16.mxu0 0
      %947 = vmatpush2.bf16.msra.mxu0 0
      %948 = vmatprep.subr.bf16.mxu0 0
      %949 = vmatpush2.bf16.msra.mxu0 0
      %950 = vmatprep.subr.bf16.mxu0 0
      %951 = vmatpush2.bf16.msra.mxu0 0
      %952 = vmatprep.mubr.bf16.mxu0 0
      %953 = vmatmul.mubr.bf16.gmra.mxu0 %v732
      %v954 = vpop.f32.mrf.mxu0
      %v955 = vadd.f32 %v745, %v954
      %v956 = vpop.f32.mrf.mxu0
      %v957 = vpop.f32.mrf.mxu0
      %v958 = vadd.f32 %v745, %v957
      %v959 = vpop.f32.mrf.mxu0
      %960 = vdwg.mxu0
      %v961 = vunpack.c.l.bf16 %v728
      %v962 = vunpack.c.h.bf16 %v728
      %v963 = vunpack.c.l.bf16 %v729
      %v964 = vunpack.c.l.bf16 %v730
      %v965 = vunpack.c.h.bf16 %v730
      %v966 = vunpack.c.l.bf16 %v731
      %v967 = vadd.f32 %v961, %v912
      %v968 = vadd.f32 %v964, %v916
      %v969 = vxor.u32 %v967, 2147483648
      %v970 = vxor.u32 %v968, 2147483648
      %v971 = vmul.f32 %v969, 1.442695
      %v972 = vpow.pop %v971
      %v973 = vmul.f32 %v970, 1.442695
      %v974 = vpow.pop %v973
      %v975 = vadd.f32 %v972, 1.0
      %v976 = vadd.f32 %v974, 1.0
      %v977 = vrcp.pop %v975
      %v978 = vmul.f32 1.0, %v977
      %v979 = vrcp.pop %v976
      %v980 = vmul.f32 1.0, %v979
      %v981 = vadd.f32 %v962, %v914
      %v982 = vadd.f32 %v965, %v918
      %v983 = vxor.u32 %v981, 2147483648
      %v984 = vxor.u32 %v982, 2147483648
      %v985 = vmul.f32 %v983, 1.442695
      %v986 = vpow.pop %v985
      %v987 = vmul.f32 %v984, 1.442695
      %v988 = vpow.pop %v987
      %v989 = vadd.f32 %v986, 1.0
      %v990 = vadd.f32 %v988, 1.0
      %v991 = vrcp.pop %v989
      %v992 = vmul.f32 1.0, %v991
      %v993 = vrcp.pop %v990
      %v994 = vmul.f32 1.0, %v993
      %v995 = vmul.f32 %v978, %v955
      %v996 = vmul.f32 %v980, %v958
      %v997 = vadd.f32 %v963, %v995
      %v998 = vadd.f32 %v966, %v996
      %v999 = vtanh.pop %v997
      %v1000 = vtanh.pop %v998
      %v1001 = vsub.f32 1.0, %v992
      %v1002 = vsub.f32 1.0, %v994
      %v1003 = vmul.f32 %v1001, %v999
      %v1004 = vmul.f32 %v1002, %v1000
      %v1005 = vmul.f32 %v992, %v725
      %v1006 = vmul.f32 %v994, %v726
      %v1007 = vadd.f32 %v1003, %v1005
      %v1008 = vadd.f32 %v1004, %v1006
      %v1009 = vstv %s723
      %vm1010 = vcmp.lt.s32.totalorder %v1009, %v414
      %vm1011 = vcmp.lt.s32.totalorder %v1009, %v415
      %v1012 = vsel %vm1010, 1, 0
      %v1013 = vsel %vm1011, 1, 0
      %1014 = vset.pattern.permute.xlu0 0
      %1015 = vperm.xlu0 %1014, %v1012
      %v1016 = vpop.permute.xlu0 %1015
      %1017 = vset.pattern.permute.xlu0 0
      %1018 = vperm.xlu0 %1017, %v1013
      %v1019 = vpop.permute.xlu0 %1018
      %vm1020 = vcmp.eq.s32.totalorder %v1016, 1
      %vm1021 = vcmp.eq.s32.totalorder %v1019, 1
      %v1022 = vsel %vm1020, %v1007, %v725
      %v1023 = vsel %vm1021, %v1008, %v726
      %1024 = vst [vmem:[%s724] sm:$0xff] %v1022
      %1025 = vst [vmem:[%s724 + $0x8] sm:$0xff] %v1023
      %v1026 = vsel %vm1020, %v1007, 0.0
      %v1027 = vsel %vm1021, %v1008, 0.0
      %s1028 = scalar_lea.vmem %s334, 48
      %1029 = vst [vmem:[%s1028] sm:$0xff] %v1026
      %1030 = vst [vmem:[%s1028 + $0x8] sm:$0xff] %v1027
      %s1031 = sadd.s32 %s416, 1
      %v1032 = vld [vmem:[#allocation2] sm:$0xff]
      %v1033 = vld [vmem:[#allocation2 + $0x8] sm:$0xff]
      %s1034 = scalar_lea.vmem %s310, 24
      %v1035 = vld [vmem:[%s1034] sm:$0xff]
      %v1036 = vld [vmem:[%s1034 + $0x8] sm:$0xf]
      %v1037 = vld [vmem:[%s1034 + $0xc] sm:$0xff]
      %v1038 = vld [vmem:[%s1034 + $0x14] sm:$0xf]
      %v1039 = vpack.c.bf16 %v1033, %v1032
      %1040 = vmatprep.subr.bf16.mxu0 %v542
      %1041 = vmatpush1.bf16.msra.mxu0 %v541
      %1042 = vmatprep.subr.bf16.mxu0 %v539
      %1043 = vmatpush1.bf16.msra.mxu0 %v538
      %1044 = vmatprep.subr.bf16.mxu0 %v536
      %1045 = vmatpush1.bf16.msra.mxu0 %v535
      %1046 = vmatprep.subr.bf16.mxu0 %v533
      %1047 = vmatpush1.bf16.msra.mxu0 %v532
      %1048 = vmatprep.subr.bf16.mxu0 %v530
      %1049 = vmatpush1.bf16.msra.mxu0 %v529
      %1050 = vmatprep.subr.bf16.mxu0 %v527
      %1051 = vmatpush1.bf16.msra.mxu0 %v526
      %1052 = vmatprep.subr.bf16.mxu0 %v524
      %1053 = vmatpush1.bf16.msra.mxu0 %v523
      %1054 = vmatprep.subr.bf16.mxu0 %v521
      %1055 = vmatpush1.bf16.msra.mxu0 %v520
      %1056 = vmatprep.subr.bf16.mxu0 0
      %1057 = vmatpush2.bf16.msra.mxu0 0
      %1058 = vmatprep.subr.bf16.mxu0 0
      %1059 = vmatpush2.bf16.msra.mxu0 0
      %1060 = vmatprep.subr.bf16.mxu0 0
      %1061 = vmatpush2.bf16.msra.mxu0 0
      %1062 = vmatprep.subr.bf16.mxu0 0
      %1063 = vmatpush2.bf16.msra.mxu0 0
      %1064 = vmatprep.subr.bf16.mxu0 0
      %1065 = vmatpush2.bf16.msra.mxu0 0
      %1066 = vmatprep.subr.bf16.mxu0 0
      %1067 = vmatpush2.bf16.msra.mxu0 0
      %1068 = vmatprep.subr.bf16.mxu0 0
      %1069 = vmatpush2.bf16.msra.mxu0 0
      %1070 = vmatprep.subr.bf16.mxu0 0
      %1071 = vmatpush2.bf16.msra.mxu0 0
      %1072 = vmatprep.mubr.bf16.mxu0 0
      %1073 = vmatmul.mubr.bf16.gmra.mxu0 %v1039
      %v1074 = vpop.f32.mrf.mxu0
      %v1075 = vadd.f32 %v428, %v1074
      %v1076 = vpop.f32.mrf.mxu0
      %v1077 = vadd.f32 %v432, %v1076
      %v1078 = vpop.f32.mrf.mxu0
      %v1079 = vadd.f32 %v428, %v1078
      %v1080 = vpop.f32.mrf.mxu0
      %v1081 = vadd.f32 %v432, %v1080
      %1082 = vdwg.mxu0
      %1083 = vmatprep.subr.bf16.mxu0 0
      %1084 = vmatpush1.bf16.msra.mxu0 %v543
      %1085 = vmatprep.subr.bf16.mxu0 0
      %1086 = vmatpush1.bf16.msra.mxu0 %v540
      %1087 = vmatprep.subr.bf16.mxu0 0
      %1088 = vmatpush1.bf16.msra.mxu0 %v537
      %1089 = vmatprep.subr.bf16.mxu0 0
      %1090 = vmatpush1.bf16.msra.mxu0 %v534
      %1091 = vmatprep.subr.bf16.mxu0 0
      %1092 = vmatpush1.bf16.msra.mxu0 %v531
      %1093 = vmatprep.subr.bf16.mxu0 0
      %1094 = vmatpush1.bf16.msra.mxu0 %v528
      %1095 = vmatprep.subr.bf16.mxu0 0
      %1096 = vmatpush1.bf16.msra.mxu0 %v525
      %1097 = vmatprep.subr.bf16.mxu0 0
      %1098 = vmatpush1.bf16.msra.mxu0 %v522
      %1099 = vmatprep.subr.bf16.mxu0 0
      %1100 = vmatpush2.bf16.msra.mxu0 0
      %1101 = vmatprep.subr.bf16.mxu0 0
      %1102 = vmatpush2.bf16.msra.mxu0 0
      %1103 = vmatprep.subr.bf16.mxu0 0
      %1104 = vmatpush2.bf16.msra.mxu0 0
      %1105 = vmatprep.subr.bf16.mxu0 0
      %1106 = vmatpush2.bf16.msra.mxu0 0
      %1107 = vmatprep.subr.bf16.mxu0 0
      %1108 = vmatpush2.bf16.msra.mxu0 0
      %1109 = vmatprep.subr.bf16.mxu0 0
      %1110 = vmatpush2.bf16.msra.mxu0 0
      %1111 = vmatprep.subr.bf16.mxu0 0
      %1112 = vmatpush2.bf16.msra.mxu0 0
      %1113 = vmatprep.subr.bf16.mxu0 0
      %1114 = vmatpush2.bf16.msra.mxu0 0
      %1115 = vmatprep.mubr.bf16.mxu0 0
      %1116 = vmatmul.mubr.bf16.gmra.mxu0 %v1039
      %v1117 = vpop.f32.mrf.mxu0
      %v1118 = vadd.f32 %v436, %v1117
      %v1119 = vpop.f32.mrf.mxu0
      %v1120 = vpop.f32.mrf.mxu0
      %v1121 = vadd.f32 %v436, %v1120
      %v1122 = vpop.f32.mrf.mxu0
      %1123 = vdwg.mxu0
      %v1124 = vunpack.c.l.bf16 %v1035
      %v1125 = vunpack.c.h.bf16 %v1035
      %v1126 = vunpack.c.l.bf16 %v1036
      %v1127 = vunpack.c.l.bf16 %v1037
      %v1128 = vunpack.c.h.bf16 %v1037
      %v1129 = vunpack.c.l.bf16 %v1038
      %v1130 = vadd.f32 %v1124, %v1075
      %v1131 = vadd.f32 %v1127, %v1079
      %v1132 = vxor.u32 %v1130, 2147483648
      %v1133 = vxor.u32 %v1131, 2147483648
      %v1134 = vmul.f32 %v1132, 1.442695
      %v1135 = vpow.pop %v1134
      %v1136 = vmul.f32 %v1133, 1.442695
      %v1137 = vpow.pop %v1136
      %v1138 = vadd.f32 %v1135, 1.0
      %v1139 = vadd.f32 %v1137, 1.0
      %v1140 = vrcp.pop %v1138
      %v1141 = vmul.f32 1.0, %v1140
      %v1142 = vrcp.pop %v1139
      %v1143 = vmul.f32 1.0, %v1142
      %v1144 = vadd.f32 %v1125, %v1077
      %v1145 = vadd.f32 %v1128, %v1081
      %v1146 = vxor.u32 %v1144, 2147483648
      %v1147 = vxor.u32 %v1145, 2147483648
      %v1148 = vmul.f32 %v1146, 1.442695
      %v1149 = vpow.pop %v1148
      %v1150 = vmul.f32 %v1147, 1.442695
      %v1151 = vpow.pop %v1150
      %v1152 = vadd.f32 %v1149, 1.0
      %v1153 = vadd.f32 %v1151, 1.0
      %v1154 = vrcp.pop %v1152
      %v1155 = vmul.f32 1.0, %v1154
      %v1156 = vrcp.pop %v1153
      %v1157 = vmul.f32 1.0, %v1156
      %v1158 = vmul.f32 %v1141, %v1118
      %v1159 = vmul.f32 %v1143, %v1121
      %v1160 = vadd.f32 %v1126, %v1158
      %v1161 = vadd.f32 %v1129, %v1159
      %v1162 = vtanh.pop %v1160
      %v1163 = vtanh.pop %v1161
      %v1164 = vsub.f32 1.0, %v1155
      %v1165 = vsub.f32 1.0, %v1157
      %v1166 = vmul.f32 %v1164, %v1162
      %v1167 = vmul.f32 %v1165, %v1163
      %v1168 = vmul.f32 %v1155, %v1032
      %v1169 = vmul.f32 %v1157, %v1033
      %v1170 = vadd.f32 %v1166, %v1168
      %v1171 = vadd.f32 %v1167, %v1169
      %v1172 = vstv %s1031
      %vm1173 = vcmp.lt.s32.totalorder %v1172, %v414
      %vm1174 = vcmp.lt.s32.totalorder %v1172, %v415
      %v1175 = vsel %vm1173, 1, 0
      %v1176 = vsel %vm1174, 1, 0
      %1177 = vset.pattern.permute.xlu0 0
      %1178 = vperm.xlu0 %1177, %v1175
      %v1179 = vpop.permute.xlu0 %1178
      %1180 = vset.pattern.permute.xlu0 0
      %1181 = vperm.xlu0 %1180, %v1176
      %v1182 = vpop.permute.xlu0 %1181
      %vm1183 = vcmp.eq.s32.totalorder %v1179, 1
      %vm1184 = vcmp.eq.s32.totalorder %v1182, 1
      %v1185 = vsel %vm1183, %v1170, %v1032
      %v1186 = vsel %vm1184, %v1171, %v1033
      %1187 = vst [vmem:[#allocation2] sm:$0xff] %v1185
      %1188 = vst [vmem:[#allocation2 + $0x8] sm:$0xff] %v1186
      %v1189 = vsel %vm1183, %v1170, 0.0
      %v1190 = vsel %vm1184, %v1171, 0.0
      %s1191 = scalar_lea.vmem %s326, 16
      %1192 = vst [vmem:[%s1191] sm:$0xff] %v1189
      %1193 = vst [vmem:[%s1191 + $0x8] sm:$0xff] %v1190
      %s1194 = sadd.s32 %s722, 2
      %v1195 = vld [vmem:[%s724] sm:$0xff]
      %v1196 = vld [vmem:[%s724 + $0x8] sm:$0xff]
      %s1197 = scalar_lea.vmem %s318, 48
      %v1198 = vld [vmem:[%s1197] sm:$0xff]
      %v1199 = vld [vmem:[%s1197 + $0x8] sm:$0xf]
      %v1200 = vld [vmem:[%s1197 + $0xc] sm:$0xff]
      %v1201 = vld [vmem:[%s1197 + $0x14] sm:$0xf]
      %v1202 = vpack.c.bf16 %v1196, %v1195
      %1203 = vmatprep.subr.bf16.mxu0 %v851
      %1204 = vmatpush1.bf16.msra.mxu0 %v850
      %1205 = vmatprep.subr.bf16.mxu0 %v848
      %1206 = vmatpush1.bf16.msra.mxu0 %v847
      %1207 = vmatprep.subr.bf16.mxu0 %v845
      %1208 = vmatpush1.bf16.msra.mxu0 %v844
      %1209 = vmatprep.subr.bf16.mxu0 %v842
      %1210 = vmatpush1.bf16.msra.mxu0 %v841
      %1211 = vmatprep.subr.bf16.mxu0 %v839
      %1212 = vmatpush1.bf16.msra.mxu0 %v838
      %1213 = vmatprep.subr.bf16.mxu0 %v836
      %1214 = vmatpush1.bf16.msra.mxu0 %v835
      %1215 = vmatprep.subr.bf16.mxu0 %v833
      %1216 = vmatpush1.bf16.msra.mxu0 %v832
      %1217 = vmatprep.subr.bf16.mxu0 %v830
      %1218 = vmatpush1.bf16.msra.mxu0 %v829
      %1219 = vmatprep.subr.bf16.mxu0 0
      %1220 = vmatpush2.bf16.msra.mxu0 0
      %1221 = vmatprep.subr.bf16.mxu0 0
      %1222 = vmatpush2.bf16.msra.mxu0 0
      %1223 = vmatprep.subr.bf16.mxu0 0
      %1224 = vmatpush2.bf16.msra.mxu0 0
      %1225 = vmatprep.subr.bf16.mxu0 0
      %1226 = vmatpush2.bf16.msra.mxu0 0
      %1227 = vmatprep.subr.bf16.mxu0 0
      %1228 = vmatpush2.bf16.msra.mxu0 0
      %1229 = vmatprep.subr.bf16.mxu0 0
      %1230 = vmatpush2.bf16.msra.mxu0 0
      %1231 = vmatprep.subr.bf16.mxu0 0
      %1232 = vmatpush2.bf16.msra.mxu0 0
      %1233 = vmatprep.subr.bf16.mxu0 0
      %1234 = vmatpush2.bf16.msra.mxu0 0
      %1235 = vmatprep.mubr.bf16.mxu0 0
      %1236 = vmatmul.mubr.bf16.gmra.mxu0 %v1202
      %v1237 = vpop.f32.mrf.mxu0
      %v1238 = vadd.f32 %v737, %v1237
      %v1239 = vpop.f32.mrf.mxu0
      %v1240 = vadd.f32 %v741, %v1239
      %v1241 = vpop.f32.mrf.mxu0
      %v1242 = vadd.f32 %v737, %v1241
      %v1243 = vpop.f32.mrf.mxu0
      %v1244 = vadd.f32 %v741, %v1243
      %1245 = vdwg.mxu0
      %1246 = vmatprep.subr.bf16.mxu0 0
      %1247 = vmatpush1.bf16.msra.mxu0 %v852
      %1248 = vmatprep.subr.bf16.mxu0 0
      %1249 = vmatpush1.bf16.msra.mxu0 %v849
      %1250 = vmatprep.subr.bf16.mxu0 0
      %1251 = vmatpush1.bf16.msra.mxu0 %v846
      %1252 = vmatprep.subr.bf16.mxu0 0
      %1253 = vmatpush1.bf16.msra.mxu0 %v843
      %1254 = vmatprep.subr.bf16.mxu0 0
      %1255 = vmatpush1.bf16.msra.mxu0 %v840
      %1256 = vmatprep.subr.bf16.mxu0 0
      %1257 = vmatpush1.bf16.msra.mxu0 %v837
      %1258 = vmatprep.subr.bf16.mxu0 0
      %1259 = vmatpush1.bf16.msra.mxu0 %v834
      %1260 = vmatprep.subr.bf16.mxu0 0
      %1261 = vmatpush1.bf16.msra.mxu0 %v831
      %1262 = vmatprep.subr.bf16.mxu0 0
      %1263 = vmatpush2.bf16.msra.mxu0 0
      %1264 = vmatprep.subr.bf16.mxu0 0
      %1265 = vmatpush2.bf16.msra.mxu0 0
      %1266 = vmatprep.subr.bf16.mxu0 0
      %1267 = vmatpush2.bf16.msra.mxu0 0
      %1268 = vmatprep.subr.bf16.mxu0 0
      %1269 = vmatpush2.bf16.msra.mxu0 0
      %1270 = vmatprep.subr.bf16.mxu0 0
      %1271 = vmatpush2.bf16.msra.mxu0 0
      %1272 = vmatprep.subr.bf16.mxu0 0
      %1273 = vmatpush2.bf16.msra.mxu0 0
      %1274 = vmatprep.subr.bf16.mxu0 0
      %1275 = vmatpush2.bf16.msra.mxu0 0
      %1276 = vmatprep.subr.bf16.mxu0 0
      %1277 = vmatpush2.bf16.msra.mxu0 0
      %1278 = vmatprep.mubr.bf16.mxu0 0
      %1279 = vmatmul.mubr.bf16.gmra.mxu0 %v1202
      %v1280 = vpop.f32.mrf.mxu0
      %v1281 = vadd.f32 %v745, %v1280
      %v1282 = vpop.f32.mrf.mxu0
      %v1283 = vpop.f32.mrf.mxu0
      %v1284 = vadd.f32 %v745, %v1283
      %v1285 = vpop.f32.mrf.mxu0
      %1286 = vdwg.mxu0
      %v1287 = vunpack.c.l.bf16 %v1198
      %v1288 = vunpack.c.h.bf16 %v1198
      %v1289 = vunpack.c.l.bf16 %v1199
      %v1290 = vunpack.c.l.bf16 %v1200
      %v1291 = vunpack.c.h.bf16 %v1200
      %v1292 = vunpack.c.l.bf16 %v1201
      %v1293 = vadd.f32 %v1287, %v1238
      %v1294 = vadd.f32 %v1290, %v1242
      %v1295 = vxor.u32 %v1293, 2147483648
      %v1296 = vxor.u32 %v1294, 2147483648
      %v1297 = vmul.f32 %v1295, 1.442695
      %v1298 = vpow.pop %v1297
      %v1299 = vmul.f32 %v1296, 1.442695
      %v1300 = vpow.pop %v1299
      %v1301 = vadd.f32 %v1298, 1.0
      %v1302 = vadd.f32 %v1300, 1.0
      %v1303 = vrcp.pop %v1301
      %v1304 = vmul.f32 1.0, %v1303
      %v1305 = vrcp.pop %v1302
      %v1306 = vmul.f32 1.0, %v1305
      %v1307 = vadd.f32 %v1288, %v1240
      %v1308 = vadd.f32 %v1291, %v1244
      %v1309 = vxor.u32 %v1307, 2147483648
      %v1310 = vxor.u32 %v1308, 2147483648
      %v1311 = vmul.f32 %v1309, 1.442695
      %v1312 = vpow.pop %v1311
      %v1313 = vmul.f32 %v1310, 1.442695
      %v1314 = vpow.pop %v1313
      %v1315 = vadd.f32 %v1312, 1.0
      %v1316 = vadd.f32 %v1314, 1.0
      %v1317 = vrcp.pop %v1315
      %v1318 = vmul.f32 1.0, %v1317
      %v1319 = vrcp.pop %v1316
      %v1320 = vmul.f32 1.0, %v1319
      %v1321 = vmul.f32 %v1304, %v1281
      %v1322 = vmul.f32 %v1306, %v1284
      %v1323 = vadd.f32 %v1289, %v1321
      %v1324 = vadd.f32 %v1292, %v1322
      %v1325 = vtanh.pop %v1323
      %v1326 = vtanh.pop %v1324
      %v1327 = vsub.f32 1.0, %v1318
      %v1328 = vsub.f32 1.0, %v1320
      %v1329 = vmul.f32 %v1327, %v1325
      %v1330 = vmul.f32 %v1328, %v1326
      %v1331 = vmul.f32 %v1318, %v1195
      %v1332 = vmul.f32 %v1320, %v1196
      %v1333 = vadd.f32 %v1329, %v1331
      %v1334 = vadd.f32 %v1330, %v1332
      %v1335 = vstv %s1194
      %vm1336 = vcmp.lt.s32.totalorder %v1335, %v414
      %vm1337 = vcmp.lt.s32.totalorder %v1335, %v415
      %v1338 = vsel %vm1336, 1, 0
      %v1339 = vsel %vm1337, 1, 0
      %1340 = vset.pattern.permute.xlu0 0
      %1341 = vperm.xlu0 %1340, %v1338
      %v1342 = vpop.permute.xlu0 %1341
      %1343 = vset.pattern.permute.xlu0 0
      %1344 = vperm.xlu0 %1343, %v1339
      %v1345 = vpop.permute.xlu0 %1344
      %vm1346 = vcmp.eq.s32.totalorder %v1342, 1
      %vm1347 = vcmp.eq.s32.totalorder %v1345, 1
      %v1348 = vsel %vm1346, %v1333, %v1195
      %v1349 = vsel %vm1347, %v1334, %v1196
      %1350 = vst [vmem:[%s724] sm:$0xff] %v1348
      %1351 = vst [vmem:[%s724 + $0x8] sm:$0xff] %v1349
      %v1352 = vsel %vm1346, %v1333, 0.0
      %v1353 = vsel %vm1347, %v1334, 0.0
      %s1354 = scalar_lea.vmem %s334, 32
      %1355 = vst [vmem:[%s1354] sm:$0xff] %v1352
      %1356 = vst [vmem:[%s1354 + $0x8] sm:$0xff] %v1353
      %s1357 = sadd.s32 %s416, 2
      %v1358 = vld [vmem:[#allocation2] sm:$0xff]
      %v1359 = vld [vmem:[#allocation2 + $0x8] sm:$0xff]
      %s1360 = scalar_lea.vmem %s310, 48
      %v1361 = vld [vmem:[%s1360] sm:$0xff]
      %v1362 = vld [vmem:[%s1360 + $0x8] sm:$0xf]
      %v1363 = vld [vmem:[%s1360 + $0xc] sm:$0xff]
      %v1364 = vld [vmem:[%s1360 + $0x14] sm:$0xf]
      %v1365 = vpack.c.bf16 %v1359, %v1358
      %1366 = vmatprep.subr.bf16.mxu0 %v542
      %1367 = vmatpush1.bf16.msra.mxu0 %v541
      %1368 = vmatprep.subr.bf16.mxu0 %v539
      %1369 = vmatpush1.bf16.msra.mxu0 %v538
      %1370 = vmatprep.subr.bf16.mxu0 %v536
      %1371 = vmatpush1.bf16.msra.mxu0 %v535
      %1372 = vmatprep.subr.bf16.mxu0 %v533
      %1373 = vmatpush1.bf16.msra.mxu0 %v532
      %1374 = vmatprep.subr.bf16.mxu0 %v530
      %1375 = vmatpush1.bf16.msra.mxu0 %v529
      %1376 = vmatprep.subr.bf16.mxu0 %v527
      %1377 = vmatpush1.bf16.msra.mxu0 %v526
      %1378 = vmatprep.subr.bf16.mxu0 %v524
      %1379 = vmatpush1.bf16.msra.mxu0 %v523
      %1380 = vmatprep.subr.bf16.mxu0 %v521
      %1381 = vmatpush1.bf16.msra.mxu0 %v520
      %1382 = vmatprep.subr.bf16.mxu0 0
      %1383 = vmatpush2.bf16.msra.mxu0 0
      %1384 = vmatprep.subr.bf16.mxu0 0
      %1385 = vmatpush2.bf16.msra.mxu0 0
      %1386 = vmatprep.subr.bf16.mxu0 0
      %1387 = vmatpush2.bf16.msra.mxu0 0
      %1388 = vmatprep.subr.bf16.mxu0 0
      %1389 = vmatpush2.bf16.msra.mxu0 0
      %1390 = vmatprep.subr.bf16.mxu0 0
      %1391 = vmatpush2.bf16.msra.mxu0 0
      %1392 = vmatprep.subr.bf16.mxu0 0
      %1393 = vmatpush2.bf16.msra.mxu0 0
      %1394 = vmatprep.subr.bf16.mxu0 0
      %1395 = vmatpush2.bf16.msra.mxu0 0
      %1396 = vmatprep.subr.bf16.mxu0 0
      %1397 = vmatpush2.bf16.msra.mxu0 0
      %1398 = vmatprep.mubr.bf16.mxu0 0
      %1399 = vmatmul.mubr.bf16.gmra.mxu0 %v1365
      %v1400 = vpop.f32.mrf.mxu0
      %v1401 = vadd.f32 %v428, %v1400
      %v1402 = vpop.f32.mrf.mxu0
      %v1403 = vadd.f32 %v432, %v1402
      %v1404 = vpop.f32.mrf.mxu0
      %v1405 = vadd.f32 %v428, %v1404
      %v1406 = vpop.f32.mrf.mxu0
      %v1407 = vadd.f32 %v432, %v1406
      %1408 = vdwg.mxu0
      %1409 = vmatprep.subr.bf16.mxu0 0
      %1410 = vmatpush1.bf16.msra.mxu0 %v543
      %1411 = vmatprep.subr.bf16.mxu0 0
      %1412 = vmatpush1.bf16.msra.mxu0 %v540
      %1413 = vmatprep.subr.bf16.mxu0 0
      %1414 = vmatpush1.bf16.msra.mxu0 %v537
      %1415 = vmatprep.subr.bf16.mxu0 0
      %1416 = vmatpush1.bf16.msra.mxu0 %v534
      %1417 = vmatprep.subr.bf16.mxu0 0
      %1418 = vmatpush1.bf16.msra.mxu0 %v531
      %1419 = vmatprep.subr.bf16.mxu0 0
      %1420 = vmatpush1.bf16.msra.mxu0 %v528
      %1421 = vmatprep.subr.bf16.mxu0 0
      %1422 = vmatpush1.bf16.msra.mxu0 %v525
      %1423 = vmatprep.subr.bf16.mxu0 0
      %1424 = vmatpush1.bf16.msra.mxu0 %v522
      %1425 = vmatprep.subr.bf16.mxu0 0
      %1426 = vmatpush2.bf16.msra.mxu0 0
      %1427 = vmatprep.subr.bf16.mxu0 0
      %1428 = vmatpush2.bf16.msra.mxu0 0
      %1429 = vmatprep.subr.bf16.mxu0 0
      %1430 = vmatpush2.bf16.msra.mxu0 0
      %1431 = vmatprep.subr.bf16.mxu0 0
      %1432 = vmatpush2.bf16.msra.mxu0 0
      %1433 = vmatprep.subr.bf16.mxu0 0
      %1434 = vmatpush2.bf16.msra.mxu0 0
      %1435 = vmatprep.subr.bf16.mxu0 0
      %1436 = vmatpush2.bf16.msra.mxu0 0
      %1437 = vmatprep.subr.bf16.mxu0 0
      %1438 = vmatpush2.bf16.msra.mxu0 0
      %1439 = vmatprep.subr.bf16.mxu0 0
      %1440 = vmatpush2.bf16.msra.mxu0 0
      %1441 = vmatprep.mubr.bf16.mxu0 0
      %1442 = vmatmul.mubr.bf16.gmra.mxu0 %v1365
      %v1443 = vpop.f32.mrf.mxu0
      %v1444 = vadd.f32 %v436, %v1443
      %v1445 = vpop.f32.mrf.mxu0
      %v1446 = vpop.f32.mrf.mxu0
      %v1447 = vadd.f32 %v436, %v1446
      %v1448 = vpop.f32.mrf.mxu0
      %1449 = vdwg.mxu0
      %v1450 = vunpack.c.l.bf16 %v1361
      %v1451 = vunpack.c.h.bf16 %v1361
      %v1452 = vunpack.c.l.bf16 %v1362
      %v1453 = vunpack.c.l.bf16 %v1363
      %v1454 = vunpack.c.h.bf16 %v1363
      %v1455 = vunpack.c.l.bf16 %v1364
      %v1456 = vadd.f32 %v1450, %v1401
      %v1457 = vadd.f32 %v1453, %v1405
      %v1458 = vxor.u32 %v1456, 2147483648
      %v1459 = vxor.u32 %v1457, 2147483648
      %v1460 = vmul.f32 %v1458, 1.442695
      %v1461 = vpow.pop %v1460
      %v1462 = vmul.f32 %v1459, 1.442695
      %v1463 = vpow.pop %v1462
      %v1464 = vadd.f32 %v1461, 1.0
      %v1465 = vadd.f32 %v1463, 1.0
      %v1466 = vrcp.pop %v1464
      %v1467 = vmul.f32 1.0, %v1466
      %v1468 = vrcp.pop %v1465
      %v1469 = vmul.f32 1.0, %v1468
      %v1470 = vadd.f32 %v1451, %v1403
      %v1471 = vadd.f32 %v1454, %v1407
      %v1472 = vxor.u32 %v1470, 2147483648
      %v1473 = vxor.u32 %v1471, 2147483648
      %v1474 = vmul.f32 %v1472, 1.442695
      %v1475 = vpow.pop %v1474
      %v1476 = vmul.f32 %v1473, 1.442695
      %v1477 = vpow.pop %v1476
      %v1478 = vadd.f32 %v1475, 1.0
      %v1479 = vadd.f32 %v1477, 1.0
      %v1480 = vrcp.pop %v1478
      %v1481 = vmul.f32 1.0, %v1480
      %v1482 = vrcp.pop %v1479
      %v1483 = vmul.f32 1.0, %v1482
      %v1484 = vmul.f32 %v1467, %v1444
      %v1485 = vmul.f32 %v1469, %v1447
      %v1486 = vadd.f32 %v1452, %v1484
      %v1487 = vadd.f32 %v1455, %v1485
      %v1488 = vtanh.pop %v1486
      %v1489 = vtanh.pop %v1487
      %v1490 = vsub.f32 1.0, %v1481
      %v1491 = vsub.f32 1.0, %v1483
      %v1492 = vmul.f32 %v1490, %v1488
      %v1493 = vmul.f32 %v1491, %v1489
      %v1494 = vmul.f32 %v1481, %v1358
      %v1495 = vmul.f32 %v1483, %v1359
      %v1496 = vadd.f32 %v1492, %v1494
      %v1497 = vadd.f32 %v1493, %v1495
      %v1498 = vstv %s1357
      %vm1499 = vcmp.lt.s32.totalorder %v1498, %v414
      %vm1500 = vcmp.lt.s32.totalorder %v1498, %v415
      %v1501 = vsel %vm1499, 1, 0
      %v1502 = vsel %vm1500, 1, 0
      %1503 = vset.pattern.permute.xlu0 0
      %1504 = vperm.xlu0 %1503, %v1501
      %v1505 = vpop.permute.xlu0 %1504
      %1506 = vset.pattern.permute.xlu0 0
      %1507 = vperm.xlu0 %1506, %v1502
      %v1508 = vpop.permute.xlu0 %1507
      %vm1509 = vcmp.eq.s32.totalorder %v1505, 1
      %vm1510 = vcmp.eq.s32.totalorder %v1508, 1
      %v1511 = vsel %vm1509, %v1496, %v1358
      %v1512 = vsel %vm1510, %v1497, %v1359
      %1513 = vst [vmem:[#allocation2] sm:$0xff] %v1511
      %1514 = vst [vmem:[#allocation2 + $0x8] sm:$0xff] %v1512
      %v1515 = vsel %vm1509, %v1496, 0.0
      %v1516 = vsel %vm1510, %v1497, 0.0
      %s1517 = scalar_lea.vmem %s326, 32
      %1518 = vst [vmem:[%s1517] sm:$0xff] %v1515
      %1519 = vst [vmem:[%s1517 + $0x8] sm:$0xff] %v1516
      %s1520 = sadd.s32 %s722, 1
      %v1521 = vld [vmem:[%s724] sm:$0xff]
      %v1522 = vld [vmem:[%s724 + $0x8] sm:$0xff]
      %s1523 = scalar_lea.vmem %s318, 24
      %v1524 = vld [vmem:[%s1523] sm:$0xff]
      %v1525 = vld [vmem:[%s1523 + $0x8] sm:$0xf]
      %v1526 = vld [vmem:[%s1523 + $0xc] sm:$0xff]
      %v1527 = vld [vmem:[%s1523 + $0x14] sm:$0xf]
      %v1528 = vpack.c.bf16 %v1522, %v1521
      %1529 = vmatprep.subr.bf16.mxu0 %v851
      %1530 = vmatpush1.bf16.msra.mxu0 %v850
      %1531 = vmatprep.subr.bf16.mxu0 %v848
      %1532 = vmatpush1.bf16.msra.mxu0 %v847
      %1533 = vmatprep.subr.bf16.mxu0 %v845
      %1534 = vmatpush1.bf16.msra.mxu0 %v844
      %1535 = vmatprep.subr.bf16.mxu0 %v842
      %1536 = vmatpush1.bf16.msra.mxu0 %v841
      %1537 = vmatprep.subr.bf16.mxu0 %v839
      %1538 = vmatpush1.bf16.msra.mxu0 %v838
      %1539 = vmatprep.subr.bf16.mxu0 %v836
      %1540 = vmatpush1.bf16.msra.mxu0 %v835
      %1541 = vmatprep.subr.bf16.mxu0 %v833
      %1542 = vmatpush1.bf16.msra.mxu0 %v832
      %1543 = vmatprep.subr.bf16.mxu0 %v830
      %1544 = vmatpush1.bf16.msra.mxu0 %v829
      %1545 = vmatprep.subr.bf16.mxu0 0
      %1546 = vmatpush2.bf16.msra.mxu0 0
      %1547 = vmatprep.subr.bf16.mxu0 0
      %1548 = vmatpush2.bf16.msra.mxu0 0
      %1549 = vmatprep.subr.bf16.mxu0 0
      %1550 = vmatpush2.bf16.msra.mxu0 0
      %1551 = vmatprep.subr.bf16.mxu0 0
      %1552 = vmatpush2.bf16.msra.mxu0 0
      %1553 = vmatprep.subr.bf16.mxu0 0
      %1554 = vmatpush2.bf16.msra.mxu0 0
      %1555 = vmatprep.subr.bf16.mxu0 0
      %1556 = vmatpush2.bf16.msra.mxu0 0
      %1557 = vmatprep.subr.bf16.mxu0 0
      %1558 = vmatpush2.bf16.msra.mxu0 0
      %1559 = vmatprep.subr.bf16.mxu0 0
      %1560 = vmatpush2.bf16.msra.mxu0 0
      %1561 = vmatprep.mubr.bf16.mxu0 0
      %1562 = vmatmul.mubr.bf16.gmra.mxu0 %v1528
      %v1563 = vpop.f32.mrf.mxu0
      %v1564 = vadd.f32 %v737, %v1563
      %v1565 = vpop.f32.mrf.mxu0
      %v1566 = vadd.f32 %v741, %v1565
      %v1567 = vpop.f32.mrf.mxu0
      %v1568 = vadd.f32 %v737, %v1567
      %v1569 = vpop.f32.mrf.mxu0
      %v1570 = vadd.f32 %v741, %v1569
      %1571 = vdwg.mxu0
      %1572 = vmatprep.subr.bf16.mxu0 0
      %1573 = vmatpush1.bf16.msra.mxu0 %v852
      %1574 = vmatprep.subr.bf16.mxu0 0
      %1575 = vmatpush1.bf16.msra.mxu0 %v849
      %1576 = vmatprep.subr.bf16.mxu0 0
      %1577 = vmatpush1.bf16.msra.mxu0 %v846
      %1578 = vmatprep.subr.bf16.mxu0 0
      %1579 = vmatpush1.bf16.msra.mxu0 %v843
      %1580 = vmatprep.subr.bf16.mxu0 0
      %1581 = vmatpush1.bf16.msra.mxu0 %v840
      %1582 = vmatprep.subr.bf16.mxu0 0
      %1583 = vmatpush1.bf16.msra.mxu0 %v837
      %1584 = vmatprep.subr.bf16.mxu0 0
      %1585 = vmatpush1.bf16.msra.mxu0 %v834
      %1586 = vmatprep.subr.bf16.mxu0 0
      %1587 = vmatpush1.bf16.msra.mxu0 %v831
      %1588 = vmatprep.subr.bf16.mxu0 0
      %1589 = vmatpush2.bf16.msra.mxu0 0
      %1590 = vmatprep.subr.bf16.mxu0 0
      %1591 = vmatpush2.bf16.msra.mxu0 0
      %1592 = vmatprep.subr.bf16.mxu0 0
      %1593 = vmatpush2.bf16.msra.mxu0 0
      %1594 = vmatprep.subr.bf16.mxu0 0
      %1595 = vmatpush2.bf16.msra.mxu0 0
      %1596 = vmatprep.subr.bf16.mxu0 0
      %1597 = vmatpush2.bf16.msra.mxu0 0
      %1598 = vmatprep.subr.bf16.mxu0 0
      %1599 = vmatpush2.bf16.msra.mxu0 0
      %1600 = vmatprep.subr.bf16.mxu0 0
      %1601 = vmatpush2.bf16.msra.mxu0 0
      %1602 = vmatprep.subr.bf16.mxu0 0
      %1603 = vmatpush2.bf16.msra.mxu0 0
      %1604 = vmatprep.mubr.bf16.mxu0 0
      %1605 = vmatmul.mubr.bf16.gmra.mxu0 %v1528
      %v1606 = vpop.f32.mrf.mxu0
      %v1607 = vadd.f32 %v745, %v1606
      %v1608 = vpop.f32.mrf.mxu0
      %v1609 = vpop.f32.mrf.mxu0
      %v1610 = vadd.f32 %v745, %v1609
      %v1611 = vpop.f32.mrf.mxu0
      %1612 = vdwg.mxu0
      %v1613 = vunpack.c.l.bf16 %v1524
      %v1614 = vunpack.c.h.bf16 %v1524
      %v1615 = vunpack.c.l.bf16 %v1525
      %v1616 = vunpack.c.l.bf16 %v1526
      %v1617 = vunpack.c.h.bf16 %v1526
      %v1618 = vunpack.c.l.bf16 %v1527
      %v1619 = vadd.f32 %v1613, %v1564
      %v1620 = vadd.f32 %v1616, %v1568
      %v1621 = vxor.u32 %v1619, 2147483648
      %v1622 = vxor.u32 %v1620, 2147483648
      %v1623 = vmul.f32 %v1621, 1.442695
      %v1624 = vpow.pop %v1623
      %v1625 = vmul.f32 %v1622, 1.442695
      %v1626 = vpow.pop %v1625
      %v1627 = vadd.f32 %v1624, 1.0
      %v1628 = vadd.f32 %v1626, 1.0
      %v1629 = vrcp.pop %v1627
      %v1630 = vmul.f32 1.0, %v1629
      %v1631 = vrcp.pop %v1628
      %v1632 = vmul.f32 1.0, %v1631
      %v1633 = vadd.f32 %v1614, %v1566
      %v1634 = vadd.f32 %v1617, %v1570
      %v1635 = vxor.u32 %v1633, 2147483648
      %v1636 = vxor.u32 %v1634, 2147483648
      %v1637 = vmul.f32 %v1635, 1.442695
      %v1638 = vpow.pop %v1637
      %v1639 = vmul.f32 %v1636, 1.442695
      %v1640 = vpow.pop %v1639
      %v1641 = vadd.f32 %v1638, 1.0
      %v1642 = vadd.f32 %v1640, 1.0
      %v1643 = vrcp.pop %v1641
      %v1644 = vmul.f32 1.0, %v1643
      %v1645 = vrcp.pop %v1642
      %v1646 = vmul.f32 1.0, %v1645
      %v1647 = vmul.f32 %v1630, %v1607
      %v1648 = vmul.f32 %v1632, %v1610
      %v1649 = vadd.f32 %v1615, %v1647
      %v1650 = vadd.f32 %v1618, %v1648
      %v1651 = vtanh.pop %v1649
      %v1652 = vtanh.pop %v1650
      %v1653 = vsub.f32 1.0, %v1644
      %v1654 = vsub.f32 1.0, %v1646
      %v1655 = vmul.f32 %v1653, %v1651
      %v1656 = vmul.f32 %v1654, %v1652
      %v1657 = vmul.f32 %v1644, %v1521
      %v1658 = vmul.f32 %v1646, %v1522
      %v1659 = vadd.f32 %v1655, %v1657
      %v1660 = vadd.f32 %v1656, %v1658
      %v1661 = vstv %s1520
      %vm1662 = vcmp.lt.s32.totalorder %v1661, %v414
      %vm1663 = vcmp.lt.s32.totalorder %v1661, %v415
      %v1664 = vsel %vm1662, 1, 0
      %v1665 = vsel %vm1663, 1, 0
      %1666 = vset.pattern.permute.xlu0 0
      %1667 = vperm.xlu0 %1666, %v1664
      %v1668 = vpop.permute.xlu0 %1667
      %1669 = vset.pattern.permute.xlu0 0
      %1670 = vperm.xlu0 %1669, %v1665
      %v1671 = vpop.permute.xlu0 %1670
      %vm1672 = vcmp.eq.s32.totalorder %v1668, 1
      %vm1673 = vcmp.eq.s32.totalorder %v1671, 1
      %v1674 = vsel %vm1672, %v1659, %v1521
      %v1675 = vsel %vm1673, %v1660, %v1522
      %1676 = vst [vmem:[%s724] sm:$0xff] %v1674
      %1677 = vst [vmem:[%s724 + $0x8] sm:$0xff] %v1675
      %v1678 = vsel %vm1672, %v1659, 0.0
      %v1679 = vsel %vm1673, %v1660, 0.0
      %s1680 = scalar_lea.vmem %s334, 16
      %1681 = vst [vmem:[%s1680] sm:$0xff] %v1678
      %1682 = vst [vmem:[%s1680 + $0x8] sm:$0xff] %v1679
      %s1683 = sadd.s32 %s416, 3
      %v1684 = vld [vmem:[#allocation2] sm:$0xff]
      %v1685 = vld [vmem:[#allocation2 + $0x8] sm:$0xff]
      %s1686 = scalar_lea.vmem %s310, 72
      %v1687 = vld [vmem:[%s1686] sm:$0xff]
      %v1688 = vld [vmem:[%s1686 + $0x8] sm:$0xf]
      %v1689 = vld [vmem:[%s1686 + $0xc] sm:$0xff]
      %v1690 = vld [vmem:[%s1686 + $0x14] sm:$0xf]
      %v1691 = vpack.c.bf16 %v1685, %v1684
      %1692 = vmatprep.subr.bf16.mxu0 %v542
      %1693 = vmatpush1.bf16.msra.mxu0 %v541
      %1694 = vmatprep.subr.bf16.mxu0 %v539
      %1695 = vmatpush1.bf16.msra.mxu0 %v538
      %1696 = vmatprep.subr.bf16.mxu0 %v536
      %1697 = vmatpush1.bf16.msra.mxu0 %v535
      %1698 = vmatprep.subr.bf16.mxu0 %v533
      %1699 = vmatpush1.bf16.msra.mxu0 %v532
      %1700 = vmatprep.subr.bf16.mxu0 %v530
      %1701 = vmatpush1.bf16.msra.mxu0 %v529
      %1702 = vmatprep.subr.bf16.mxu0 %v527
      %1703 = vmatpush1.bf16.msra.mxu0 %v526
      %1704 = vmatprep.subr.bf16.mxu0 %v524
      %1705 = vmatpush1.bf16.msra.mxu0 %v523
      %1706 = vmatprep.subr.bf16.mxu0 %v521
      %1707 = vmatpush1.bf16.msra.mxu0 %v520
      %1708 = vmatprep.subr.bf16.mxu0 0
      %1709 = vmatpush2.bf16.msra.mxu0 0
      %1710 = vmatprep.subr.bf16.mxu0 0
      %1711 = vmatpush2.bf16.msra.mxu0 0
      %1712 = vmatprep.subr.bf16.mxu0 0
      %1713 = vmatpush2.bf16.msra.mxu0 0
      %1714 = vmatprep.subr.bf16.mxu0 0
      %1715 = vmatpush2.bf16.msra.mxu0 0
      %1716 = vmatprep.subr.bf16.mxu0 0
      %1717 = vmatpush2.bf16.msra.mxu0 0
      %1718 = vmatprep.subr.bf16.mxu0 0
      %1719 = vmatpush2.bf16.msra.mxu0 0
      %1720 = vmatprep.subr.bf16.mxu0 0
      %1721 = vmatpush2.bf16.msra.mxu0 0
      %1722 = vmatprep.subr.bf16.mxu0 0
      %1723 = vmatpush2.bf16.msra.mxu0 0
      %1724 = vmatprep.mubr.bf16.mxu0 0
      %1725 = vmatmul.mubr.bf16.gmra.mxu0 %v1691
      %v1726 = vpop.f32.mrf.mxu0
      %v1727 = vadd.f32 %v428, %v1726
      %v1728 = vpop.f32.mrf.mxu0
      %v1729 = vadd.f32 %v432, %v1728
      %v1730 = vpop.f32.mrf.mxu0
      %v1731 = vadd.f32 %v428, %v1730
      %v1732 = vpop.f32.mrf.mxu0
      %v1733 = vadd.f32 %v432, %v1732
      %1734 = vdwg.mxu0
      %1735 = vmatprep.subr.bf16.mxu0 0
      %1736 = vmatpush1.bf16.msra.mxu0 %v543
      %1737 = vmatprep.subr.bf16.mxu0 0
      %1738 = vmatpush1.bf16.msra.mxu0 %v540
      %1739 = vmatprep.subr.bf16.mxu0 0
      %1740 = vmatpush1.bf16.msra.mxu0 %v537
      %1741 = vmatprep.subr.bf16.mxu0 0
      %1742 = vmatpush1.bf16.msra.mxu0 %v534
      %1743 = vmatprep.subr.bf16.mxu0 0
      %1744 = vmatpush1.bf16.msra.mxu0 %v531
      %1745 = vmatprep.subr.bf16.mxu0 0
      %1746 = vmatpush1.bf16.msra.mxu0 %v528
      %1747 = vmatprep.subr.bf16.mxu0 0
      %1748 = vmatpush1.bf16.msra.mxu0 %v525
      %1749 = vmatprep.subr.bf16.mxu0 0
      %1750 = vmatpush1.bf16.msra.mxu0 %v522
      %1751 = vmatprep.subr.bf16.mxu0 0
      %1752 = vmatpush2.bf16.msra.mxu0 0
      %1753 = vmatprep.subr.bf16.mxu0 0
      %1754 = vmatpush2.bf16.msra.mxu0 0
      %1755 = vmatprep.subr.bf16.mxu0 0
      %1756 = vmatpush2.bf16.msra.mxu0 0
      %1757 = vmatprep.subr.bf16.mxu0 0
      %1758 = vmatpush2.bf16.msra.mxu0 0
      %1759 = vmatprep.subr.bf16.mxu0 0
      %1760 = vmatpush2.bf16.msra.mxu0 0
      %1761 = vmatprep.subr.bf16.mxu0 0
      %1762 = vmatpush2.bf16.msra.mxu0 0
      %1763 = vmatprep.subr.bf16.mxu0 0
      %1764 = vmatpush2.bf16.msra.mxu0 0
      %1765 = vmatprep.subr.bf16.mxu0 0
      %1766 = vmatpush2.bf16.msra.mxu0 0
      %1767 = vmatprep.mubr.bf16.mxu0 0
      %1768 = vmatmul.mubr.bf16.gmra.mxu0 %v1691
      %v1769 = vpop.f32.mrf.mxu0
      %v1770 = vadd.f32 %v436, %v1769
      %v1771 = vpop.f32.mrf.mxu0
      %v1772 = vpop.f32.mrf.mxu0
      %v1773 = vadd.f32 %v436, %v1772
      %v1774 = vpop.f32.mrf.mxu0
      %1775 = vdwg.mxu0
      %v1776 = vunpack.c.l.bf16 %v1687
      %v1777 = vunpack.c.h.bf16 %v1687
      %v1778 = vunpack.c.l.bf16 %v1688
      %v1779 = vunpack.c.l.bf16 %v1689
      %v1780 = vunpack.c.h.bf16 %v1689
      %v1781 = vunpack.c.l.bf16 %v1690
      %v1782 = vadd.f32 %v1776, %v1727
      %v1783 = vadd.f32 %v1779, %v1731
      %v1784 = vxor.u32 %v1782, 2147483648
      %v1785 = vxor.u32 %v1783, 2147483648
      %v1786 = vmul.f32 %v1784, 1.442695
      %v1787 = vpow.pop %v1786
      %v1788 = vmul.f32 %v1785, 1.442695
      %v1789 = vpow.pop %v1788
      %v1790 = vadd.f32 %v1787, 1.0
      %v1791 = vadd.f32 %v1789, 1.0
      %v1792 = vrcp.pop %v1790
      %v1793 = vmul.f32 1.0, %v1792
      %v1794 = vrcp.pop %v1791
      %v1795 = vmul.f32 1.0, %v1794
      %v1796 = vadd.f32 %v1777, %v1729
      %v1797 = vadd.f32 %v1780, %v1733
      %v1798 = vxor.u32 %v1796, 2147483648
      %v1799 = vxor.u32 %v1797, 2147483648
      %v1800 = vmul.f32 %v1798, 1.442695
      %v1801 = vpow.pop %v1800
      %v1802 = vmul.f32 %v1799, 1.442695
      %v1803 = vpow.pop %v1802
      %v1804 = vadd.f32 %v1801, 1.0
      %v1805 = vadd.f32 %v1803, 1.0
      %v1806 = vrcp.pop %v1804
      %v1807 = vmul.f32 1.0, %v1806
      %v1808 = vrcp.pop %v1805
      %v1809 = vmul.f32 1.0, %v1808
      %v1810 = vmul.f32 %v1793, %v1770
      %v1811 = vmul.f32 %v1795, %v1773
      %v1812 = vadd.f32 %v1778, %v1810
      %v1813 = vadd.f32 %v1781, %v1811
      %v1814 = vtanh.pop %v1812
      %v1815 = vtanh.pop %v1813
      %v1816 = vsub.f32 1.0, %v1807
      %v1817 = vsub.f32 1.0, %v1809
      %v1818 = vmul.f32 %v1816, %v1814
      %v1819 = vmul.f32 %v1817, %v1815
      %v1820 = vmul.f32 %v1807, %v1684
      %v1821 = vmul.f32 %v1809, %v1685
      %v1822 = vadd.f32 %v1818, %v1820
      %v1823 = vadd.f32 %v1819, %v1821
      %v1824 = vstv %s1683
      %vm1825 = vcmp.lt.s32.totalorder %v1824, %v414
      %vm1826 = vcmp.lt.s32.totalorder %v1824, %v415
      %v1827 = vsel %vm1825, 1, 0
      %v1828 = vsel %vm1826, 1, 0
      %1829 = vset.pattern.permute.xlu0 0
      %1830 = vperm.xlu0 %1829, %v1827
      %v1831 = vpop.permute.xlu0 %1830
      %1832 = vset.pattern.permute.xlu0 0
      %1833 = vperm.xlu0 %1832, %v1828
      %v1834 = vpop.permute.xlu0 %1833
      %vm1835 = vcmp.eq.s32.totalorder %v1831, 1
      %vm1836 = vcmp.eq.s32.totalorder %v1834, 1
      %v1837 = vsel %vm1835, %v1822, %v1684
      %v1838 = vsel %vm1836, %v1823, %v1685
      %1839 = vst [vmem:[#allocation2] sm:$0xff] %v1837
      %1840 = vst [vmem:[#allocation2 + $0x8] sm:$0xff] %v1838
      %v1841 = vsel %vm1835, %v1822, 0.0
      %v1842 = vsel %vm1836, %v1823, 0.0
      %s1843 = scalar_lea.vmem %s326, 48
      %1844 = vst [vmem:[%s1843] sm:$0xff] %v1841
      %1845 = vst [vmem:[%s1843 + $0x8] sm:$0xff] %v1842
      %v1846 = vld [vmem:[%s724] sm:$0xff]
      %v1847 = vld [vmem:[%s724 + $0x8] sm:$0xff]
      %v1848 = vld [vmem:[%s318] sm:$0xff]
      %v1849 = vld [vmem:[%s318 + $0x8] sm:$0xf]
      %v1850 = vld [vmem:[%s318 + $0xc] sm:$0xff]
      %v1851 = vld [vmem:[%s318 + $0x14] sm:$0xf]
      %v1852 = vpack.c.bf16 %v1847, %v1846
      %1853 = vmatprep.subr.bf16.mxu0 %v851
      %1854 = vmatpush1.bf16.msra.mxu0 %v850
      %1855 = vmatprep.subr.bf16.mxu0 %v848
      %1856 = vmatpush1.bf16.msra.mxu0 %v847
      %1857 = vmatprep.subr.bf16.mxu0 %v845
      %1858 = vmatpush1.bf16.msra.mxu0 %v844
      %1859 = vmatprep.subr.bf16.mxu0 %v842
      %1860 = vmatpush1.bf16.msra.mxu0 %v841
      %1861 = vmatprep.subr.bf16.mxu0 %v839
      %1862 = vmatpush1.bf16.msra.mxu0 %v838
      %1863 = vmatprep.subr.bf16.mxu0 %v836
      %1864 = vmatpush1.bf16.msra.mxu0 %v835
      %1865 = vmatprep.subr.bf16.mxu0 %v833
      %1866 = vmatpush1.bf16.msra.mxu0 %v832
      %1867 = vmatprep.subr.bf16.mxu0 %v830
      %1868 = vmatpush1.bf16.msra.mxu0 %v829
      %1869 = vmatprep.subr.bf16.mxu0 0
      %1870 = vmatpush2.bf16.msra.mxu0 0
      %1871 = vmatprep.subr.bf16.mxu0 0
      %1872 = vmatpush2.bf16.msra.mxu0 0
      %1873 = vmatprep.subr.bf16.mxu0 0
      %1874 = vmatpush2.bf16.msra.mxu0 0
      %1875 = vmatprep.subr.bf16.mxu0 0
      %1876 = vmatpush2.bf16.msra.mxu0 0
      %1877 = vmatprep.subr.bf16.mxu0 0
      %1878 = vmatpush2.bf16.msra.mxu0 0
      %1879 = vmatprep.subr.bf16.mxu0 0
      %1880 = vmatpush2.bf16.msra.mxu0 0
      %1881 = vmatprep.subr.bf16.mxu0 0
      %1882 = vmatpush2.bf16.msra.mxu0 0
      %1883 = vmatprep.subr.bf16.mxu0 0
      %1884 = vmatpush2.bf16.msra.mxu0 0
      %1885 = vmatprep.mubr.bf16.mxu0 0
      %1886 = vmatmul.mubr.bf16.gmra.mxu0 %v1852
      %v1887 = vpop.f32.mrf.mxu0
      %v1888 = vadd.f32 %v737, %v1887
      %v1889 = vpop.f32.mrf.mxu0
      %v1890 = vadd.f32 %v741, %v1889
      %v1891 = vpop.f32.mrf.mxu0
      %v1892 = vadd.f32 %v737, %v1891
      %v1893 = vpop.f32.mrf.mxu0
      %v1894 = vadd.f32 %v741, %v1893
      %1895 = vdwg.mxu0
      %1896 = vmatprep.subr.bf16.mxu0 0
      %1897 = vmatpush1.bf16.msra.mxu0 %v852
      %1898 = vmatprep.subr.bf16.mxu0 0
      %1899 = vmatpush1.bf16.msra.mxu0 %v849
      %1900 = vmatprep.subr.bf16.mxu0 0
      %1901 = vmatpush1.bf16.msra.mxu0 %v846
      %1902 = vmatprep.subr.bf16.mxu0 0
      %1903 = vmatpush1.bf16.msra.mxu0 %v843
      %1904 = vmatprep.subr.bf16.mxu0 0
      %1905 = vmatpush1.bf16.msra.mxu0 %v840
      %1906 = vmatprep.subr.bf16.mxu0 0
      %1907 = vmatpush1.bf16.msra.mxu0 %v837
      %1908 = vmatprep.subr.bf16.mxu0 0
      %1909 = vmatpush1.bf16.msra.mxu0 %v834
      %1910 = vmatprep.subr.bf16.mxu0 0
      %1911 = vmatpush1.bf16.msra.mxu0 %v831
      %1912 = vmatprep.subr.bf16.mxu0 0
      %1913 = vmatpush2.bf16.msra.mxu0 0
      %1914 = vmatprep.subr.bf16.mxu0 0
      %1915 = vmatpush2.bf16.msra.mxu0 0
      %1916 = vmatprep.subr.bf16.mxu0 0
      %1917 = vmatpush2.bf16.msra.mxu0 0
      %1918 = vmatprep.subr.bf16.mxu0 0
      %1919 = vmatpush2.bf16.msra.mxu0 0
      %1920 = vmatprep.subr.bf16.mxu0 0
      %1921 = vmatpush2.bf16.msra.mxu0 0
      %1922 = vmatprep.subr.bf16.mxu0 0
      %1923 = vmatpush2.bf16.msra.mxu0 0
      %1924 = vmatprep.subr.bf16.mxu0 0
      %1925 = vmatpush2.bf16.msra.mxu0 0
      %1926 = vmatprep.subr.bf16.mxu0 0
      %1927 = vmatpush2.bf16.msra.mxu0 0
      %1928 = vmatprep.mubr.bf16.mxu0 0
      %1929 = vmatmul.mubr.bf16.gmra.mxu0 %v1852
      %v1930 = vpop.f32.mrf.mxu0
      %v1931 = vadd.f32 %v745, %v1930
      %v1932 = vpop.f32.mrf.mxu0
      %v1933 = vpop.f32.mrf.mxu0
      %v1934 = vadd.f32 %v745, %v1933
      %v1935 = vpop.f32.mrf.mxu0
      %1936 = vdwg.mxu0
      %v1937 = vunpack.c.l.bf16 %v1848
      %v1938 = vunpack.c.h.bf16 %v1848
      %v1939 = vunpack.c.l.bf16 %v1849
      %v1940 = vunpack.c.l.bf16 %v1850
      %v1941 = vunpack.c.h.bf16 %v1850
      %v1942 = vunpack.c.l.bf16 %v1851
      %v1943 = vadd.f32 %v1937, %v1888
      %v1944 = vadd.f32 %v1940, %v1892
      %v1945 = vxor.u32 %v1943, 2147483648
      %v1946 = vxor.u32 %v1944, 2147483648
      %v1947 = vmul.f32 %v1945, 1.442695
      %v1948 = vpow.pop %v1947
      %v1949 = vmul.f32 %v1946, 1.442695
      %v1950 = vpow.pop %v1949
      %v1951 = vadd.f32 %v1948, 1.0
      %v1952 = vadd.f32 %v1950, 1.0
      %v1953 = vrcp.pop %v1951
      %v1954 = vmul.f32 1.0, %v1953
      %v1955 = vrcp.pop %v1952
      %v1956 = vmul.f32 1.0, %v1955
      %v1957 = vadd.f32 %v1938, %v1890
      %v1958 = vadd.f32 %v1941, %v1894
      %v1959 = vxor.u32 %v1957, 2147483648
      %v1960 = vxor.u32 %v1958, 2147483648
      %v1961 = vmul.f32 %v1959, 1.442695
      %v1962 = vpow.pop %v1961
      %v1963 = vmul.f32 %v1960, 1.442695
      %v1964 = vpow.pop %v1963
      %v1965 = vadd.f32 %v1962, 1.0
      %v1966 = vadd.f32 %v1964, 1.0
      %v1967 = vrcp.pop %v1965
      %v1968 = vmul.f32 1.0, %v1967
      %v1969 = vrcp.pop %v1966
      %v1970 = vmul.f32 1.0, %v1969
      %v1971 = vmul.f32 %v1954, %v1931
      %v1972 = vmul.f32 %v1956, %v1934
      %v1973 = vadd.f32 %v1939, %v1971
      %v1974 = vadd.f32 %v1942, %v1972
      %v1975 = vtanh.pop %v1973
      %v1976 = vtanh.pop %v1974
      %v1977 = vsub.f32 1.0, %v1968
      %v1978 = vsub.f32 1.0, %v1970
      %v1979 = vmul.f32 %v1977, %v1975
      %v1980 = vmul.f32 %v1978, %v1976
      %v1981 = vmul.f32 %v1968, %v1846
      %v1982 = vmul.f32 %v1970, %v1847
      %v1983 = vadd.f32 %v1979, %v1981
      %v1984 = vadd.f32 %v1980, %v1982
      %v1985 = vstv %s722
      %vm1986 = vcmp.lt.s32.totalorder %v1985, %v414
      %vm1987 = vcmp.lt.s32.totalorder %v1985, %v415
      %v1988 = vsel %vm1986, 1, 0
      %v1989 = vsel %vm1987, 1, 0
      %1990 = vset.pattern.permute.xlu0 0
      %1991 = vperm.xlu0 %1990, %v1988
      %v1992 = vpop.permute.xlu0 %1991
      %1993 = vset.pattern.permute.xlu0 0
      %1994 = vperm.xlu0 %1993, %v1989
      %v1995 = vpop.permute.xlu0 %1994
      %vm1996 = vcmp.eq.s32.totalorder %v1992, 1
      %vm1997 = vcmp.eq.s32.totalorder %v1995, 1
      %v1998 = vsel %vm1996, %v1983, %v1846
      %v1999 = vsel %vm1997, %v1984, %v1847
      %2000 = vst [vmem:[%s724] sm:$0xff] %v1998
      %2001 = vst [vmem:[%s724 + $0x8] sm:$0xff] %v1999
      %v2002 = vsel %vm1996, %v1983, 0.0
      %v2003 = vsel %vm1997, %v1984, 0.0
      %2004 = vst [vmem:[%s334] sm:$0xff] %v2002
      %2005 = vst [vmem:[%s334 + $0x8] sm:$0xff] %v2003
      %p2006 = scmp.eq.s32.totalorder %s19, 1
      // Predicated region
      $region45: #{encoder_rnn_forward.3} parent=39 // pred_check
        %p2007 = pneg %p2006
      $region46: #{encoder_rnn_forward.3} parent=39 // pred_check_branch
        %2009 = sbr.rel (%p2007) target = $region48
      $region47: #{encoder_rnn_forward.3} parent=39 // pred_region
        %v2010 = vld [vmem:[#allocation2] sm:$0xff]
        %v2011 = vld [vmem:[#allocation2 + $0x8] sm:$0xff]
        %v2012 = vld [vmem:[#allocation2 + $0x10] sm:$0xff]
        %v2013 = vld [vmem:[#allocation2 + $0x18] sm:$0xff]
        %2014 = vst [vmem:[%s7] sm:$0xff] %v2010
        %2015 = vst [vmem:[%s7 + $0x8] sm:$0xff] %v2011
        %2016 = vst [vmem:[%s7 + $0x10] sm:$0xff] %v2012
        %2017 = vst [vmem:[%s7 + $0x18] sm:$0xff] %v2013
      $region48: #{encoder_rnn_forward.3} parent=39 // pred_fallthru
        _
      %s2018 = smul.u32 4, %s19
      %p2019 = scmp.lt.s32.totalorder %s2018, 7
      %s2020 = scalar_select %p2019, %s2018, 7
      %s2021 = smul.addr %s2020, 2
      %s2022 = smul.addr %s2021, 8
      %s2023 = scalar_lea.vmem %s5, %s2022
      %s2024 = ssub.s32 1, %s19
      %s2025 = smul.u32 4, %s2024
      %p2026 = scmp.lt.s32.totalorder %s2025, 7
      %s2027 = scalar_select %p2026, %s2025, 7
      %s2028 = smul.addr %s2027, 2
      %s2029 = smul.addr %s2028, 8
      %s2030 = scalar_lea.vmem %s6, %s2029
      // Predicated region
      $region49: #{encoder_rnn_forward.3} parent=39 // pred_check
        %p2031 = pneg %p154
      $region50: #{encoder_rnn_forward.3} parent=39 // pred_check_branch
        %2033 = sbr.rel (%p2031) target = $region52
      $region51: #{encoder_rnn_forward.3} parent=39 // pred_region
        %s2034 = smul.u32 4, %s19
      $region52: #{encoder_rnn_forward.3} parent=39 // pred_fallthru
        _
      // Predicated region
      $region53: #{encoder_rnn_forward.3} parent=39 // pred_check
        %p2035 = pneg %p182
      $region54: #{encoder_rnn_forward.3} parent=39 // pred_check_branch
        %2037 = sbr.rel (%p2035) target = $region56
      $region55: #{encoder_rnn_forward.3} parent=39 // pred_region
        %s2038 = ssub.s32 1, %s19
        %s2039 = smul.u32 4, %s2038
      $region56: #{encoder_rnn_forward.3} parent=39 // pred_fallthru
        _
      // Predicated region
      $region57: #{encoder_rnn_forward.3} parent=39 // pred_check
        %p2040 = pneg %p203
      $region58: #{encoder_rnn_forward.3} parent=39 // pred_check_branch
        %2042 = sbr.rel (%p2040) target = $region60
      $region59: #{encoder_rnn_forward.3} parent=39 // pred_region
        _
      $region60: #{encoder_rnn_forward.3} parent=39 // pred_fallthru
        _
      // Predicated region
      $region61: #{encoder_rnn_forward.3} parent=39 // pred_check
        %p2043 = pneg %p203
      $region62: #{encoder_rnn_forward.3} parent=39 // pred_check_branch
        %2045 = sbr.rel (%p2043) target = $region64
      $region63: #{encoder_rnn_forward.3} parent=39 // pred_region
        _
      $region64: #{encoder_rnn_forward.3} parent=39 // pred_fallthru
        _
    $region40: #{encoder_rnn_forward.3} parent=5 // pred_fallthru
      _
    %p2046 = scmp.le.s32.totalorder 2, %s14
    // Predicated region
    $region65: #{encoder_rnn_forward.3} parent=5 // pred_check
      %p2047 = pneg %p2046
    $region66: #{encoder_rnn_forward.3} parent=5 // pred_check_branch
      %2049 = sbr.rel (%p2047) target = $region68
    $region67: #{encoder_rnn_forward.3} parent=5 // pred_region
      %s2050 = ssub.s32 %s14, 2
      // Predicated region
      $region69: #{encoder_rnn_forward.3} parent=67 // pred_check
        %p2051 = pneg %p160
      $region70: #{encoder_rnn_forward.3} parent=67 // pred_check_branch
        %2053 = sbr.rel (%p2051) target = $region72
      $region71: #{encoder_rnn_forward.3} parent=67 // pred_region
        %s2054 = smul.u32 4, %s20
        %p2055 = scmp.lt.s32.totalorder %s2054, 7
        %s2056 = scalar_select %p2055, %s2054, 7
        %s2057 = smul.addr %s2056, 2
        %s2058 = smul.addr %s2057, 8
        %s2059 = scalar_lea.vmem %s5, %s2058
      $region72: #{encoder_rnn_forward.3} parent=67 // pred_fallthru
        _
      // Predicated region
      $region73: #{encoder_rnn_forward.3} parent=67 // pred_check
        %p2060 = pneg %p188
      $region74: #{encoder_rnn_forward.3} parent=67 // pred_check_branch
        %2062 = sbr.rel (%p2060) target = $region76
      $region75: #{encoder_rnn_forward.3} parent=67 // pred_region
        %s2063 = ssub.s32 1, %s20
        %s2064 = smul.u32 4, %s2063
        %p2065 = scmp.lt.s32.totalorder %s2064, 7
        %s2066 = scalar_select %p2065, %s2064, 7
        %s2067 = smul.addr %s2066, 2
        %s2068 = smul.addr %s2067, 8
        %s2069 = scalar_lea.vmem %s6, %s2068
      $region76: #{encoder_rnn_forward.3} parent=67 // pred_fallthru
        _
    $region68: #{encoder_rnn_forward.3} parent=5 // pred_fallthru
      _
  $region6: #{encoder_rnn_forward.3} parent=0 // loop_footer
    %s18 = sadd.s32 1, %s14
  $region7: #{encoder_rnn_forward.3} parent=0 // loop_footer_branch
    %13 = sbr.rel target = $region3
  $region8: #{encoder_rnn_forward.3} parent=0 // loop_exit
    _

</llo_original>
